<compile_context>
chip_gen: v6e
topology: v6e:2x2x1
jax: 0.10.0
libtpu: 0.0.40
codegen_flags: <defaults>
</compile_context>

<pallas_src>
import functools
import math

import numpy as np

import jax
import jax.numpy as jnp
from jax import lax
from jax.experimental import pallas as pl
from jax.experimental.pallas import tpu as pltpu

# 48 MiB: above the 16/32 MiB defaults (more pipeline headroom on v5e/v6e)
# while staying safely under v7x's 64 MiB physical VMEM.
VMEM_LIMIT = 48 * 1024 * 1024


# ----------------------------------------------------------------------------
# Pallas kernels
# ----------------------------------------------------------------------------

def _qkv_kernel(x_ref, w_ref, b_ref, o_ref):
    # x: (1, Cin, HW), w: (3*hidden, Cin) bf16, b: (3*hidden, 1) -> o: (1, 3*hidden, HW)
    xb = x_ref[0].astype(jnp.bfloat16)
    o_ref[0] = (
        jnp.dot(w_ref[...], xb, preferred_element_type=jnp.float32)
        + b_ref[...]
    )


def _conv3x3_kernel(*refs, dilation, H, W, has_residual):
    # x   : (1, Cin, HW)      flat NCHW image (one grid step per image)
    # w   : (9, Cout, Cin)    per-tap weights, bf16, tap index = kh*3 + kw
    # b   : (Cout, 1)
    # mask: (9, 1, HW)        0/1 border-validity mask per tap (f32)
    # res : (1, Cout, HW)     optional fused residual
    # o   : (1, Cout, HW)     lane-dense output (last dim = HW)
    if has_residual:
        x_ref, w_ref, b_ref, mask_ref, res_ref, o_ref = refs
    else:
        x_ref, w_ref, b_ref, mask_ref, o_ref = refs
        res_ref = None

    HW = H * W
    x = x_ref[0]                                    # (Cin, HW) f32
    acc = None
    for kh in range(3):
        for kw in range(3):
            t = kh * 3 + kw
            # output flat index r needs input flat index r + s (zero if OOB)
            s = (kh - 1) * dilation * W + (kw - 1) * dilation
            if s == 0:
                shifted = x
            else:
                # roll ≡ jnp.roll: shifted[r] = x[(r + s) mod HW]
                shifted = pltpu.roll(x, shift=(-s) % HW, axis=1)
            tap = (shifted * mask_ref[t]).astype(jnp.bfloat16)   # (Cin, HW)
            d = jnp.dot(w_ref[t], tap, preferred_element_type=jnp.float32)
            acc = d if acc is None else acc + d

    acc = acc + b_ref[...]                          # (Cout, HW) + (Cout, 1)
    acc = jnp.where(acc > 0, acc, 0.2 * acc)        # LeakyReLU(0.2), f32
    if has_residual:
        acc = acc + res_ref[0]                      # fused residual add
    o_ref[0] = acc
    # TODO(synk): for production H/W tile the HW axis with a dilation halo so
    # v7x (64 MiB VMEM, 2 TCs) gets a larger grid and smaller working sets.


def _attention_kernel(q_ref, k_ref, v_ref, o_ref, *, scale):
    # q/k/v: (1, L, D) -- one batch element per grid step.
    q = q_ref[0].astype(jnp.bfloat16)
    k = k_ref[0].astype(jnp.bfloat16)
    v = v_ref[0].astype(jnp.bfloat16)
    s = lax.dot_general(q, k, (((1,), (1,)), ((), ())),
                        preferred_element_type=jnp.float32) * scale   # (L, L)
    m = jnp.max(s, axis=-1, keepdims=True)
    e = jnp.exp(s - m)
    inv = pl.reciprocal(jnp.sum(e, axis=-1, keepdims=True), approx=True)
    p = (e * inv).astype(jnp.bfloat16)
    o_ref[0] = jnp.dot(p, v, preferred_element_type=jnp.float32)
    # TODO(synk): for long sequences switch to flash-style online softmax over
    # KV blocks so the (L, L) score matrix never materializes in VMEM.


# ----------------------------------------------------------------------------
# pallas_call wrappers
# ----------------------------------------------------------------------------

def qkv_matmul(x_flat, w_qkv, b_qkv):
    """Fused Q/K/V 1x1 conv: per-image (3*hidden, Cin) @ (Cin, HW)."""
    N, Cin, HW = x_flat.shape
    O = w_qkv.shape[0]
    return pl.pallas_call(
        _qkv_kernel,
        out_shape=jax.ShapeDtypeStruct((N, O, HW), jnp.float32),
        grid=(N,),
        in_specs=[
            pl.BlockSpec((1, Cin, HW), lambda n: (n, 0, 0)),
            pl.BlockSpec((O, Cin), lambda n: (0, 0)),       # weights resident
            pl.BlockSpec((O, 1), lambda n: (0, 0)),
        ],
        out_specs=pl.BlockSpec((1, O, HW), lambda n: (n, 0, 0)),
        compiler_params=pltpu.CompilerParams(
            dimension_semantics=("parallel",),
            vmem_limit_bytes=VMEM_LIMIT),
    )(x_flat, w_qkv, b_qkv)


@functools.lru_cache(maxsize=None)
def _conv_masks_np(H, W, dilation):
    """0/1 validity mask per tap (compile-time constant; zero-padding conv)."""
    HW = H * W
    hh, ww = np.meshgrid(np.arange(H), np.arange(W), indexing="ij")
    hh = hh.reshape(-1)
    ww = ww.reshape(-1)
    masks = np.zeros((9, 1, HW), np.float32)
    for kh in range(3):
        for kw in range(3):
            dh = (kh - 1) * dilation
            dw = (kw - 1) * dilation
            valid = ((hh + dh >= 0) & (hh + dh < H) &
                     (ww + dw >= 0) & (ww + dw < W))
            masks[kh * 3 + kw, 0, :] = valid.astype(np.float32)
    return masks


def conv3x3(x_flat, w_taps, bias, *, dilation, H, W, residual=None):
    """'Same' 3x3 conv (padding == dilation) on flat NCHW activations,
    with fused LeakyReLU(0.2) and optional fused residual add."""
    N, Cin, HW = x_flat.shape
    Cout = w_taps.shape[1]
    masks = jnp.asarray(_conv_masks_np(H, W, dilation))
    has_res = residual is not None

    kern = functools.partial(_conv3x3_kernel, dilation=dilation, H=H, W=W,
                             has_residual=has_res)
    in_specs = [
        pl.BlockSpec((1, Cin, HW), lambda n: (n, 0, 0)),
        pl.BlockSpec((9, Cout, Cin), lambda n: (0, 0, 0)),  # weights resident
        pl.BlockSpec((Cout, 1), lambda n: (0, 0)),
        pl.BlockSpec((9, 1, HW), lambda n: (0, 0, 0)),
    ]
    args = [x_flat, w_taps, bias, masks]
    if has_res:
        in_specs.append(pl.BlockSpec((1, Cout, HW), lambda n: (n, 0, 0)))
        args.append(residual)

    return pl.pallas_call(
        kern,
        out_shape=jax.ShapeDtypeStruct((N, Cout, HW), jnp.float32),
        grid=(N,),
        in_specs=in_specs,
        out_specs=pl.BlockSpec((1, Cout, HW), lambda n: (n, 0, 0)),
        compiler_params=pltpu.CompilerParams(
            dimension_semantics=("parallel",),
            vmem_limit_bytes=VMEM_LIMIT),
    )(*args)


def scaled_dot_attention(q, k, v):
    """q/k/v: (b, L, D).  Grid over batch (parallel), per-batch blocks."""
    bsz, L, D = q.shape
    kern = functools.partial(_attention_kernel, scale=1.0 / math.sqrt(D))
    spec = pl.BlockSpec((1, L, D), lambda i: (i, 0, 0))
    return pl.pallas_call(
        kern,
        out_shape=jax.ShapeDtypeStruct((bsz, L, D), jnp.float32),
        grid=(bsz,),
        in_specs=[spec, spec, spec],
        out_specs=spec,
        compiler_params=pltpu.CompilerParams(
            dimension_semantics=("parallel",),
            vmem_limit_bytes=VMEM_LIMIT),
    )(q, k, v)


# ----------------------------------------------------------------------------
# Module forward passes (flat NCHW everywhere; glue reshapes are metadata-only)
# ----------------------------------------------------------------------------

def multi_headed_attention(p, patchsize, x_flat, b, H, W):
    bt, cin, HW = x_flat.shape
    t = bt // b
    hidden = p["w_qkv"].shape[0] // 3
    d_k = hidden // len(patchsize)

    # Fused Q/K/V embedding: one Pallas matmul, x read from HBM once.
    qkv = qkv_matmul(x_flat, p["w_qkv"], p["b_qkv"])      # (bt, 3*hidden, HW)

    heads = []
    for i, (width, height) in enumerate(patchsize):
        out_w, out_h = W // width, H // height
        L = t * out_h * out_w
        D = d_k * height * width

        # TODO(synk): these per-head 7-D patch-token permutes are XLA
        # transposes (non-rectangular gather; not expressible as a BlockSpec
        # index_map) -- they match the reference's permute exactly.
        def to_tok(z):
            z = z.reshape(b, t, d_k, out_h, height, out_w, width)
            z = jnp.transpose(z, (0, 1, 3, 5, 2, 4, 6))
            return z.reshape(b, L, D)

        qh = to_tok(qkv[:, i * d_k:(i + 1) * d_k, :])
        kh = to_tok(qkv[:, hidden + i * d_k:hidden + (i + 1) * d_k, :])
        vh = to_tok(qkv[:, 2 * hidden + i * d_k:2 * hidden + (i + 1) * d_k, :])

        # masked_fill in the reference is non-in-place and discarded -> unused.
        y = scaled_dot_attention(qh, kh, vh)               # (b, L, D)
        y = y.reshape(b, t, out_h, out_w, d_k, height, width)
        y = jnp.transpose(y, (0, 1, 4, 2, 5, 3, 6)).reshape(bt, d_k, HW)
        heads.append(y)

    attn = jnp.concatenate(heads, axis=1)                  # (bt, hidden, HW)
    # output_linear (3x3 conv + LeakyReLU) with the outer `x +` residual fused.
    return conv3x3(attn, p["w_o"], p["b_o"], dilation=1, H=H, W=W,
                   residual=x_flat)


def feed_forward(p, x_flat, H, W):
    h1 = conv3x3(x_flat, p["w_1"], p["b_1"], dilation=2, H=H, W=W)
    # second conv carries the fused `x +` residual.
    return conv3x3(h1, p["w_2"], p["b_2"], dilation=1, H=H, W=W,
                   residual=x_flat)


def transformer_block_forward(pp, patchsize, inputs):
    x, m, b, c = inputs["x"], inputs["m"], inputs["b"], inputs["c"]
    bt, C, H, W = x.shape
    xf = x.reshape(bt, C, H * W)                 # metadata-only NCHW flatten
    x1 = multi_headed_attention(pp["attn"], patchsize, xf, b, H, W)
    x2 = feed_forward(pp["ff"], x1, H, W)
    return {"x": x2.reshape(bt, -1, H, W), "m": m, "b": b, "c": c}


# ----------------------------------------------------------------------------
# One-time parameter packing (hoisted out of the per-forward path)
# ----------------------------------------------------------------------------

def _pack_conv(w_oihw):
    # (Cout, Cin, 3, 3) -> (9, Cout, Cin) bf16, tap index = kh*3 + kw
    Cout, Cin = w_oihw.shape[0], w_oihw.shape[1]
    return jnp.transpose(w_oihw, (2, 3, 0, 1)).reshape(9, Cout, Cin).astype(
        jnp.bfloat16)


def prepare_params(params):
    a, f = params["attn"], params["ff"]
    w_qkv = jnp.concatenate(
        [a["wq"][:, :, 0, 0], a["wk"][:, :, 0, 0], a["wv"][:, :, 0, 0]],
        axis=0).astype(jnp.bfloat16)                       # (3*hidden, Cin)
    b_qkv = jnp.concatenate([a["bq"], a["bk"], a["bv"]]).reshape(-1, 1)
    attn = {
        "w_qkv": w_qkv, "b_qkv": b_qkv,
        "w_o": _pack_conv(a["wo"]), "b_o": a["bo"].reshape(-1, 1),
    }
    ff = {
        "w_1": _pack_conv(f["w1"]), "b_1": f["b1"].reshape(-1, 1),
        "w_2": _pack_conv(f["w2"]), "b_2": f["b2"].reshape(-1, 1),
    }
    return {"attn": attn, "ff": ff}


# ----------------------------------------------------------------------------
# Deterministic parameter init + demo
# ----------------------------------------------------------------------------

def init_params(key, d_input, hidden):
    ks = jax.random.split(key, 12)
    f = lambda k, shape: (0.05 * jax.random.normal(k, shape)).astype(jnp.float32)
    attn = {
        "wq": f(ks[0], (hidden, d_input, 1, 1)), "bq": f(ks[1], (hidden,)),
        "wk": f(ks[2], (hidden, d_input, 1, 1)), "bk": f(ks[3], (hidden,)),
        "wv": f(ks[4], (hidden, d_input, 1, 1)), "bv": f(ks[5], (hidden,)),
        "wo": f(ks[6], (hidden, hidden, 3, 3)),  "bo": f(ks[7], (hidden,)),
    }
    ff = {
        "w1": f(ks[8], (hidden, hidden, 3, 3)),  "b1": f(ks[9], (hidden,)),
        "w2": f(ks[10], (hidden, hidden, 3, 3)), "b2": f(ks[11], (hidden,)),
    }
    return {"attn": attn, "ff": ff}


if __name__ == "__main__":
    # Residual `x + attention(x)` requires d_input == hidden.
    b, t = 2, 2
    d_input = hidden = 32
    h = w = 16
    patchsize = [(4, 4), (2, 2)]          # 2 heads, d_k = 16 each

    key = jax.random.PRNGKey(0)
    kp, kx, km = jax.random.split(key, 3)
    params = init_params(kp, d_input, hidden)
    pp = prepare_params(params)           # one-time weight repack / bf16 cast

    x = jax.random.normal(kx, (b * t, d_input, h, w), dtype=jnp.float32)
    m = (jax.random.uniform(km, (b * t, 1, h, w)) > 0.5).astype(jnp.float32)

    fwd = jax.jit(lambda p_, x_, m_: transformer_block_forward(
        p_, patchsize, {"x": x_, "m": m_, "b": b, "c": d_input}))
    out = fwd(pp, x, m)
    jax.block_until_ready(out["x"])
    assert out["x"].shape == (b * t, hidden, h, w)
    print("KERNEL_OK")
</pallas_src>

<mosaic_0001>
module attributes {stable_mosaic.version = 11 : i64} {
  func.func @_qkv_kernel(%arg0: i32, %arg1: memref<1x32x256xf32, #tpu.memory_space<vmem>>, %arg2: memref<96x32xbf16, #tpu.memory_space<vmem>>, %arg3: memref<96x1xf32, #tpu.memory_space<vmem>>, %arg4: memref<1x96x256xf32, #tpu.memory_space<vmem>>) attributes {dimension_semantics = [#tpu.dimension_semantics<parallel>], iteration_bounds = array<i64: 4>, scalar_prefetch = 0 : i64, scratch_operands = 0 : i64, tpu.core_type = #tpu.core_type<tc>, window_params = [{transform_indices = @transform_0, window_bounds = array<i64: 1, 32, 256>}, {pipeline_mode = #tpu.pipeline_mode<synchronous>, transform_indices = @transform_1, window_bounds = array<i64: 96, 32>}, {pipeline_mode = #tpu.pipeline_mode<synchronous>, transform_indices = @transform_2, window_bounds = array<i64: 96, 1>}, {transform_indices = @transform_3, window_bounds = array<i64: 1, 96, 256>}]} {
    %c0 = arith.constant 0 : index
    %c0_0 = arith.constant 0 : index
    %c0_1 = arith.constant 0 : index
    %0 = vector.load %arg1[%c0, %c0_0, %c0_1] : memref<1x32x256xf32, #tpu.memory_space<vmem>>, vector<1x32x256xf32>
    %1 = vector.shape_cast %0 : vector<1x32x256xf32> to vector<32x256xf32>
    %2 = arith.truncf %1 : vector<32x256xf32> to vector<32x256xbf16>
    %c0_2 = arith.constant 0 : index
    %c0_3 = arith.constant 0 : index
    %3 = vector.load %arg2[%c0_2, %c0_3] : memref<96x32xbf16, #tpu.memory_space<vmem>>, vector<96x32xbf16>
    %cst = arith.constant dense<0.000000e+00> : vector<96x256xf32>
    %4 = tpu.matmul %3, %2, %cst {dimension_numbers = #tpu.dot_dimension_numbers<[1], [0], [0], [1], [0, 0, 1, 1], [], []>} : vector<96x32xbf16>, vector<32x256xbf16>, vector<96x256xf32> -> vector<96x256xf32>
    %c0_4 = arith.constant 0 : index
    %c0_5 = arith.constant 0 : index
    %5 = vector.load %arg3[%c0_4, %c0_5] : memref<96x1xf32, #tpu.memory_space<vmem>>, vector<96x1xf32>
    %6 = vector.broadcast %5 : vector<96x1xf32> to vector<96x256xf32>
    %7 = arith.addf %4, %6 : vector<96x256xf32>
    %c0_6 = arith.constant 0 : index
    %c0_7 = arith.constant 0 : index
    %c0_8 = arith.constant 0 : index
    %8 = vector.load %arg4[%c0_6, %c0_7, %c0_8] : memref<1x96x256xf32, #tpu.memory_space<vmem>>, vector<1x96x256xf32>
    %9 = vector.shape_cast %8 : vector<1x96x256xf32> to vector<96x256xf32>
    %10 = vector.shape_cast %7 : vector<96x256xf32> to vector<1x96x256xf32>
    tpu.vector_store %arg4[%c0_6, %c0_7, %c0_8], %10 {strides = array<i32>} : memref<1x96x256xf32, #tpu.memory_space<vmem>>, vector<1x96x256xf32>,
    return
  }
  func.func @transform_0(%arg0: i32) -> (i32, i32, i32) {
    %c0_i32 = arith.constant 0 : i32
    %c0_i32_0 = arith.constant 0 : i32
    %c0_i32_1 = arith.constant 0 : i32
    return %arg0, %c0_i32, %c0_i32_0 : i32, i32, i32
  }
  func.func @transform_1(%arg0: i32) -> (i32, i32) {
    %c0_i32 = arith.constant 0 : i32
    %c0_i32_0 = arith.constant 0 : i32
    %c0_i32_1 = arith.constant 0 : i32
    return %c0_i32, %c0_i32_0 : i32, i32
  }
  func.func @transform_2(%arg0: i32) -> (i32, i32) {
    %c0_i32 = arith.constant 0 : i32
    %c0_i32_0 = arith.constant 0 : i32
    %c0_i32_1 = arith.constant 0 : i32
    return %c0_i32, %c0_i32_0 : i32, i32
  }
  func.func @transform_3(%arg0: i32) -> (i32, i32, i32) {
    %c0_i32 = arith.constant 0 : i32
    %c0_i32_0 = arith.constant 0 : i32
    %c0_i32_1 = arith.constant 0 : i32
    return %arg0, %c0_i32, %c0_i32_0 : i32, i32, i32
  }
}

module attributes {stable_mosaic.version = 11 : i64} {
  func.func @_attention_kernel(%arg0: i32, %arg1: memref<1x128x64xf32, #tpu.memory_space<vmem>>, %arg2: memref<1x128x64xf32, #tpu.memory_space<vmem>>, %arg3: memref<1x128x64xf32, #tpu.memory_space<vmem>>, %arg4: memref<1x128x64xf32, #tpu.memory_space<vmem>>) attributes {dimension_semantics = [#tpu.dimension_semantics<parallel>], iteration_bounds = array<i64: 2>, scalar_prefetch = 0 : i64, scratch_operands = 0 : i64, tpu.core_type = #tpu.core_type<tc>, window_params = [{transform_indices = @transform_0, window_bounds = array<i64: 1, 128, 64>}, {transform_indices = @transform_1, window_bounds = array<i64: 1, 128, 64>}, {transform_indices = @transform_2, window_bounds = array<i64: 1, 128, 64>}, {transform_indices = @transform_3, window_bounds = array<i64: 1, 128, 64>}]} {
    %c0 = arith.constant 0 : index
    %c0_0 = arith.constant 0 : index
    %c0_1 = arith.constant 0 : index
    %0 = vector.load %arg1[%c0, %c0_0, %c0_1] : memref<1x128x64xf32, #tpu.memory_space<vmem>>, vector<1x128x64xf32>
    %1 = vector.shape_cast %0 : vector<1x128x64xf32> to vector<128x64xf32>
    %2 = arith.truncf %1 : vector<128x64xf32> to vector<128x64xbf16>
    %c0_2 = arith.constant 0 : index
    %c0_3 = arith.constant 0 : index
    %c0_4 = arith.constant 0 : index
    %3 = vector.load %arg2[%c0_2, %c0_3, %c0_4] : memref<1x128x64xf32, #tpu.memory_space<vmem>>, vector<1x128x64xf32>
    %4 = vector.shape_cast %3 : vector<1x128x64xf32> to vector<128x64xf32>
    %5 = arith.truncf %4 : vector<128x64xf32> to vector<128x64xbf16>
    %c0_5 = arith.constant 0 : index
    %c0_6 = arith.constant 0 : index
    %c0_7 = arith.constant 0 : index
    %6 = vector.load %arg3[%c0_5, %c0_6, %c0_7] : memref<1x128x64xf32, #tpu.memory_space<vmem>>, vector<1x128x64xf32>
    %7 = vector.shape_cast %6 : vector<1x128x64xf32> to vector<128x64xf32>
    %8 = arith.truncf %7 : vector<128x64xf32> to vector<128x64xbf16>
    %cst = arith.constant dense<0.000000e+00> : vector<128x128xf32>
    %9 = tpu.matmul %2, %5, %cst {dimension_numbers = #tpu.dot_dimension_numbers<[1], [1], [0], [0], [0, 0, 1, 0], [], []>} : vector<128x64xbf16>, vector<128x64xbf16>, vector<128x128xf32> -> vector<128x128xf32>
    %cst_8 = arith.constant 1.250000e-01 : f32
    %10 = vector.broadcast %cst_8 : f32 to vector<128x128xf32>
    %11 = arith.mulf %9, %10 : vector<128x128xf32>
    %cst_9 = arith.constant dense<0xFF800000> : vector<128xf32>
    %12 = vector.multi_reduction <maximumf>, %11, %cst_9 [1] : vector<128x128xf32> to vector<128xf32>
    %13 = vector.shape_cast %12 : vector<128xf32> to vector<128x1xf32>
    %14 = vector.broadcast %13 : vector<128x1xf32> to vector<128x128xf32>
    %15 = arith.subf %11, %14 : vector<128x128xf32>
    %16 = math.exp %15 : vector<128x128xf32>
    %cst_10 = arith.constant dense<0.000000e+00> : vector<128xf32>
    %17 = vector.multi_reduction <add>, %16, %cst_10 [1] : vector<128x128xf32> to vector<128xf32>
    %18 = vector.shape_cast %17 : vector<128xf32> to vector<128x1xf32>
    %19 = tpu.reciprocal %18 {approx = true} : vector<128x1xf32> -> vector<128x1xf32>
    %20 = vector.broadcast %19 : vector<128x1xf32> to vector<128x128xf32>
    %21 = arith.mulf %16, %20 : vector<128x128xf32>
    %22 = arith.truncf %21 : vector<128x128xf32> to vector<128x128xbf16>
    %cst_11 = arith.constant dense<0.000000e+00> : vector<128x64xf32>
    %23 = tpu.matmul %22, %8, %cst_11 {dimension_numbers = #tpu.dot_dimension_numbers<[1], [0], [0], [1], [0, 0, 1, 1], [], []>} : vector<128x128xbf16>, vector<128x64xbf16>, vector<128x64xf32> -> vector<128x64xf32>
    %c0_12 = arith.constant 0 : index
    %c0_13 = arith.constant 0 : index
    %c0_14 = arith.constant 0 : index
    %24 = vector.load %arg4[%c0_12, %c0_13, %c0_14] : memref<1x128x64xf32, #tpu.memory_space<vmem>>, vector<1x128x64xf32>
    %25 = vector.shape_cast %24 : vector<1x128x64xf32> to vector<128x64xf32>
    %26 = vector.shape_cast %23 : vector<128x64xf32> to vector<1x128x64xf32>
    tpu.vector_store %arg4[%c0_12, %c0_13, %c0_14], %26 {strides = array<i32>} : memref<1x128x64xf32, #tpu.memory_space<vmem>>, vector<1x128x64xf32>,
    return
  }
  func.func @transform_0(%arg0: i32) -> (i32, i32, i32) {
    %c0_i32 = arith.constant 0 : i32
    %c0_i32_0 = arith.constant 0 : i32
    %c0_i32_1 = arith.constant 0 : i32
    return %arg0, %c0_i32, %c0_i32_0 : i32, i32, i32
  }
  func.func @transform_1(%arg0: i32) -> (i32, i32, i32) {
    %c0_i32 = arith.constant 0 : i32
    %c0_i32_0 = arith.constant 0 : i32
    %c0_i32_1 = arith.constant 0 : i32
    return %arg0, %c0_i32, %c0_i32_0 : i32, i32, i32
  }
  func.func @transform_2(%arg0: i32) -> (i32, i32, i32) {
    %c0_i32 = arith.constant 0 : i32
    %c0_i32_0 = arith.constant 0 : i32
    %c0_i32_1 = arith.constant 0 : i32
    return %arg0, %c0_i32, %c0_i32_0 : i32, i32, i32
  }
  func.func @transform_3(%arg0: i32) -> (i32, i32, i32) {
    %c0_i32 = arith.constant 0 : i32
    %c0_i32_0 = arith.constant 0 : i32
    %c0_i32_1 = arith.constant 0 : i32
    return %arg0, %c0_i32, %c0_i32_0 : i32, i32, i32
  }
}

module attributes {stable_mosaic.version = 11 : i64} {
  func.func @_attention_kernel(%arg0: i32, %arg1: memref<1x32x256xf32, #tpu.memory_space<vmem>>, %arg2: memref<1x32x256xf32, #tpu.memory_space<vmem>>, %arg3: memref<1x32x256xf32, #tpu.memory_space<vmem>>, %arg4: memref<1x32x256xf32, #tpu.memory_space<vmem>>) attributes {dimension_semantics = [#tpu.dimension_semantics<parallel>], iteration_bounds = array<i64: 2>, scalar_prefetch = 0 : i64, scratch_operands = 0 : i64, tpu.core_type = #tpu.core_type<tc>, window_params = [{transform_indices = @transform_0, window_bounds = array<i64: 1, 32, 256>}, {transform_indices = @transform_1, window_bounds = array<i64: 1, 32, 256>}, {transform_indices = @transform_2, window_bounds = array<i64: 1, 32, 256>}, {transform_indices = @transform_3, window_bounds = array<i64: 1, 32, 256>}]} {
    %c0 = arith.constant 0 : index
    %c0_0 = arith.constant 0 : index
    %c0_1 = arith.constant 0 : index
    %0 = vector.load %arg1[%c0, %c0_0, %c0_1] : memref<1x32x256xf32, #tpu.memory_space<vmem>>, vector<1x32x256xf32>
    %1 = vector.shape_cast %0 : vector<1x32x256xf32> to vector<32x256xf32>
    %2 = arith.truncf %1 : vector<32x256xf32> to vector<32x256xbf16>
    %c0_2 = arith.constant 0 : index
    %c0_3 = arith.constant 0 : index
    %c0_4 = arith.constant 0 : index
    %3 = vector.load %arg2[%c0_2, %c0_3, %c0_4] : memref<1x32x256xf32, #tpu.memory_space<vmem>>, vector<1x32x256xf32>
    %4 = vector.shape_cast %3 : vector<1x32x256xf32> to vector<32x256xf32>
    %5 = arith.truncf %4 : vector<32x256xf32> to vector<32x256xbf16>
    %c0_5 = arith.constant 0 : index
    %c0_6 = arith.constant 0 : index
    %c0_7 = arith.constant 0 : index
    %6 = vector.load %arg3[%c0_5, %c0_6, %c0_7] : memref<1x32x256xf32, #tpu.memory_space<vmem>>, vector<1x32x256xf32>
    %7 = vector.shape_cast %6 : vector<1x32x256xf32> to vector<32x256xf32>
    %8 = arith.truncf %7 : vector<32x256xf32> to vector<32x256xbf16>
    %cst = arith.constant dense<0.000000e+00> : vector<32x32xf32>
    %9 = tpu.matmul %2, %5, %cst {dimension_numbers = #tpu.dot_dimension_numbers<[1], [1], [0], [0], [0, 0, 1, 0], [], []>} : vector<32x256xbf16>, vector<32x256xbf16>, vector<32x32xf32> -> vector<32x32xf32>
    %cst_8 = arith.constant 6.250000e-02 : f32
    %10 = vector.broadcast %cst_8 : f32 to vector<32x32xf32>
    %11 = arith.mulf %9, %10 : vector<32x32xf32>
    %cst_9 = arith.constant dense<0xFF800000> : vector<32xf32>
    %12 = vector.multi_reduction <maximumf>, %11, %cst_9 [1] : vector<32x32xf32> to vector<32xf32>
    %13 = vector.shape_cast %12 : vector<32xf32> to vector<32x1xf32>
    %14 = vector.broadcast %13 : vector<32x1xf32> to vector<32x32xf32>
    %15 = arith.subf %11, %14 : vector<32x32xf32>
    %16 = math.exp %15 : vector<32x32xf32>
    %cst_10 = arith.constant dense<0.000000e+00> : vector<32xf32>
    %17 = vector.multi_reduction <add>, %16, %cst_10 [1] : vector<32x32xf32> to vector<32xf32>
    %18 = vector.shape_cast %17 : vector<32xf32> to vector<32x1xf32>
    %19 = tpu.reciprocal %18 {approx = true} : vector<32x1xf32> -> vector<32x1xf32>
    %20 = vector.broadcast %19 : vector<32x1xf32> to vector<32x32xf32>
    %21 = arith.mulf %16, %20 : vector<32x32xf32>
    %22 = arith.truncf %21 : vector<32x32xf32> to vector<32x32xbf16>
    %cst_11 = arith.constant dense<0.000000e+00> : vector<32x256xf32>
    %23 = tpu.matmul %22, %8, %cst_11 {dimension_numbers = #tpu.dot_dimension_numbers<[1], [0], [0], [1], [0, 0, 1, 1], [], []>} : vector<32x32xbf16>, vector<32x256xbf16>, vector<32x256xf32> -> vector<32x256xf32>
    %c0_12 = arith.constant 0 : index
    %c0_13 = arith.constant 0 : index
    %c0_14 = arith.constant 0 : index
    %24 = vector.load %arg4[%c0_12, %c0_13, %c0_14] : memref<1x32x256xf32, #tpu.memory_space<vmem>>, vector<1x32x256xf32>
    %25 = vector.shape_cast %24 : vector<1x32x256xf32> to vector<32x256xf32>
    %26 = vector.shape_cast %23 : vector<32x256xf32> to vector<1x32x256xf32>
    tpu.vector_store %arg4[%c0_12, %c0_13, %c0_14], %26 {strides = array<i32>} : memref<1x32x256xf32, #tpu.memory_space<vmem>>, vector<1x32x256xf32>,
    return
  }
  func.func @transform_0(%arg0: i32) -> (i32, i32, i32) {
    %c0_i32 = arith.constant 0 : i32
    %c0_i32_0 = arith.constant 0 : i32
    %c0_i32_1 = arith.constant 0 : i32
    return %arg0, %c0_i32, %c0_i32_0 : i32, i32, i32
  }
  func.func @transform_1(%arg0: i32) -> (i32, i32, i32) {
    %c0_i32 = arith.constant 0 : i32
    %c0_i32_0 = arith.constant 0 : i32
    %c0_i32_1 = arith.constant 0 : i32
    return %arg0, %c0_i32, %c0_i32_0 : i32, i32, i32
  }
  func.func @transform_2(%arg0: i32) -> (i32, i32, i32) {
    %c0_i32 = arith.constant 0 : i32
    %c0_i32_0 = arith.constant 0 : i32
    %c0_i32_1 = arith.constant 0 : i32
    return %arg0, %c0_i32, %c0_i32_0 : i32, i32, i32
  }
  func.func @transform_3(%arg0: i32) -> (i32, i32, i32) {
    %c0_i32 = arith.constant 0 : i32
    %c0_i32_0 = arith.constant 0 : i32
    %c0_i32_1 = arith.constant 0 : i32
    return %arg0, %c0_i32, %c0_i32_0 : i32, i32, i32
  }
}

module attributes {stable_mosaic.version = 11 : i64} {
  func.func @_conv3x3_kernel(%arg0: i32, %arg1: memref<1x32x256xf32, #tpu.memory_space<vmem>>, %arg2: memref<9x32x32xbf16, #tpu.memory_space<vmem>>, %arg3: memref<32x1xf32, #tpu.memory_space<vmem>>, %arg4: memref<9x1x256xf32, #tpu.memory_space<vmem>>, %arg5: memref<1x32x256xf32, #tpu.memory_space<vmem>>, %arg6: memref<1x32x256xf32, #tpu.memory_space<vmem>>) attributes {dimension_semantics = [#tpu.dimension_semantics<parallel>], iteration_bounds = array<i64: 4>, scalar_prefetch = 0 : i64, scratch_operands = 0 : i64, tpu.core_type = #tpu.core_type<tc>, window_params = [{transform_indices = @transform_0, window_bounds = array<i64: 1, 32, 256>}, {pipeline_mode = #tpu.pipeline_mode<synchronous>, transform_indices = @transform_1, window_bounds = array<i64: 9, 32, 32>}, {pipeline_mode = #tpu.pipeline_mode<synchronous>, transform_indices = @transform_2, window_bounds = array<i64: 32, 1>}, {pipeline_mode = #tpu.pipeline_mode<synchronous>, transform_indices = @transform_3, window_bounds = array<i64: 9, 1, 256>}, {transform_indices = @transform_4, window_bounds = array<i64: 1, 32, 256>}, {transform_indices = @transform_5, window_bounds = array<i64: 1, 32, 256>}]} {
    %c0 = arith.constant 0 : index
    %c0_0 = arith.constant 0 : index
    %c0_1 = arith.constant 0 : index
    %0 = vector.load %arg1[%c0, %c0_0, %c0_1] : memref<1x32x256xf32, #tpu.memory_space<vmem>>, vector<1x32x256xf32>
    %1 = vector.shape_cast %0 : vector<1x32x256xf32> to vector<32x256xf32>
    %c17_i32 = arith.constant 17 : i32
    %2 = tpu.dynamic_rotate %1 by %c17_i32 dim 1 : vector<32x256xf32>, i32 -> vector<32x256xf32>
    %c0_2 = arith.constant 0 : index
    %c0_3 = arith.constant 0 : index
    %c0_4 = arith.constant 0 : index
    %3 = vector.load %arg4[%c0_2, %c0_3, %c0_4] : memref<9x1x256xf32, #tpu.memory_space<vmem>>, vector<1x1x256xf32>
    %4 = vector.shape_cast %3 : vector<1x1x256xf32> to vector<1x256xf32>
    %5 = vector.broadcast %4 : vector<1x256xf32> to vector<32x256xf32>
    %6 = arith.mulf %2, %5 : vector<32x256xf32>
    %7 = arith.truncf %6 : vector<32x256xf32> to vector<32x256xbf16>
    %c0_5 = arith.constant 0 : index
    %c0_6 = arith.constant 0 : index
    %c0_7 = arith.constant 0 : index
    %8 = vector.load %arg2[%c0_5, %c0_6, %c0_7] : memref<9x32x32xbf16, #tpu.memory_space<vmem>>, vector<1x32x32xbf16>
    %9 = vector.shape_cast %8 : vector<1x32x32xbf16> to vector<32x32xbf16>
    %cst = arith.constant dense<0.000000e+00> : vector<32x256xf32>
    %10 = tpu.matmul %9, %7, %cst {dimension_numbers = #tpu.dot_dimension_numbers<[1], [0], [0], [1], [0, 0, 1, 1], [], []>} : vector<32x32xbf16>, vector<32x256xbf16>, vector<32x256xf32> -> vector<32x256xf32>
    %c16_i32 = arith.constant 16 : i32
    %11 = tpu.dynamic_rotate %1 by %c16_i32 dim 1 : vector<32x256xf32>, i32 -> vector<32x256xf32>
    %c1 = arith.constant 1 : index
    %c0_8 = arith.constant 0 : index
    %c0_9 = arith.constant 0 : index
    %12 = vector.load %arg4[%c1, %c0_8, %c0_9] : memref<9x1x256xf32, #tpu.memory_space<vmem>>, vector<1x1x256xf32>
    %13 = vector.shape_cast %12 : vector<1x1x256xf32> to vector<1x256xf32>
    %14 = vector.broadcast %13 : vector<1x256xf32> to vector<32x256xf32>
    %15 = arith.mulf %11, %14 : vector<32x256xf32>
    %16 = arith.truncf %15 : vector<32x256xf32> to vector<32x256xbf16>
    %c1_10 = arith.constant 1 : index
    %c0_11 = arith.constant 0 : index
    %c0_12 = arith.constant 0 : index
    %17 = vector.load %arg2[%c1_10, %c0_11, %c0_12] : memref<9x32x32xbf16, #tpu.memory_space<vmem>>, vector<1x32x32xbf16>
    %18 = vector.shape_cast %17 : vector<1x32x32xbf16> to vector<32x32xbf16>
    %cst_13 = arith.constant dense<0.000000e+00> : vector<32x256xf32>
    %19 = tpu.matmul %18, %16, %cst_13 {dimension_numbers = #tpu.dot_dimension_numbers<[1], [0], [0], [1], [0, 0, 1, 1], [], []>} : vector<32x32xbf16>, vector<32x256xbf16>, vector<32x256xf32> -> vector<32x256xf32>
    %20 = arith.addf %10, %19 : vector<32x256xf32>
    %c15_i32 = arith.constant 15 : i32
    %21 = tpu.dynamic_rotate %1 by %c15_i32 dim 1 : vector<32x256xf32>, i32 -> vector<32x256xf32>
    %c2 = arith.constant 2 : index
    %c0_14 = arith.constant 0 : index
    %c0_15 = arith.constant 0 : index
    %22 = vector.load %arg4[%c2, %c0_14, %c0_15] : memref<9x1x256xf32, #tpu.memory_space<vmem>>, vector<1x1x256xf32>
    %23 = vector.shape_cast %22 : vector<1x1x256xf32> to vector<1x256xf32>
    %24 = vector.broadcast %23 : vector<1x256xf32> to vector<32x256xf32>
    %25 = arith.mulf %21, %24 : vector<32x256xf32>
    %26 = arith.truncf %25 : vector<32x256xf32> to vector<32x256xbf16>
    %c2_16 = arith.constant 2 : index
    %c0_17 = arith.constant 0 : index
    %c0_18 = arith.constant 0 : index
    %27 = vector.load %arg2[%c2_16, %c0_17, %c0_18] : memref<9x32x32xbf16, #tpu.memory_space<vmem>>, vector<1x32x32xbf16>
    %28 = vector.shape_cast %27 : vector<1x32x32xbf16> to vector<32x32xbf16>
    %cst_19 = arith.constant dense<0.000000e+00> : vector<32x256xf32>
    %29 = tpu.matmul %28, %26, %cst_19 {dimension_numbers = #tpu.dot_dimension_numbers<[1], [0], [0], [1], [0, 0, 1, 1], [], []>} : vector<32x32xbf16>, vector<32x256xbf16>, vector<32x256xf32> -> vector<32x256xf32>
    %30 = arith.addf %20, %29 : vector<32x256xf32>
    %c1_i32 = arith.constant 1 : i32
    %31 = tpu.dynamic_rotate %1 by %c1_i32 dim 1 : vector<32x256xf32>, i32 -> vector<32x256xf32>
    %c3 = arith.constant 3 : index
    %c0_20 = arith.constant 0 : index
    %c0_21 = arith.constant 0 : index
    %32 = vector.load %arg4[%c3, %c0_20, %c0_21] : memref<9x1x256xf32, #tpu.memory_space<vmem>>, vector<1x1x256xf32>
    %33 = vector.shape_cast %32 : vector<1x1x256xf32> to vector<1x256xf32>
    %34 = vector.broadcast %33 : vector<1x256xf32> to vector<32x256xf32>
    %35 = arith.mulf %31, %34 : vector<32x256xf32>
    %36 = arith.truncf %35 : vector<32x256xf32> to vector<32x256xbf16>
    %c3_22 = arith.constant 3 : index
    %c0_23 = arith.constant 0 : index
    %c0_24 = arith.constant 0 : index
    %37 = vector.load %arg2[%c3_22, %c0_23, %c0_24] : memref<9x32x32xbf16, #tpu.memory_space<vmem>>, vector<1x32x32xbf16>
    %38 = vector.shape_cast %37 : vector<1x32x32xbf16> to vector<32x32xbf16>
    %cst_25 = arith.constant dense<0.000000e+00> : vector<32x256xf32>
    %39 = tpu.matmul %38, %36, %cst_25 {dimension_numbers = #tpu.dot_dimension_numbers<[1], [0], [0], [1], [0, 0, 1, 1], [], []>} : vector<32x32xbf16>, vector<32x256xbf16>, vector<32x256xf32> -> vector<32x256xf32>
    %40 = arith.addf %30, %39 : vector<32x256xf32>
    %c4 = arith.constant 4 : index
    %c0_26 = arith.constant 0 : index
    %c0_27 = arith.constant 0 : index
    %41 = vector.load %arg4[%c4, %c0_26, %c0_27] : memref<9x1x256xf32, #tpu.memory_space<vmem>>, vector<1x1x256xf32>
    %42 = vector.shape_cast %41 : vector<1x1x256xf32> to vector<1x256xf32>
    %43 = vector.broadcast %42 : vector<1x256xf32> to vector<32x256xf32>
    %44 = arith.mulf %1, %43 : vector<32x256xf32>
    %45 = arith.truncf %44 : vector<32x256xf32> to vector<32x256xbf16>
    %c4_28 = arith.constant 4 : index
    %c0_29 = arith.constant 0 : index
    %c0_30 = arith.constant 0 : index
    %46 = vector.load %arg2[%c4_28, %c0_29, %c0_30] : memref<9x32x32xbf16, #tpu.memory_space<vmem>>, vector<1x32x32xbf16>
    %47 = vector.shape_cast %46 : vector<1x32x32xbf16> to vector<32x32xbf16>
    %cst_31 = arith.constant dense<0.000000e+00> : vector<32x256xf32>
    %48 = tpu.matmul %47, %45, %cst_31 {dimension_numbers = #tpu.dot_dimension_numbers<[1], [0], [0], [1], [0, 0, 1, 1], [], []>} : vector<32x32xbf16>, vector<32x256xbf16>, vector<32x256xf32> -> vector<32x256xf32>
    %49 = arith.addf %40, %48 : vector<32x256xf32>
    %c255_i32 = arith.constant 255 : i32
    %50 = tpu.dynamic_rotate %1 by %c255_i32 dim 1 : vector<32x256xf32>, i32 -> vector<32x256xf32>
    %c5 = arith.constant 5 : index
    %c0_32 = arith.constant 0 : index
    %c0_33 = arith.constant 0 : index
    %51 = vector.load %arg4[%c5, %c0_32, %c0_33] : memref<9x1x256xf32, #tpu.memory_space<vmem>>, vector<1x1x256xf32>
    %52 = vector.shape_cast %51 : vector<1x1x256xf32> to vector<1x256xf32>
    %53 = vector.broadcast %52 : vector<1x256xf32> to vector<32x256xf32>
    %54 = arith.mulf %50, %53 : vector<32x256xf32>
    %55 = arith.truncf %54 : vector<32x256xf32> to vector<32x256xbf16>
    %c5_34 = arith.constant 5 : index
    %c0_35 = arith.constant 0 : index
    %c0_36 = arith.constant 0 : index
    %56 = vector.load %arg2[%c5_34, %c0_35, %c0_36] : memref<9x32x32xbf16, #tpu.memory_space<vmem>>, vector<1x32x32xbf16>
    %57 = vector.shape_cast %56 : vector<1x32x32xbf16> to vector<32x32xbf16>
    %cst_37 = arith.constant dense<0.000000e+00> : vector<32x256xf32>
    %58 = tpu.matmul %57, %55, %cst_37 {dimension_numbers = #tpu.dot_dimension_numbers<[1], [0], [0], [1], [0, 0, 1, 1], [], []>} : vector<32x32xbf16>, vector<32x256xbf16>, vector<32x256xf32> -> vector<32x256xf32>
    %59 = arith.addf %49, %58 : vector<32x256xf32>
    %c241_i32 = arith.constant 241 : i32
    %60 = tpu.dynamic_rotate %1 by %c241_i32 dim 1 : vector<32x256xf32>, i32 -> vector<32x256xf32>
    %c6 = arith.constant 6 : index
    %c0_38 = arith.constant 0 : index
    %c0_39 = arith.constant 0 : index
    %61 = vector.load %arg4[%c6, %c0_38, %c0_39] : memref<9x1x256xf32, #tpu.memory_space<vmem>>, vector<1x1x256xf32>
    %62 = vector.shape_cast %61 : vector<1x1x256xf32> to vector<1x256xf32>
    %63 = vector.broadcast %62 : vector<1x256xf32> to vector<32x256xf32>
    %64 = arith.mulf %60, %63 : vector<32x256xf32>
    %65 = arith.truncf %64 : vector<32x256xf32> to vector<32x256xbf16>
    %c6_40 = arith.constant 6 : index
    %c0_41 = arith.constant 0 : index
    %c0_42 = arith.constant 0 : index
    %66 = vector.load %arg2[%c6_40, %c0_41, %c0_42] : memref<9x32x32xbf16, #tpu.memory_space<vmem>>, vector<1x32x32xbf16>
    %67 = vector.shape_cast %66 : vector<1x32x32xbf16> to vector<32x32xbf16>
    %cst_43 = arith.constant dense<0.000000e+00> : vector<32x256xf32>
    %68 = tpu.matmul %67, %65, %cst_43 {dimension_numbers = #tpu.dot_dimension_numbers<[1], [0], [0], [1], [0, 0, 1, 1], [], []>} : vector<32x32xbf16>, vector<32x256xbf16>, vector<32x256xf32> -> vector<32x256xf32>
    %69 = arith.addf %59, %68 : vector<32x256xf32>
    %c240_i32 = arith.constant 240 : i32
    %70 = tpu.dynamic_rotate %1 by %c240_i32 dim 1 : vector<32x256xf32>, i32 -> vector<32x256xf32>
    %c7 = arith.constant 7 : index
    %c0_44 = arith.constant 0 : index
    %c0_45 = arith.constant 0 : index
    %71 = vector.load %arg4[%c7, %c0_44, %c0_45] : memref<9x1x256xf32, #tpu.memory_space<vmem>>, vector<1x1x256xf32>
    %72 = vector.shape_cast %71 : vector<1x1x256xf32> to vector<1x256xf32>
    %73 = vector.broadcast %72 : vector<1x256xf32> to vector<32x256xf32>
    %74 = arith.mulf %70, %73 : vector<32x256xf32>
    %75 = arith.truncf %74 : vector<32x256xf32> to vector<32x256xbf16>
    %c7_46 = arith.constant 7 : index
    %c0_47 = arith.constant 0 : index
    %c0_48 = arith.constant 0 : index
    %76 = vector.load %arg2[%c7_46, %c0_47, %c0_48] : memref<9x32x32xbf16, #tpu.memory_space<vmem>>, vector<1x32x32xbf16>
    %77 = vector.shape_cast %76 : vector<1x32x32xbf16> to vector<32x32xbf16>
    %cst_49 = arith.constant dense<0.000000e+00> : vector<32x256xf32>
    %78 = tpu.matmul %77, %75, %cst_49 {dimension_numbers = #tpu.dot_dimension_numbers<[1], [0], [0], [1], [0, 0, 1, 1], [], []>} : vector<32x32xbf16>, vector<32x256xbf16>, vector<32x256xf32> -> vector<32x256xf32>
    %79 = arith.addf %69, %78 : vector<32x256xf32>
    %c239_i32 = arith.constant 239 : i32
    %80 = tpu.dynamic_rotate %1 by %c239_i32 dim 1 : vector<32x256xf32>, i32 -> vector<32x256xf32>
    %c8 = arith.constant 8 : index
    %c0_50 = arith.constant 0 : index
    %c0_51 = arith.constant 0 : index
    %81 = vector.load %arg4[%c8, %c0_50, %c0_51] : memref<9x1x256xf32, #tpu.memory_space<vmem>>, vector<1x1x256xf32>
    %82 = vector.shape_cast %81 : vector<1x1x256xf32> to vector<1x256xf32>
    %83 = vector.broadcast %82 : vector<1x256xf32> to vector<32x256xf32>
    %84 = arith.mulf %80, %83 : vector<32x256xf32>
    %85 = arith.truncf %84 : vector<32x256xf32> to vector<32x256xbf16>
    %c8_52 = arith.constant 8 : index
    %c0_53 = arith.constant 0 : index
    %c0_54 = arith.constant 0 : index
    %86 = vector.load %arg2[%c8_52, %c0_53, %c0_54] : memref<9x32x32xbf16, #tpu.memory_space<vmem>>, vector<1x32x32xbf16>
    %87 = vector.shape_cast %86 : vector<1x32x32xbf16> to vector<32x32xbf16>
    %cst_55 = arith.constant dense<0.000000e+00> : vector<32x256xf32>
    %88 = tpu.matmul %87, %85, %cst_55 {dimension_numbers = #tpu.dot_dimension_numbers<[1], [0], [0], [1], [0, 0, 1, 1], [], []>} : vector<32x32xbf16>, vector<32x256xbf16>, vector<32x256xf32> -> vector<32x256xf32>
    %89 = arith.addf %79, %88 : vector<32x256xf32>
    %c0_56 = arith.constant 0 : index
    %c0_57 = arith.constant 0 : index
    %90 = vector.load %arg3[%c0_56, %c0_57] : memref<32x1xf32, #tpu.memory_space<vmem>>, vector<32x1xf32>
    %91 = vector.broadcast %90 : vector<32x1xf32> to vector<32x256xf32>
    %92 = arith.addf %89, %91 : vector<32x256xf32>
    %cst_58 = arith.constant 0.000000e+00 : f32
    %93 = vector.broadcast %cst_58 : f32 to vector<32x256xf32>
    %94 = arith.cmpf ogt, %92, %93 : vector<32x256xf32>
    %cst_59 = arith.constant 2.000000e-01 : f32
    %95 = vector.broadcast %cst_59 : f32 to vector<32x256xf32>
    %96 = arith.mulf %95, %92 : vector<32x256xf32>
    %97 = arith.select %94, %92, %96 : vector<32x256xi1>, vector<32x256xf32>
    %c0_60 = arith.constant 0 : index
    %c0_61 = arith.constant 0 : index
    %c0_62 = arith.constant 0 : index
    %98 = vector.load %arg5[%c0_60, %c0_61, %c0_62] : memref<1x32x256xf32, #tpu.memory_space<vmem>>, vector<1x32x256xf32>
    %99 = vector.shape_cast %98 : vector<1x32x256xf32> to vector<32x256xf32>
    %100 = arith.addf %97, %99 : vector<32x256xf32>
    %c0_63 = arith.constant 0 : index
    %c0_64 = arith.constant 0 : index
    %c0_65 = arith.constant 0 : index
    %101 = vector.load %arg6[%c0_63, %c0_64, %c0_65] : memref<1x32x256xf32, #tpu.memory_space<vmem>>, vector<1x32x256xf32>
    %102 = vector.shape_cast %101 : vector<1x32x256xf32> to vector<32x256xf32>
    %103 = vector.shape_cast %100 : vector<32x256xf32> to vector<1x32x256xf32>
    tpu.vector_store %arg6[%c0_63, %c0_64, %c0_65], %103 {strides = array<i32>} : memref<1x32x256xf32, #tpu.memory_space<vmem>>, vector<1x32x256xf32>,
    return
  }
  func.func @transform_0(%arg0: i32) -> (i32, i32, i32) {
    %c0_i32 = arith.constant 0 : i32
    %c0_i32_0 = arith.constant 0 : i32
    %c0_i32_1 = arith.constant 0 : i32
    return %arg0, %c0_i32, %c0_i32_0 : i32, i32, i32
  }
  func.func @transform_1(%arg0: i32) -> (i32, i32, i32) {
    %c0_i32 = arith.constant 0 : i32
    %c0_i32_0 = arith.constant 0 : i32
    %c0_i32_1 = arith.constant 0 : i32
    %c0_i32_2 = arith.constant 0 : i32
    return %c0_i32, %c0_i32_0, %c0_i32_1 : i32, i32, i32
  }
  func.func @transform_2(%arg0: i32) -> (i32, i32) {
    %c0_i32 = arith.constant 0 : i32
    %c0_i32_0 = arith.constant 0 : i32
    %c0_i32_1 = arith.constant 0 : i32
    return %c0_i32, %c0_i32_0 : i32, i32
  }
  func.func @transform_3(%arg0: i32) -> (i32, i32, i32) {
    %c0_i32 = arith.constant 0 : i32
    %c0_i32_0 = arith.constant 0 : i32
    %c0_i32_1 = arith.constant 0 : i32
    %c0_i32_2 = arith.constant 0 : i32
    return %c0_i32, %c0_i32_0, %c0_i32_1 : i32, i32, i32
  }
  func.func @transform_4(%arg0: i32) -> (i32, i32, i32) {
    %c0_i32 = arith.constant 0 : i32
    %c0_i32_0 = arith.constant 0 : i32
    %c0_i32_1 = arith.constant 0 : i32
    return %arg0, %c0_i32, %c0_i32_0 : i32, i32, i32
  }
  func.func @transform_5(%arg0: i32) -> (i32, i32, i32) {
    %c0_i32 = arith.constant 0 : i32
    %c0_i32_0 = arith.constant 0 : i32
    %c0_i32_1 = arith.constant 0 : i32
    return %arg0, %c0_i32, %c0_i32_0 : i32, i32, i32
  }
}

module attributes {stable_mosaic.version = 11 : i64} {
  func.func @_conv3x3_kernel(%arg0: i32, %arg1: memref<1x32x256xf32, #tpu.memory_space<vmem>>, %arg2: memref<9x32x32xbf16, #tpu.memory_space<vmem>>, %arg3: memref<32x1xf32, #tpu.memory_space<vmem>>, %arg4: memref<9x1x256xf32, #tpu.memory_space<vmem>>, %arg5: memref<1x32x256xf32, #tpu.memory_space<vmem>>) attributes {dimension_semantics = [#tpu.dimension_semantics<parallel>], iteration_bounds = array<i64: 4>, scalar_prefetch = 0 : i64, scratch_operands = 0 : i64, tpu.core_type = #tpu.core_type<tc>, window_params = [{transform_indices = @transform_0, window_bounds = array<i64: 1, 32, 256>}, {pipeline_mode = #tpu.pipeline_mode<synchronous>, transform_indices = @transform_1, window_bounds = array<i64: 9, 32, 32>}, {pipeline_mode = #tpu.pipeline_mode<synchronous>, transform_indices = @transform_2, window_bounds = array<i64: 32, 1>}, {pipeline_mode = #tpu.pipeline_mode<synchronous>, transform_indices = @transform_3, window_bounds = array<i64: 9, 1, 256>}, {transform_indices = @transform_4, window_bounds = array<i64: 1, 32, 256>}]} {
    %c0 = arith.constant 0 : index
    %c0_0 = arith.constant 0 : index
    %c0_1 = arith.constant 0 : index
    %0 = vector.load %arg1[%c0, %c0_0, %c0_1] : memref<1x32x256xf32, #tpu.memory_space<vmem>>, vector<1x32x256xf32>
    %1 = vector.shape_cast %0 : vector<1x32x256xf32> to vector<32x256xf32>
    %c34_i32 = arith.constant 34 : i32
    %2 = tpu.dynamic_rotate %1 by %c34_i32 dim 1 : vector<32x256xf32>, i32 -> vector<32x256xf32>
    %c0_2 = arith.constant 0 : index
    %c0_3 = arith.constant 0 : index
    %c0_4 = arith.constant 0 : index
    %3 = vector.load %arg4[%c0_2, %c0_3, %c0_4] : memref<9x1x256xf32, #tpu.memory_space<vmem>>, vector<1x1x256xf32>
    %4 = vector.shape_cast %3 : vector<1x1x256xf32> to vector<1x256xf32>
    %5 = vector.broadcast %4 : vector<1x256xf32> to vector<32x256xf32>
    %6 = arith.mulf %2, %5 : vector<32x256xf32>
    %7 = arith.truncf %6 : vector<32x256xf32> to vector<32x256xbf16>
    %c0_5 = arith.constant 0 : index
    %c0_6 = arith.constant 0 : index
    %c0_7 = arith.constant 0 : index
    %8 = vector.load %arg2[%c0_5, %c0_6, %c0_7] : memref<9x32x32xbf16, #tpu.memory_space<vmem>>, vector<1x32x32xbf16>
    %9 = vector.shape_cast %8 : vector<1x32x32xbf16> to vector<32x32xbf16>
    %cst = arith.constant dense<0.000000e+00> : vector<32x256xf32>
    %10 = tpu.matmul %9, %7, %cst {dimension_numbers = #tpu.dot_dimension_numbers<[1], [0], [0], [1], [0, 0, 1, 1], [], []>} : vector<32x32xbf16>, vector<32x256xbf16>, vector<32x256xf32> -> vector<32x256xf32>
    %c32_i32 = arith.constant 32 : i32
    %11 = tpu.dynamic_rotate %1 by %c32_i32 dim 1 : vector<32x256xf32>, i32 -> vector<32x256xf32>
    %c1 = arith.constant 1 : index
    %c0_8 = arith.constant 0 : index
    %c0_9 = arith.constant 0 : index
    %12 = vector.load %arg4[%c1, %c0_8, %c0_9] : memref<9x1x256xf32, #tpu.memory_space<vmem>>, vector<1x1x256xf32>
    %13 = vector.shape_cast %12 : vector<1x1x256xf32> to vector<1x256xf32>
    %14 = vector.broadcast %13 : vector<1x256xf32> to vector<32x256xf32>
    %15 = arith.mulf %11, %14 : vector<32x256xf32>
    %16 = arith.truncf %15 : vector<32x256xf32> to vector<32x256xbf16>
    %c1_10 = arith.constant 1 : index
    %c0_11 = arith.constant 0 : index
    %c0_12 = arith.constant 0 : index
    %17 = vector.load %arg2[%c1_10, %c0_11, %c0_12] : memref<9x32x32xbf16, #tpu.memory_space<vmem>>, vector<1x32x32xbf16>
    %18 = vector.shape_cast %17 : vector<1x32x32xbf16> to vector<32x32xbf16>
    %cst_13 = arith.constant dense<0.000000e+00> : vector<32x256xf32>
    %19 = tpu.matmul %18, %16, %cst_13 {dimension_numbers = #tpu.dot_dimension_numbers<[1], [0], [0], [1], [0, 0, 1, 1], [], []>} : vector<32x32xbf16>, vector<32x256xbf16>, vector<32x256xf32> -> vector<32x256xf32>
    %20 = arith.addf %10, %19 : vector<32x256xf32>
    %c30_i32 = arith.constant 30 : i32
    %21 = tpu.dynamic_rotate %1 by %c30_i32 dim 1 : vector<32x256xf32>, i32 -> vector<32x256xf32>
    %c2 = arith.constant 2 : index
    %c0_14 = arith.constant 0 : index
    %c0_15 = arith.constant 0 : index
    %22 = vector.load %arg4[%c2, %c0_14, %c0_15] : memref<9x1x256xf32, #tpu.memory_space<vmem>>, vector<1x1x256xf32>
    %23 = vector.shape_cast %22 : vector<1x1x256xf32> to vector<1x256xf32>
    %24 = vector.broadcast %23 : vector<1x256xf32> to vector<32x256xf32>
    %25 = arith.mulf %21, %24 : vector<32x256xf32>
    %26 = arith.truncf %25 : vector<32x256xf32> to vector<32x256xbf16>
    %c2_16 = arith.constant 2 : index
    %c0_17 = arith.constant 0 : index
    %c0_18 = arith.constant 0 : index
    %27 = vector.load %arg2[%c2_16, %c0_17, %c0_18] : memref<9x32x32xbf16, #tpu.memory_space<vmem>>, vector<1x32x32xbf16>
    %28 = vector.shape_cast %27 : vector<1x32x32xbf16> to vector<32x32xbf16>
    %cst_19 = arith.constant dense<0.000000e+00> : vector<32x256xf32>
    %29 = tpu.matmul %28, %26, %cst_19 {dimension_numbers = #tpu.dot_dimension_numbers<[1], [0], [0], [1], [0, 0, 1, 1], [], []>} : vector<32x32xbf16>, vector<32x256xbf16>, vector<32x256xf32> -> vector<32x256xf32>
    %30 = arith.addf %20, %29 : vector<32x256xf32>
    %c2_i32 = arith.constant 2 : i32
    %31 = tpu.dynamic_rotate %1 by %c2_i32 dim 1 : vector<32x256xf32>, i32 -> vector<32x256xf32>
    %c3 = arith.constant 3 : index
    %c0_20 = arith.constant 0 : index
    %c0_21 = arith.constant 0 : index
    %32 = vector.load %arg4[%c3, %c0_20, %c0_21] : memref<9x1x256xf32, #tpu.memory_space<vmem>>, vector<1x1x256xf32>
    %33 = vector.shape_cast %32 : vector<1x1x256xf32> to vector<1x256xf32>
    %34 = vector.broadcast %33 : vector<1x256xf32> to vector<32x256xf32>
    %35 = arith.mulf %31, %34 : vector<32x256xf32>
    %36 = arith.truncf %35 : vector<32x256xf32> to vector<32x256xbf16>
    %c3_22 = arith.constant 3 : index
    %c0_23 = arith.constant 0 : index
    %c0_24 = arith.constant 0 : index
    %37 = vector.load %arg2[%c3_22, %c0_23, %c0_24] : memref<9x32x32xbf16, #tpu.memory_space<vmem>>, vector<1x32x32xbf16>
    %38 = vector.shape_cast %37 : vector<1x32x32xbf16> to vector<32x32xbf16>
    %cst_25 = arith.constant dense<0.000000e+00> : vector<32x256xf32>
    %39 = tpu.matmul %38, %36, %cst_25 {dimension_numbers = #tpu.dot_dimension_numbers<[1], [0], [0], [1], [0, 0, 1, 1], [], []>} : vector<32x32xbf16>, vector<32x256xbf16>, vector<32x256xf32> -> vector<32x256xf32>
    %40 = arith.addf %30, %39 : vector<32x256xf32>
    %c4 = arith.constant 4 : index
    %c0_26 = arith.constant 0 : index
    %c0_27 = arith.constant 0 : index
    %41 = vector.load %arg4[%c4, %c0_26, %c0_27] : memref<9x1x256xf32, #tpu.memory_space<vmem>>, vector<1x1x256xf32>
    %42 = vector.shape_cast %41 : vector<1x1x256xf32> to vector<1x256xf32>
    %43 = vector.broadcast %42 : vector<1x256xf32> to vector<32x256xf32>
    %44 = arith.mulf %1, %43 : vector<32x256xf32>
    %45 = arith.truncf %44 : vector<32x256xf32> to vector<32x256xbf16>
    %c4_28 = arith.constant 4 : index
    %c0_29 = arith.constant 0 : index
    %c0_30 = arith.constant 0 : index
    %46 = vector.load %arg2[%c4_28, %c0_29, %c0_30] : memref<9x32x32xbf16, #tpu.memory_space<vmem>>, vector<1x32x32xbf16>
    %47 = vector.shape_cast %46 : vector<1x32x32xbf16> to vector<32x32xbf16>
    %cst_31 = arith.constant dense<0.000000e+00> : vector<32x256xf32>
    %48 = tpu.matmul %47, %45, %cst_31 {dimension_numbers = #tpu.dot_dimension_numbers<[1], [0], [0], [1], [0, 0, 1, 1], [], []>} : vector<32x32xbf16>, vector<32x256xbf16>, vector<32x256xf32> -> vector<32x256xf32>
    %49 = arith.addf %40, %48 : vector<32x256xf32>
    %c254_i32 = arith.constant 254 : i32
    %50 = tpu.dynamic_rotate %1 by %c254_i32 dim 1 : vector<32x256xf32>, i32 -> vector<32x256xf32>
    %c5 = arith.constant 5 : index
    %c0_32 = arith.constant 0 : index
    %c0_33 = arith.constant 0 : index
    %51 = vector.load %arg4[%c5, %c0_32, %c0_33] : memref<9x1x256xf32, #tpu.memory_space<vmem>>, vector<1x1x256xf32>
    %52 = vector.shape_cast %51 : vector<1x1x256xf32> to vector<1x256xf32>
    %53 = vector.broadcast %52 : vector<1x256xf32> to vector<32x256xf32>
    %54 = arith.mulf %50, %53 : vector<32x256xf32>
    %55 = arith.truncf %54 : vector<32x256xf32> to vector<32x256xbf16>
    %c5_34 = arith.constant 5 : index
    %c0_35 = arith.constant 0 : index
    %c0_36 = arith.constant 0 : index
    %56 = vector.load %arg2[%c5_34, %c0_35, %c0_36] : memref<9x32x32xbf16, #tpu.memory_space<vmem>>, vector<1x32x32xbf16>
    %57 = vector.shape_cast %56 : vector<1x32x32xbf16> to vector<32x32xbf16>
    %cst_37 = arith.constant dense<0.000000e+00> : vector<32x256xf32>
    %58 = tpu.matmul %57, %55, %cst_37 {dimension_numbers = #tpu.dot_dimension_numbers<[1], [0], [0], [1], [0, 0, 1, 1], [], []>} : vector<32x32xbf16>, vector<32x256xbf16>, vector<32x256xf32> -> vector<32x256xf32>
    %59 = arith.addf %49, %58 : vector<32x256xf32>
    %c226_i32 = arith.constant 226 : i32
    %60 = tpu.dynamic_rotate %1 by %c226_i32 dim 1 : vector<32x256xf32>, i32 -> vector<32x256xf32>
    %c6 = arith.constant 6 : index
    %c0_38 = arith.constant 0 : index
    %c0_39 = arith.constant 0 : index
    %61 = vector.load %arg4[%c6, %c0_38, %c0_39] : memref<9x1x256xf32, #tpu.memory_space<vmem>>, vector<1x1x256xf32>
    %62 = vector.shape_cast %61 : vector<1x1x256xf32> to vector<1x256xf32>
    %63 = vector.broadcast %62 : vector<1x256xf32> to vector<32x256xf32>
    %64 = arith.mulf %60, %63 : vector<32x256xf32>
    %65 = arith.truncf %64 : vector<32x256xf32> to vector<32x256xbf16>
    %c6_40 = arith.constant 6 : index
    %c0_41 = arith.constant 0 : index
    %c0_42 = arith.constant 0 : index
    %66 = vector.load %arg2[%c6_40, %c0_41, %c0_42] : memref<9x32x32xbf16, #tpu.memory_space<vmem>>, vector<1x32x32xbf16>
    %67 = vector.shape_cast %66 : vector<1x32x32xbf16> to vector<32x32xbf16>
    %cst_43 = arith.constant dense<0.000000e+00> : vector<32x256xf32>
    %68 = tpu.matmul %67, %65, %cst_43 {dimension_numbers = #tpu.dot_dimension_numbers<[1], [0], [0], [1], [0, 0, 1, 1], [], []>} : vector<32x32xbf16>, vector<32x256xbf16>, vector<32x256xf32> -> vector<32x256xf32>
    %69 = arith.addf %59, %68 : vector<32x256xf32>
    %c224_i32 = arith.constant 224 : i32
    %70 = tpu.dynamic_rotate %1 by %c224_i32 dim 1 : vector<32x256xf32>, i32 -> vector<32x256xf32>
    %c7 = arith.constant 7 : index
    %c0_44 = arith.constant 0 : index
    %c0_45 = arith.constant 0 : index
    %71 = vector.load %arg4[%c7, %c0_44, %c0_45] : memref<9x1x256xf32, #tpu.memory_space<vmem>>, vector<1x1x256xf32>
    %72 = vector.shape_cast %71 : vector<1x1x256xf32> to vector<1x256xf32>
    %73 = vector.broadcast %72 : vector<1x256xf32> to vector<32x256xf32>
    %74 = arith.mulf %70, %73 : vector<32x256xf32>
    %75 = arith.truncf %74 : vector<32x256xf32> to vector<32x256xbf16>
    %c7_46 = arith.constant 7 : index
    %c0_47 = arith.constant 0 : index
    %c0_48 = arith.constant 0 : index
    %76 = vector.load %arg2[%c7_46, %c0_47, %c0_48] : memref<9x32x32xbf16, #tpu.memory_space<vmem>>, vector<1x32x32xbf16>
    %77 = vector.shape_cast %76 : vector<1x32x32xbf16> to vector<32x32xbf16>
    %cst_49 = arith.constant dense<0.000000e+00> : vector<32x256xf32>
    %78 = tpu.matmul %77, %75, %cst_49 {dimension_numbers = #tpu.dot_dimension_numbers<[1], [0], [0], [1], [0, 0, 1, 1], [], []>} : vector<32x32xbf16>, vector<32x256xbf16>, vector<32x256xf32> -> vector<32x256xf32>
    %79 = arith.addf %69, %78 : vector<32x256xf32>
    %c222_i32 = arith.constant 222 : i32
    %80 = tpu.dynamic_rotate %1 by %c222_i32 dim 1 : vector<32x256xf32>, i32 -> vector<32x256xf32>
    %c8 = arith.constant 8 : index
    %c0_50 = arith.constant 0 : index
    %c0_51 = arith.constant 0 : index
    %81 = vector.load %arg4[%c8, %c0_50, %c0_51] : memref<9x1x256xf32, #tpu.memory_space<vmem>>, vector<1x1x256xf32>
    %82 = vector.shape_cast %81 : vector<1x1x256xf32> to vector<1x256xf32>
    %83 = vector.broadcast %82 : vector<1x256xf32> to vector<32x256xf32>
    %84 = arith.mulf %80, %83 : vector<32x256xf32>
    %85 = arith.truncf %84 : vector<32x256xf32> to vector<32x256xbf16>
    %c8_52 = arith.constant 8 : index
    %c0_53 = arith.constant 0 : index
    %c0_54 = arith.constant 0 : index
    %86 = vector.load %arg2[%c8_52, %c0_53, %c0_54] : memref<9x32x32xbf16, #tpu.memory_space<vmem>>, vector<1x32x32xbf16>
    %87 = vector.shape_cast %86 : vector<1x32x32xbf16> to vector<32x32xbf16>
    %cst_55 = arith.constant dense<0.000000e+00> : vector<32x256xf32>
    %88 = tpu.matmul %87, %85, %cst_55 {dimension_numbers = #tpu.dot_dimension_numbers<[1], [0], [0], [1], [0, 0, 1, 1], [], []>} : vector<32x32xbf16>, vector<32x256xbf16>, vector<32x256xf32> -> vector<32x256xf32>
    %89 = arith.addf %79, %88 : vector<32x256xf32>
    %c0_56 = arith.constant 0 : index
    %c0_57 = arith.constant 0 : index
    %90 = vector.load %arg3[%c0_56, %c0_57] : memref<32x1xf32, #tpu.memory_space<vmem>>, vector<32x1xf32>
    %91 = vector.broadcast %90 : vector<32x1xf32> to vector<32x256xf32>
    %92 = arith.addf %89, %91 : vector<32x256xf32>
    %cst_58 = arith.constant 0.000000e+00 : f32
    %93 = vector.broadcast %cst_58 : f32 to vector<32x256xf32>
    %94 = arith.cmpf ogt, %92, %93 : vector<32x256xf32>
    %cst_59 = arith.constant 2.000000e-01 : f32
    %95 = vector.broadcast %cst_59 : f32 to vector<32x256xf32>
    %96 = arith.mulf %95, %92 : vector<32x256xf32>
    %97 = arith.select %94, %92, %96 : vector<32x256xi1>, vector<32x256xf32>
    %c0_60 = arith.constant 0 : index
    %c0_61 = arith.constant 0 : index
    %c0_62 = arith.constant 0 : index
    %98 = vector.load %arg5[%c0_60, %c0_61, %c0_62] : memref<1x32x256xf32, #tpu.memory_space<vmem>>, vector<1x32x256xf32>
    %99 = vector.shape_cast %98 : vector<1x32x256xf32> to vector<32x256xf32>
    %100 = vector.shape_cast %97 : vector<32x256xf32> to vector<1x32x256xf32>
    tpu.vector_store %arg5[%c0_60, %c0_61, %c0_62], %100 {strides = array<i32>} : memref<1x32x256xf32, #tpu.memory_space<vmem>>, vector<1x32x256xf32>,
    return
  }
  func.func @transform_0(%arg0: i32) -> (i32, i32, i32) {
    %c0_i32 = arith.constant 0 : i32
    %c0_i32_0 = arith.constant 0 : i32
    %c0_i32_1 = arith.constant 0 : i32
    return %arg0, %c0_i32, %c0_i32_0 : i32, i32, i32
  }
  func.func @transform_1(%arg0: i32) -> (i32, i32, i32) {
    %c0_i32 = arith.constant 0 : i32
    %c0_i32_0 = arith.constant 0 : i32
    %c0_i32_1 = arith.constant 0 : i32
    %c0_i32_2 = arith.constant 0 : i32
    return %c0_i32, %c0_i32_0, %c0_i32_1 : i32, i32, i32
  }
  func.func @transform_2(%arg0: i32) -> (i32, i32) {
    %c0_i32 = arith.constant 0 : i32
    %c0_i32_0 = arith.constant 0 : i32
    %c0_i32_1 = arith.constant 0 : i32
    return %c0_i32, %c0_i32_0 : i32, i32
  }
  func.func @transform_3(%arg0: i32) -> (i32, i32, i32) {
    %c0_i32 = arith.constant 0 : i32
    %c0_i32_0 = arith.constant 0 : i32
    %c0_i32_1 = arith.constant 0 : i32
    %c0_i32_2 = arith.constant 0 : i32
    return %c0_i32, %c0_i32_0, %c0_i32_1 : i32, i32, i32
  }
  func.func @transform_4(%arg0: i32) -> (i32, i32, i32) {
    %c0_i32 = arith.constant 0 : i32
    %c0_i32_0 = arith.constant 0 : i32
    %c0_i32_1 = arith.constant 0 : i32
    return %arg0, %c0_i32, %c0_i32_0 : i32, i32, i32
  }
}

</mosaic_0001>

<llo_original>
// kernel: _lambda_.6
$region0: #{_lambda_.6}
  #allocation0 [shape = 'u32[]', space=smem, size = 0x4, offset = 0x4, fixed_abs, tag = 'smem constant byte address 0x4 - core index']
  #allocation1 [shape = 'u32[144,128]{1,0:T(1,128)}', space=vmem, size = 0x12000, scoped, tag = 'internal scratch']
  %s0 = inlined_call_operand.vmem [shape: f32[4,32,256], index: 0, kind: input, shape index: {}]
  %s1 = inlined_call_operand.vmem [shape: bf16[96,32], index: 1, kind: input, shape index: {}]
  %s2 = inlined_call_operand.vmem [shape: f32[96,1], index: 2, kind: input, shape index: {}]
  %s3 = inlined_call_operand.vmem [shape: f32[4,96,256], index: 3, kind: output, shape index: {}]
  %s4 = sld [smem:[#allocation0]]
  $region45: #{_lambda_.6} parent=0
    _
  %s6 = ssub.s32 1, %s4
  %s7 = scalar_select 0, %s6, %s4
  loop: start=0, step=1, limit=6
  $region2: #{_lambda_.6} parent=0 // loop_pre_header
    _
  $region3: #{_lambda_.6} parent=0 // loop_header
    %s9 = sphi 0, %s13
    %p10 = scmp.ge.s32.totalorder %s9, 6
    %s19 = sphi 0, %s21
    %s22 = sphi 0, %s19
    %s23 = sphi 0, %s22
    %s39 = sphi 0, %s23
    %s43 = sphi 0, %s43
    %s45 = sphi 0, %s43
    %s46 = sphi 0, %s45
    %s60 = sphi 0, %s46
    %s64 = sphi 0, %s64
    %s66 = sphi 0, %s64
    %s67 = sphi 0, %s66
    %s81 = sphi 0, %s67
    %s87 = sphi 0, %s89
    %s90 = sphi 0, %s87
    %s91 = sphi 0, %s90
    %s107 = sphi 0, %s91
  $region4: #{_lambda_.6} parent=0 // loop_header_branch
    %12 = sbr.rel (%p10) target = $region8
  $region5: #{_lambda_.6} parent=0 // loop_body
    %s14 = ssub.s32 %s9, 1
    %s15 = ssub.s32 %s9, 2
    %s16 = sadd.s32 %s9, 1
    %s17 = ssub.s32 %s9, %s16
    %p18 = scmp.eq.s32.totalorder %s17, 0
    %s20 = sadd.s32 %s19, 1
    %s21 = scalar_select %p18, %s19, %s20
    %p24 = pneg %p18
    %p25 = scmp.eq.s32.totalorder %s9, 3
    %p26 = por %p24, %p25
    %p27 = scmp.ne.s32.totalorder %s19, %s22
    %p28 = scmp.eq.s32.totalorder %s9, 0
    %p29 = por %p27, %p28
    %p30 = scmp.ne.s32.totalorder %s19, %s22
    %p31 = scmp.eq.s32.totalorder %s14, 3
    %p32 = por %p30, %p31
    %p33 = scmp.ne.s32.totalorder %s22, %s23
    %p34 = scmp.eq.s32.totalorder %s14, 0
    %p35 = por %p33, %p34
    %p36 = scmp.ne.s32.totalorder %s22, %s23
    %p37 = scmp.eq.s32.totalorder %s15, 3
    %p38 = por %p36, %p37
    %p40 = scmp.ne.s32.totalorder %s23, %s39
    %p41 = scmp.eq.s32.totalorder %s15, 0
    %p42 = por %p40, %p41
    %s44 = sadd.s32 %s43, 1
    %p47 = scmp.eq.s32.totalorder %s9, 3
    %p48 = scmp.ne.s32.totalorder %s43, %s45
    %p49 = scmp.eq.s32.totalorder %s9, 0
    %p50 = por %p48, %p49
    %p51 = scmp.ne.s32.totalorder %s43, %s45
    %p52 = scmp.eq.s32.totalorder %s14, 3
    %p53 = por %p51, %p52
    %p54 = scmp.ne.s32.totalorder %s45, %s46
    %p55 = scmp.eq.s32.totalorder %s14, 0
    %p56 = por %p54, %p55
    %p57 = scmp.ne.s32.totalorder %s45, %s46
    %p58 = scmp.eq.s32.totalorder %s15, 3
    %p59 = por %p57, %p58
    %p61 = scmp.ne.s32.totalorder %s46, %s60
    %p62 = scmp.eq.s32.totalorder %s15, 0
    %p63 = por %p61, %p62
    %s65 = sadd.s32 %s64, 1
    %p68 = scmp.eq.s32.totalorder %s9, 3
    %p69 = scmp.ne.s32.totalorder %s64, %s66
    %p70 = scmp.eq.s32.totalorder %s9, 0
    %p71 = por %p69, %p70
    %p72 = scmp.ne.s32.totalorder %s64, %s66
    %p73 = scmp.eq.s32.totalorder %s14, 3
    %p74 = por %p72, %p73
    %p75 = scmp.ne.s32.totalorder %s66, %s67
    %p76 = scmp.eq.s32.totalorder %s14, 0
    %p77 = por %p75, %p76
    %p78 = scmp.ne.s32.totalorder %s66, %s67
    %p79 = scmp.eq.s32.totalorder %s15, 3
    %p80 = por %p78, %p79
    %p82 = scmp.ne.s32.totalorder %s67, %s81
    %p83 = scmp.eq.s32.totalorder %s15, 0
    %p84 = por %p82, %p83
    %s85 = ssub.s32 %s9, %s16
    %p86 = scmp.eq.s32.totalorder %s85, 0
    %s88 = sadd.s32 %s87, 1
    %s89 = scalar_select %p86, %s87, %s88
    %p92 = pneg %p86
    %p93 = scmp.eq.s32.totalorder %s9, 3
    %p94 = por %p92, %p93
    %p95 = scmp.ne.s32.totalorder %s87, %s90
    %p96 = scmp.eq.s32.totalorder %s9, 0
    %p97 = por %p95, %p96
    %p98 = scmp.ne.s32.totalorder %s87, %s90
    %p99 = scmp.eq.s32.totalorder %s14, 3
    %p100 = por %p98, %p99
    %p101 = scmp.ne.s32.totalorder %s90, %s91
    %p102 = scmp.eq.s32.totalorder %s14, 0
    %p103 = por %p101, %p102
    %p104 = scmp.ne.s32.totalorder %s90, %s91
    %p105 = scmp.eq.s32.totalorder %s15, 3
    %p106 = por %p104, %p105
    %p108 = scmp.ne.s32.totalorder %s91, %s107
    %p109 = scmp.eq.s32.totalorder %s15, 0
    %p110 = por %p108, %p109
    %p111 = scmp.le.s32.totalorder 1, %s9
    %p112 = scmp.lt.s32.totalorder %s9, 5
    %p113 = pnand %p111, %p112
    %p114 = pneg %p113
    // Predicated region
    $region9: #{_lambda_.6} parent=5 // pred_check
      _
    $region10: #{_lambda_.6} parent=5 // pred_check_branch
      %116 = sbr.rel (%p113) target = $region12
    $region11: #{_lambda_.6} parent=5 // pred_region
      %s117 = ssub.s32 %s9, 1
      // Predicated region
      $region13: #{_lambda_.6} parent=11 // pred_check
        %p118 = pneg %p56
      $region14: #{_lambda_.6} parent=11 // pred_check_branch
        %120 = sbr.rel (%p118) target = $region16
      $region15: #{_lambda_.6} parent=11 // pred_region
        _
      $region16: #{_lambda_.6} parent=11 // pred_fallthru
        _
      // Predicated region
      $region17: #{_lambda_.6} parent=11 // pred_check
        %p121 = pneg %p77
      $region18: #{_lambda_.6} parent=11 // pred_check_branch
        %123 = sbr.rel (%p121) target = $region20
      $region19: #{_lambda_.6} parent=11 // pred_region
        _
      $region20: #{_lambda_.6} parent=11 // pred_fallthru
        _
    $region12: #{_lambda_.6} parent=5 // pred_fallthru
      _
    %p124 = scmp.lt.s32.totalorder %s9, 4
    // Predicated region
    $region21: #{_lambda_.6} parent=5 // pred_check
      %p125 = pneg %p124
    $region22: #{_lambda_.6} parent=5 // pred_check_branch
      %127 = sbr.rel (%p125) target = $region24
    $region23: #{_lambda_.6} parent=5 // pred_region
      // Predicated region
      $region25: #{_lambda_.6} parent=23 // pred_check
        %p128 = pneg %p29
      $region26: #{_lambda_.6} parent=23 // pred_check_branch
        %130 = sbr.rel (%p128) target = $region28
      $region27: #{_lambda_.6} parent=23 // pred_region
        %p131 = scmp.lt.s32.totalorder %s9, 3
        %s132 = scalar_select %p131, %s9, 3
        %s133 = smul.addr %s132, 8
        %s134 = smul.addr %s133, 8
        %s135 = scalar_lea.vmem %s0, %s134
      $region28: #{_lambda_.6} parent=23 // pred_fallthru
        _
    $region24: #{_lambda_.6} parent=5 // pred_fallthru
      _
    %p136 = scmp.le.s32.totalorder 1, %s9
    %p137 = scmp.lt.s32.totalorder %s9, 5
    %p138 = pnand %p136, %p137
    %p139 = pneg %p138
    // Predicated region
    $region29: #{_lambda_.6} parent=5 // pred_check
      _
    $region30: #{_lambda_.6} parent=5 // pred_check_branch
      %141 = sbr.rel (%p138) target = $region32
    $region31: #{_lambda_.6} parent=5 // pred_region
      %s142 = ssub.s32 %s9, 1
      %p143 = scmp.lt.s32.totalorder %s14, 3
      %s144 = scalar_select %p143, %s14, 3
      %s145 = smul.addr %s144, 8
      %s146 = smul.addr %s145, 8
      %s147 = scalar_lea.vmem %s0, %s146
      %p148 = pneg %p35
      %p149 = pneg %p32
      %p150 = pneg %p56
      %p151 = pneg %p53
      %p152 = pneg %p77
      %p153 = pneg %p74
      %p154 = pneg %p103
      %p155 = pneg %p100
      %p156 = scmp.lt.s32.totalorder %s14, 3
      %s157 = scalar_select %p156, %s14, 3
      %s158 = smul.addr %s157, 24
      %s159 = smul.addr %s158, 8
      %s160 = scalar_lea.vmem %s3, %s159
      %p161 = scmp.lt.s32.totalorder %s14, 3
      %s162 = scalar_select %p161, %s14, 3
      %s163 = smul.addr %s162, 8
      %s164 = smul.addr %s163, 8
      %s165 = scalar_lea.vmem %s0, %s164
      %p166 = scmp.lt.s32.totalorder %s14, 3
      %s167 = scalar_select %p166, %s14, 3
      %s168 = smul.addr %s167, 24
      %s169 = smul.addr %s168, 8
      %s170 = scalar_lea.vmem %s3, %s169
      %v172 = vld [vmem:[%s165] sm:$0xff]
      %v173 = vld [vmem:[%s165 + $0x8] sm:$0xff]
      %v174 = vld [vmem:[%s165 + $0x10] sm:$0xff]
      %v175 = vld [vmem:[%s165 + $0x18] sm:$0xff]
      %v176 = vld [vmem:[%s165 + $0x20] sm:$0xff]
      %v177 = vld [vmem:[%s165 + $0x28] sm:$0xff]
      %v178 = vld [vmem:[%s165 + $0x30] sm:$0xff]
      %v179 = vld [vmem:[%s165 + $0x38] sm:$0xff]
      %v180 = vpack.c.bf16 %v174, %v172
      %v181 = vpack.c.bf16 %v175, %v173
      %v182 = vpack.c.bf16 %v178, %v176
      %v183 = vpack.c.bf16 %v179, %v177
      %v184 = vld [vmem:[%s1] sm:$0xf]
      %v185 = vld [vmem:[%s1 + $0x4] sm:$0xf]
      %v186 = vld [vmem:[%s1 + $0x8] sm:$0xf]
      %v187 = vld [vmem:[%s1 + $0xc] sm:$0xf]
      %v188 = vld [vmem:[%s1 + $0x10] sm:$0xf]
      %v189 = vld [vmem:[%s1 + $0x14] sm:$0xf]
      %v190 = vld [vmem:[%s1 + $0x18] sm:$0xf]
      %v191 = vld [vmem:[%s1 + $0x1c] sm:$0xf]
      %v192 = vld [vmem:[%s1 + $0x20] sm:$0xf]
      %v193 = vld [vmem:[%s1 + $0x24] sm:$0xf]
      %v194 = vld [vmem:[%s1 + $0x28] sm:$0xf]
      %v195 = vld [vmem:[%s1 + $0x2c] sm:$0xf]
      %v196 = vld [vmem:[%s2] sm:$0xff]
      %v197 = vld [vmem:[%s2 + $0x8] sm:$0xff]
      %v198 = vld [vmem:[%s2 + $0x10] sm:$0xff]
      %v199 = vld [vmem:[%s2 + $0x18] sm:$0xff]
      %v200 = vld [vmem:[%s2 + $0x20] sm:$0xff]
      %v201 = vld [vmem:[%s2 + $0x28] sm:$0xff]
      %v202 = vld [vmem:[%s2 + $0x30] sm:$0xff]
      %v203 = vld [vmem:[%s2 + $0x38] sm:$0xff]
      %v204 = vld [vmem:[%s2 + $0x40] sm:$0xff]
      %v205 = vld [vmem:[%s2 + $0x48] sm:$0xff]
      %v206 = vld [vmem:[%s2 + $0x50] sm:$0xff]
      %v207 = vld [vmem:[%s2 + $0x58] sm:$0xff]
      %209 = vset.pattern.permute.xlu0 0
      %210 = vperm.xlu0 %209, %v196
      %v211 = vpop.permute.xlu0 %210
      %214 = vset.pattern.permute.xlu0 0
      %215 = vperm.xlu0 %214, %v197
      %v216 = vpop.permute.xlu0 %215
      %219 = vset.pattern.permute.xlu0 0
      %220 = vperm.xlu0 %219, %v198
      %v221 = vpop.permute.xlu0 %220
      %224 = vset.pattern.permute.xlu0 0
      %225 = vperm.xlu0 %224, %v199
      %v226 = vpop.permute.xlu0 %225
      %229 = vset.pattern.permute.xlu0 0
      %230 = vperm.xlu0 %229, %v200
      %v231 = vpop.permute.xlu0 %230
      %234 = vset.pattern.permute.xlu0 0
      %235 = vperm.xlu0 %234, %v201
      %v236 = vpop.permute.xlu0 %235
      %239 = vset.pattern.permute.xlu0 0
      %240 = vperm.xlu0 %239, %v202
      %v241 = vpop.permute.xlu0 %240
      %244 = vset.pattern.permute.xlu0 0
      %245 = vperm.xlu0 %244, %v203
      %v246 = vpop.permute.xlu0 %245
      %249 = vset.pattern.permute.xlu0 0
      %250 = vperm.xlu0 %249, %v204
      %v251 = vpop.permute.xlu0 %250
      %254 = vset.pattern.permute.xlu0 0
      %255 = vperm.xlu0 %254, %v205
      %v256 = vpop.permute.xlu0 %255
      %259 = vset.pattern.permute.xlu0 0
      %260 = vperm.xlu0 %259, %v206
      %v261 = vpop.permute.xlu0 %260
      %264 = vset.pattern.permute.xlu0 0
      %265 = vperm.xlu0 %264, %v207
      %v266 = vpop.permute.xlu0 %265
      %v280 = vunpack.c.l.b16 %v184
      %v281 = vunpack.c.l.b16 %v185
      %v282 = vunpack.c.l.b16 %v186
      %v283 = vunpack.c.l.b16 %v187
      %v284 = vunpack.c.l.b16 %v188
      %v285 = vunpack.c.l.b16 %v189
      %v286 = vunpack.c.l.b16 %v190
      %v287 = vunpack.c.l.b16 %v191
      %v288 = vunpack.c.l.b16 %v192
      %v289 = vunpack.c.l.b16 %v193
      %v290 = vunpack.c.l.b16 %v194
      %v291 = vunpack.c.l.b16 %v195
      %v292 = vpack.c.b16 %v281, %v280
      %v293 = vpack.c.b16 %v283, %v282
      %v294 = vpack.c.b16 %v285, %v284
      %v295 = vpack.c.b16 %v287, %v286
      %v296 = vpack.c.b16 %v289, %v288
      %v297 = vpack.c.b16 %v291, %v290
      %vm298 = vcmask 261120
      %v300 = vsel %vm298, %v292, 0
      %v303 = vsel %vm298, %v293, 0
      %v306 = vsel %vm298, %v294, 0
      %v309 = vsel %vm298, %v295, 0
      %v312 = vsel %vm298, %v296, 0
      %v315 = vsel %vm298, %v297, 0
      %317 = vmatprep.subr.bf16.mxu0 0
      %318 = vmatpush1.bf16.msra.mxu0 0
      %319 = vmatprep.subr.bf16.mxu0 0
      %320 = vmatpush1.bf16.msra.mxu0 0
      %321 = vmatprep.subr.bf16.mxu0 0
      %322 = vmatpush1.bf16.msra.mxu0 0
      %323 = vmatprep.subr.bf16.mxu0 0
      %324 = vmatpush1.bf16.msra.mxu0 0
      %325 = vmatprep.subr.bf16.mxu0 0
      %326 = vmatpush1.bf16.msra.mxu0 0
      %327 = vmatprep.subr.bf16.mxu0 0
      %328 = vmatpush1.bf16.msra.mxu0 0
      %329 = vmatprep.subr.bf16.mxu0 %v183
      %330 = vmatpush1.bf16.msra.mxu0 %v182
      %331 = vmatprep.subr.bf16.mxu0 %v181
      %332 = vmatpush1.bf16.msra.mxu0 %v180
      %333 = vmatprep.subr.bf16.mxu0 0
      %334 = vmatpush2.bf16.msra.mxu0 0
      %335 = vmatprep.subr.bf16.mxu0 0
      %336 = vmatpush2.bf16.msra.mxu0 0
      %337 = vmatprep.subr.bf16.mxu0 0
      %338 = vmatpush2.bf16.msra.mxu0 0
      %339 = vmatprep.subr.bf16.mxu0 0
      %340 = vmatpush2.bf16.msra.mxu0 0
      %341 = vmatprep.subr.bf16.mxu0 0
      %342 = vmatpush2.bf16.msra.mxu0 0
      %343 = vmatprep.subr.bf16.mxu0 0
      %344 = vmatpush2.bf16.msra.mxu0 0
      %345 = vmatprep.subr.bf16.mxu0 0
      %346 = vmatpush2.bf16.msra.mxu0 0
      %347 = vmatprep.subr.bf16.mxu0 0
      %348 = vmatpush2.bf16.msra.mxu0 0
      %349 = vmatprep.mubr.bf16.mxu0 0
      %350 = vmatmul.mubr.bf16.gmra.mxu0 %v300
      %v351 = vpop.f32.mrf.mxu0
      %v352 = vadd.f32 %v211, %v351
      %v353 = vpop.f32.mrf.mxu0
      %v354 = vadd.f32 %v211, %v353
      %v355 = vpop.f32.mrf.mxu0
      %v356 = vadd.f32 %v216, %v355
      %v357 = vpop.f32.mrf.mxu0
      %v358 = vadd.f32 %v216, %v357
      %359 = vmatprep.mubr.bf16.mxu0 0
      %360 = vmatmul.mubr.bf16.gmra.mxu0 %v303
      %v361 = vpop.f32.mrf.mxu0
      %v362 = vadd.f32 %v221, %v361
      %v363 = vpop.f32.mrf.mxu0
      %v364 = vadd.f32 %v221, %v363
      %v365 = vpop.f32.mrf.mxu0
      %v366 = vadd.f32 %v226, %v365
      %v367 = vpop.f32.mrf.mxu0
      %v368 = vadd.f32 %v226, %v367
      %369 = vmatprep.mubr.bf16.mxu0 0
      %370 = vmatmul.mubr.bf16.gmra.mxu0 %v306
      %v371 = vpop.f32.mrf.mxu0
      %v372 = vadd.f32 %v231, %v371
      %v373 = vpop.f32.mrf.mxu0
      %v374 = vadd.f32 %v231, %v373
      %v375 = vpop.f32.mrf.mxu0
      %v376 = vadd.f32 %v236, %v375
      %v377 = vpop.f32.mrf.mxu0
      %v378 = vadd.f32 %v236, %v377
      %379 = vmatprep.mubr.bf16.mxu0 0
      %380 = vmatmul.mubr.bf16.gmra.mxu0 %v309
      %v381 = vpop.f32.mrf.mxu0
      %v382 = vadd.f32 %v241, %v381
      %v383 = vpop.f32.mrf.mxu0
      %v384 = vadd.f32 %v241, %v383
      %v385 = vpop.f32.mrf.mxu0
      %v386 = vadd.f32 %v246, %v385
      %v387 = vpop.f32.mrf.mxu0
      %v388 = vadd.f32 %v246, %v387
      %389 = vmatprep.mubr.bf16.mxu0 0
      %390 = vmatmul.mubr.bf16.gmra.mxu0 %v312
      %v391 = vpop.f32.mrf.mxu0
      %v392 = vadd.f32 %v251, %v391
      %v393 = vpop.f32.mrf.mxu0
      %v394 = vadd.f32 %v251, %v393
      %v395 = vpop.f32.mrf.mxu0
      %v396 = vadd.f32 %v256, %v395
      %v397 = vpop.f32.mrf.mxu0
      %v398 = vadd.f32 %v256, %v397
      %399 = vmatprep.mubr.bf16.mxu0 0
      %400 = vmatmul.mubr.bf16.gmra.mxu0 %v315
      %v401 = vpop.f32.mrf.mxu0
      %v402 = vadd.f32 %v261, %v401
      %v403 = vpop.f32.mrf.mxu0
      %v404 = vadd.f32 %v261, %v403
      %v405 = vpop.f32.mrf.mxu0
      %v406 = vadd.f32 %v266, %v405
      %v407 = vpop.f32.mrf.mxu0
      %v408 = vadd.f32 %v266, %v407
      %409 = vdwg.mxu0
      %410 = vst [vmem:[%s170] sm:$0xff] %v352
      %411 = vst [vmem:[%s170 + $0x8] sm:$0xff] %v354
      %412 = vst [vmem:[%s170 + $0x10] sm:$0xff] %v356
      %413 = vst [vmem:[%s170 + $0x18] sm:$0xff] %v358
      %414 = vst [vmem:[%s170 + $0x20] sm:$0xff] %v362
      %415 = vst [vmem:[%s170 + $0x28] sm:$0xff] %v364
      %416 = vst [vmem:[%s170 + $0x30] sm:$0xff] %v366
      %417 = vst [vmem:[%s170 + $0x38] sm:$0xff] %v368
      %418 = vst [vmem:[%s170 + $0x40] sm:$0xff] %v372
      %419 = vst [vmem:[%s170 + $0x48] sm:$0xff] %v374
      %420 = vst [vmem:[%s170 + $0x50] sm:$0xff] %v376
      %421 = vst [vmem:[%s170 + $0x58] sm:$0xff] %v378
      %422 = vst [vmem:[%s170 + $0x60] sm:$0xff] %v382
      %423 = vst [vmem:[%s170 + $0x68] sm:$0xff] %v384
      %424 = vst [vmem:[%s170 + $0x70] sm:$0xff] %v386
      %425 = vst [vmem:[%s170 + $0x78] sm:$0xff] %v388
      %426 = vst [vmem:[%s170 + $0x80] sm:$0xff] %v392
      %427 = vst [vmem:[%s170 + $0x88] sm:$0xff] %v394
      %428 = vst [vmem:[%s170 + $0x90] sm:$0xff] %v396
      %429 = vst [vmem:[%s170 + $0x98] sm:$0xff] %v398
      %430 = vst [vmem:[%s170 + $0xa0] sm:$0xff] %v402
      %431 = vst [vmem:[%s170 + $0xa8] sm:$0xff] %v404
      %432 = vst [vmem:[%s170 + $0xb0] sm:$0xff] %v406
      %433 = vst [vmem:[%s170 + $0xb8] sm:$0xff] %v408
      %p434 = scmp.lt.s32.totalorder %s14, 3
      %s435 = scalar_select %p434, %s14, 3
      %s436 = smul.addr %s435, 24
      %s437 = smul.addr %s436, 8
      %s438 = scalar_lea.vmem %s3, %s437
      // Predicated region
      $region33: #{_lambda_.6} parent=31 // pred_check
        %p439 = pneg %p100
      $region34: #{_lambda_.6} parent=31 // pred_check_branch
        %441 = sbr.rel (%p439) target = $region36
      $region35: #{_lambda_.6} parent=31 // pred_region
        _
      $region36: #{_lambda_.6} parent=31 // pred_fallthru
        _
    $region32: #{_lambda_.6} parent=5 // pred_fallthru
      _
    %p442 = scmp.le.s32.totalorder 2, %s9
    // Predicated region
    $region37: #{_lambda_.6} parent=5 // pred_check
      %p443 = pneg %p442
    $region38: #{_lambda_.6} parent=5 // pred_check_branch
      %445 = sbr.rel (%p443) target = $region40
    $region39: #{_lambda_.6} parent=5 // pred_region
      %s446 = ssub.s32 %s9, 2
      // Predicated region
      $region41: #{_lambda_.6} parent=39 // pred_check
        %p447 = pneg %p106
      $region42: #{_lambda_.6} parent=39 // pred_check_branch
        %449 = sbr.rel (%p447) target = $region44
      $region43: #{_lambda_.6} parent=39 // pred_region
        %p450 = scmp.lt.s32.totalorder %s15, 3
        %s451 = scalar_select %p450, %s15, 3
        %s452 = smul.addr %s451, 24
        %s453 = smul.addr %s452, 8
        %s454 = scalar_lea.vmem %s3, %s453
      $region44: #{_lambda_.6} parent=39 // pred_fallthru
        _
    $region40: #{_lambda_.6} parent=5 // pred_fallthru
      _
  $region6: #{_lambda_.6} parent=0 // loop_footer
    %s13 = sadd.s32 1, %s9
  $region7: #{_lambda_.6} parent=0 // loop_footer_branch
    %8 = sbr.rel target = $region3
  $region8: #{_lambda_.6} parent=0 // loop_exit
    _

// kernel: _lambda_.8
$region0: #{_lambda_.8}
  #allocation0 [shape = 'u32[]', space=smem, size = 0x4, offset = 0x4, fixed_abs, tag = 'smem constant byte address 0x4 - core index']
  #allocation1 [shape = 'u32[144,128]{1,0:T(1,128)}', space=vmem, size = 0x12000, scoped, tag = 'internal scratch']
  %s0 = inlined_call_operand.vmem [shape: f32[2,128,64], index: 0, kind: input, shape index: {}]
  %s1 = inlined_call_operand.vmem [shape: f32[2,128,64], index: 1, kind: input, shape index: {}]
  %s2 = inlined_call_operand.vmem [shape: f32[2,128,64], index: 2, kind: input, shape index: {}]
  %s3 = inlined_call_operand.vmem [shape: f32[2,128,64], index: 3, kind: output, shape index: {}]
  %s4 = sld [smem:[#allocation0]]
  $region45: #{_lambda_.8} parent=0
    _
  %s6 = ssub.s32 1, %s4
  %s7 = scalar_select 0, %s6, %s4
  loop: start=0, step=1, limit=4
  $region2: #{_lambda_.8} parent=0 // loop_pre_header
    _
  $region3: #{_lambda_.8} parent=0 // loop_header
    %s9 = sphi 0, %s13
    %p10 = scmp.ge.s32.totalorder %s9, 4
    %s19 = sphi 0, %s21
    %s22 = sphi 0, %s19
    %s23 = sphi 0, %s22
    %s39 = sphi 0, %s23
    %s45 = sphi 0, %s47
    %s48 = sphi 0, %s45
    %s49 = sphi 0, %s48
    %s65 = sphi 0, %s49
    %s71 = sphi 0, %s73
    %s74 = sphi 0, %s71
    %s75 = sphi 0, %s74
    %s91 = sphi 0, %s75
    %s97 = sphi 0, %s99
    %s100 = sphi 0, %s97
    %s101 = sphi 0, %s100
    %s117 = sphi 0, %s101
  $region4: #{_lambda_.8} parent=0 // loop_header_branch
    %12 = sbr.rel (%p10) target = $region8
  $region5: #{_lambda_.8} parent=0 // loop_body
    %s14 = ssub.s32 %s9, 1
    %s15 = ssub.s32 %s9, 2
    %s16 = sadd.s32 %s9, 1
    %s17 = ssub.s32 %s9, %s16
    %p18 = scmp.eq.s32.totalorder %s17, 0
    %s20 = sadd.s32 %s19, 1
    %s21 = scalar_select %p18, %s19, %s20
    %p24 = pneg %p18
    %p25 = scmp.eq.s32.totalorder %s9, 1
    %p26 = por %p24, %p25
    %p27 = scmp.ne.s32.totalorder %s19, %s22
    %p28 = scmp.eq.s32.totalorder %s9, 0
    %p29 = por %p27, %p28
    %p30 = scmp.ne.s32.totalorder %s19, %s22
    %p31 = scmp.eq.s32.totalorder %s14, 1
    %p32 = por %p30, %p31
    %p33 = scmp.ne.s32.totalorder %s22, %s23
    %p34 = scmp.eq.s32.totalorder %s14, 0
    %p35 = por %p33, %p34
    %p36 = scmp.ne.s32.totalorder %s22, %s23
    %p37 = scmp.eq.s32.totalorder %s15, 1
    %p38 = por %p36, %p37
    %p40 = scmp.ne.s32.totalorder %s23, %s39
    %p41 = scmp.eq.s32.totalorder %s15, 0
    %p42 = por %p40, %p41
    %s43 = ssub.s32 %s9, %s16
    %p44 = scmp.eq.s32.totalorder %s43, 0
    %s46 = sadd.s32 %s45, 1
    %s47 = scalar_select %p44, %s45, %s46
    %p50 = pneg %p44
    %p51 = scmp.eq.s32.totalorder %s9, 1
    %p52 = por %p50, %p51
    %p53 = scmp.ne.s32.totalorder %s45, %s48
    %p54 = scmp.eq.s32.totalorder %s9, 0
    %p55 = por %p53, %p54
    %p56 = scmp.ne.s32.totalorder %s45, %s48
    %p57 = scmp.eq.s32.totalorder %s14, 1
    %p58 = por %p56, %p57
    %p59 = scmp.ne.s32.totalorder %s48, %s49
    %p60 = scmp.eq.s32.totalorder %s14, 0
    %p61 = por %p59, %p60
    %p62 = scmp.ne.s32.totalorder %s48, %s49
    %p63 = scmp.eq.s32.totalorder %s15, 1
    %p64 = por %p62, %p63
    %p66 = scmp.ne.s32.totalorder %s49, %s65
    %p67 = scmp.eq.s32.totalorder %s15, 0
    %p68 = por %p66, %p67
    %s69 = ssub.s32 %s9, %s16
    %p70 = scmp.eq.s32.totalorder %s69, 0
    %s72 = sadd.s32 %s71, 1
    %s73 = scalar_select %p70, %s71, %s72
    %p76 = pneg %p70
    %p77 = scmp.eq.s32.totalorder %s9, 1
    %p78 = por %p76, %p77
    %p79 = scmp.ne.s32.totalorder %s71, %s74
    %p80 = scmp.eq.s32.totalorder %s9, 0
    %p81 = por %p79, %p80
    %p82 = scmp.ne.s32.totalorder %s71, %s74
    %p83 = scmp.eq.s32.totalorder %s14, 1
    %p84 = por %p82, %p83
    %p85 = scmp.ne.s32.totalorder %s74, %s75
    %p86 = scmp.eq.s32.totalorder %s14, 0
    %p87 = por %p85, %p86
    %p88 = scmp.ne.s32.totalorder %s74, %s75
    %p89 = scmp.eq.s32.totalorder %s15, 1
    %p90 = por %p88, %p89
    %p92 = scmp.ne.s32.totalorder %s75, %s91
    %p93 = scmp.eq.s32.totalorder %s15, 0
    %p94 = por %p92, %p93
    %s95 = ssub.s32 %s9, %s16
    %p96 = scmp.eq.s32.totalorder %s95, 0
    %s98 = sadd.s32 %s97, 1
    %s99 = scalar_select %p96, %s97, %s98
    %p102 = pneg %p96
    %p103 = scmp.eq.s32.totalorder %s9, 1
    %p104 = por %p102, %p103
    %p105 = scmp.ne.s32.totalorder %s97, %s100
    %p106 = scmp.eq.s32.totalorder %s9, 0
    %p107 = por %p105, %p106
    %p108 = scmp.ne.s32.totalorder %s97, %s100
    %p109 = scmp.eq.s32.totalorder %s14, 1
    %p110 = por %p108, %p109
    %p111 = scmp.ne.s32.totalorder %s100, %s101
    %p112 = scmp.eq.s32.totalorder %s14, 0
    %p113 = por %p111, %p112
    %p114 = scmp.ne.s32.totalorder %s100, %s101
    %p115 = scmp.eq.s32.totalorder %s15, 1
    %p116 = por %p114, %p115
    %p118 = scmp.ne.s32.totalorder %s101, %s117
    %p119 = scmp.eq.s32.totalorder %s15, 0
    %p120 = por %p118, %p119
    %p121 = scmp.le.s32.totalorder 1, %s9
    %p122 = scmp.lt.s32.totalorder %s9, 3
    %p123 = pnand %p121, %p122
    %p124 = pneg %p123
    // Predicated region
    $region9: #{_lambda_.8} parent=5 // pred_check
      _
    $region10: #{_lambda_.8} parent=5 // pred_check_branch
      %126 = sbr.rel (%p123) target = $region12
    $region11: #{_lambda_.8} parent=5 // pred_region
      %s127 = ssub.s32 %s9, 1
    $region12: #{_lambda_.8} parent=5 // pred_fallthru
      _
    %p128 = scmp.lt.s32.totalorder %s9, 2
    // Predicated region
    $region13: #{_lambda_.8} parent=5 // pred_check
      %p129 = pneg %p128
    $region14: #{_lambda_.8} parent=5 // pred_check_branch
      %131 = sbr.rel (%p129) target = $region16
    $region15: #{_lambda_.8} parent=5 // pred_region
      // Predicated region
      $region17: #{_lambda_.8} parent=15 // pred_check
        %p132 = pneg %p29
      $region18: #{_lambda_.8} parent=15 // pred_check_branch
        %134 = sbr.rel (%p132) target = $region20
      $region19: #{_lambda_.8} parent=15 // pred_region
        %p135 = scmp.lt.s32.totalorder %s9, 1
        %s136 = scalar_select %p135, %s9, 1
        %s137 = smul.addr %s136, 16
        %s138 = smul.addr %s137, 8
        %s139 = scalar_lea.vmem %s0, %s138
      $region20: #{_lambda_.8} parent=15 // pred_fallthru
        _
      // Predicated region
      $region21: #{_lambda_.8} parent=15 // pred_check
        %p140 = pneg %p55
      $region22: #{_lambda_.8} parent=15 // pred_check_branch
        %142 = sbr.rel (%p140) target = $region24
      $region23: #{_lambda_.8} parent=15 // pred_region
        %p143 = scmp.lt.s32.totalorder %s9, 1
        %s144 = scalar_select %p143, %s9, 1
        %s145 = smul.addr %s144, 16
        %s146 = smul.addr %s145, 8
        %s147 = scalar_lea.vmem %s1, %s146
      $region24: #{_lambda_.8} parent=15 // pred_fallthru
        _
      // Predicated region
      $region25: #{_lambda_.8} parent=15 // pred_check
        %p148 = pneg %p81
      $region26: #{_lambda_.8} parent=15 // pred_check_branch
        %150 = sbr.rel (%p148) target = $region28
      $region27: #{_lambda_.8} parent=15 // pred_region
        %p151 = scmp.lt.s32.totalorder %s9, 1
        %s152 = scalar_select %p151, %s9, 1
        %s153 = smul.addr %s152, 16
        %s154 = smul.addr %s153, 8
        %s155 = scalar_lea.vmem %s2, %s154
      $region28: #{_lambda_.8} parent=15 // pred_fallthru
        _
    $region16: #{_lambda_.8} parent=5 // pred_fallthru
      _
    %p156 = scmp.le.s32.totalorder 1, %s9
    %p157 = scmp.lt.s32.totalorder %s9, 3
    %p158 = pnand %p156, %p157
    %p159 = pneg %p158
    // Predicated region
    $region29: #{_lambda_.8} parent=5 // pred_check
      _
    $region30: #{_lambda_.8} parent=5 // pred_check_branch
      %161 = sbr.rel (%p158) target = $region32
    $region31: #{_lambda_.8} parent=5 // pred_region
      %s162 = ssub.s32 %s9, 1
      %p163 = scmp.lt.s32.totalorder %s14, 1
      %s164 = scalar_select %p163, %s14, 1
      %s165 = smul.addr %s164, 16
      %s166 = smul.addr %s165, 8
      %s167 = scalar_lea.vmem %s0, %s166
      %p168 = pneg %p35
      %p169 = pneg %p32
      %p170 = scmp.lt.s32.totalorder %s14, 1
      %s171 = scalar_select %p170, %s14, 1
      %s172 = smul.addr %s171, 16
      %s173 = smul.addr %s172, 8
      %s174 = scalar_lea.vmem %s1, %s173
      %p175 = pneg %p61
      %p176 = pneg %p58
      %p177 = scmp.lt.s32.totalorder %s14, 1
      %s178 = scalar_select %p177, %s14, 1
      %s179 = smul.addr %s178, 16
      %s180 = smul.addr %s179, 8
      %s181 = scalar_lea.vmem %s2, %s180
      %p182 = pneg %p87
      %p183 = pneg %p84
      %p184 = pneg %p113
      %p185 = pneg %p110
      %p186 = scmp.lt.s32.totalorder %s14, 1
      %s187 = scalar_select %p186, %s14, 1
      %s188 = smul.addr %s187, 16
      %s189 = smul.addr %s188, 8
      %s190 = scalar_lea.vmem %s3, %s189
      %p191 = scmp.lt.s32.totalorder %s14, 1
      %s192 = scalar_select %p191, %s14, 1
      %s193 = smul.addr %s192, 16
      %s194 = smul.addr %s193, 8
      %s195 = scalar_lea.vmem %s0, %s194
      %p196 = scmp.lt.s32.totalorder %s14, 1
      %s197 = scalar_select %p196, %s14, 1
      %s198 = smul.addr %s197, 16
      %s199 = smul.addr %s198, 8
      %s200 = scalar_lea.vmem %s1, %s199
      %p201 = scmp.lt.s32.totalorder %s14, 1
      %s202 = scalar_select %p201, %s14, 1
      %s203 = smul.addr %s202, 16
      %s204 = smul.addr %s203, 8
      %s205 = scalar_lea.vmem %s2, %s204
      %p206 = scmp.lt.s32.totalorder %s14, 1
      %s207 = scalar_select %p206, %s14, 1
      %s208 = smul.addr %s207, 16
      %s209 = smul.addr %s208, 8
      %s210 = scalar_lea.vmem %s3, %s209
      %v212 = vld [vmem:[%s195] sm:$0xff]
      %v213 = vld [vmem:[%s195 + $0x8] sm:$0xff]
      %v214 = vld [vmem:[%s195 + $0x10] sm:$0xff]
      %v215 = vld [vmem:[%s195 + $0x18] sm:$0xff]
      %v216 = vld [vmem:[%s195 + $0x20] sm:$0xff]
      %v217 = vld [vmem:[%s195 + $0x28] sm:$0xff]
      %v218 = vld [vmem:[%s195 + $0x30] sm:$0xff]
      %v219 = vld [vmem:[%s195 + $0x38] sm:$0xff]
      %v220 = vld [vmem:[%s195 + $0x40] sm:$0xff]
      %v221 = vld [vmem:[%s195 + $0x48] sm:$0xff]
      %v222 = vld [vmem:[%s195 + $0x50] sm:$0xff]
      %v223 = vld [vmem:[%s195 + $0x58] sm:$0xff]
      %v224 = vld [vmem:[%s195 + $0x60] sm:$0xff]
      %v225 = vld [vmem:[%s195 + $0x68] sm:$0xff]
      %v226 = vld [vmem:[%s195 + $0x70] sm:$0xff]
      %v227 = vld [vmem:[%s195 + $0x78] sm:$0xff]
      %v228 = vpack.c.bf16 %v213, %v212
      %v229 = vpack.c.bf16 %v215, %v214
      %v230 = vpack.c.bf16 %v217, %v216
      %v231 = vpack.c.bf16 %v219, %v218
      %v232 = vpack.c.bf16 %v221, %v220
      %v233 = vpack.c.bf16 %v223, %v222
      %v234 = vpack.c.bf16 %v225, %v224
      %v235 = vpack.c.bf16 %v227, %v226
      %v236 = vld [vmem:[%s200] sm:$0xff]
      %v237 = vld [vmem:[%s200 + $0x8] sm:$0xff]
      %v238 = vld [vmem:[%s200 + $0x10] sm:$0xff]
      %v239 = vld [vmem:[%s200 + $0x18] sm:$0xff]
      %v240 = vld [vmem:[%s200 + $0x20] sm:$0xff]
      %v241 = vld [vmem:[%s200 + $0x28] sm:$0xff]
      %v242 = vld [vmem:[%s200 + $0x30] sm:$0xff]
      %v243 = vld [vmem:[%s200 + $0x38] sm:$0xff]
      %v244 = vld [vmem:[%s200 + $0x40] sm:$0xff]
      %v245 = vld [vmem:[%s200 + $0x48] sm:$0xff]
      %v246 = vld [vmem:[%s200 + $0x50] sm:$0xff]
      %v247 = vld [vmem:[%s200 + $0x58] sm:$0xff]
      %v248 = vld [vmem:[%s200 + $0x60] sm:$0xff]
      %v249 = vld [vmem:[%s200 + $0x68] sm:$0xff]
      %v250 = vld [vmem:[%s200 + $0x70] sm:$0xff]
      %v251 = vld [vmem:[%s200 + $0x78] sm:$0xff]
      %v252 = vpack.c.bf16 %v237, %v236
      %v253 = vpack.c.bf16 %v239, %v238
      %v254 = vpack.c.bf16 %v241, %v240
      %v255 = vpack.c.bf16 %v243, %v242
      %v256 = vpack.c.bf16 %v245, %v244
      %v257 = vpack.c.bf16 %v247, %v246
      %v258 = vpack.c.bf16 %v249, %v248
      %v259 = vpack.c.bf16 %v251, %v250
      %v260 = vld [vmem:[%s205] sm:$0xff]
      %v261 = vld [vmem:[%s205 + $0x8] sm:$0xff]
      %v262 = vld [vmem:[%s205 + $0x10] sm:$0xff]
      %v263 = vld [vmem:[%s205 + $0x18] sm:$0xff]
      %v264 = vld [vmem:[%s205 + $0x20] sm:$0xff]
      %v265 = vld [vmem:[%s205 + $0x28] sm:$0xff]
      %v266 = vld [vmem:[%s205 + $0x30] sm:$0xff]
      %v267 = vld [vmem:[%s205 + $0x38] sm:$0xff]
      %v268 = vld [vmem:[%s205 + $0x40] sm:$0xff]
      %v269 = vld [vmem:[%s205 + $0x48] sm:$0xff]
      %v270 = vld [vmem:[%s205 + $0x50] sm:$0xff]
      %v271 = vld [vmem:[%s205 + $0x58] sm:$0xff]
      %v272 = vld [vmem:[%s205 + $0x60] sm:$0xff]
      %v273 = vld [vmem:[%s205 + $0x68] sm:$0xff]
      %v274 = vld [vmem:[%s205 + $0x70] sm:$0xff]
      %v275 = vld [vmem:[%s205 + $0x78] sm:$0xff]
      %v276 = vpack.c.bf16 %v261, %v260
      %v277 = vpack.c.bf16 %v263, %v262
      %v278 = vpack.c.bf16 %v265, %v264
      %v279 = vpack.c.bf16 %v267, %v266
      %v280 = vpack.c.bf16 %v269, %v268
      %v281 = vpack.c.bf16 %v271, %v270
      %v282 = vpack.c.bf16 %v273, %v272
      %v283 = vpack.c.bf16 %v275, %v274
      %vm284 = vcmask 523264
      %v286 = vsel %vm284, %v228, 0
      %v289 = vsel %vm284, %v229, 0
      %v292 = vsel %vm284, %v230, 0
      %v295 = vsel %vm284, %v231, 0
      %v298 = vsel %vm284, %v232, 0
      %v301 = vsel %vm284, %v233, 0
      %v304 = vsel %vm284, %v234, 0
      %v307 = vsel %vm284, %v235, 0
      %v310 = vsel %vm284, %v252, 0
      %v313 = vsel %vm284, %v253, 0
      %v316 = vsel %vm284, %v254, 0
      %v319 = vsel %vm284, %v255, 0
      %v322 = vsel %vm284, %v256, 0
      %v325 = vsel %vm284, %v257, 0
      %v328 = vsel %vm284, %v258, 0
      %v331 = vsel %vm284, %v259, 0
      %333 = vmatprep.subr.bf16.mxu0 0
      %334 = vmatpush1.bf16.xpose.msra.mxu0 %v331
      %335 = vmatprep.subr.bf16.mxu0 0
      %336 = vmatpush1.bf16.xpose.msra.mxu0 %v328
      %337 = vmatprep.subr.bf16.mxu0 0
      %338 = vmatpush1.bf16.xpose.msra.mxu0 %v325
      %339 = vmatprep.subr.bf16.mxu0 0
      %340 = vmatpush1.bf16.xpose.msra.mxu0 %v322
      %341 = vmatprep.subr.bf16.mxu0 0
      %342 = vmatpush1.bf16.xpose.msra.mxu0 %v319
      %343 = vmatprep.subr.bf16.mxu0 0
      %344 = vmatpush1.bf16.xpose.msra.mxu0 %v316
      %345 = vmatprep.subr.bf16.mxu0 0
      %346 = vmatpush1.bf16.xpose.msra.mxu0 %v313
      %347 = vmatprep.subr.bf16.mxu0 0
      %348 = vmatpush1.bf16.xpose.msra.mxu0 %v310
      %349 = vmatprep.subr.bf16.mxu0 0
      %350 = vmatpush2.bf16.xpose.msra.mxu0 0
      %351 = vmatprep.subr.bf16.mxu0 0
      %352 = vmatpush2.bf16.xpose.msra.mxu0 0
      %353 = vmatprep.subr.bf16.mxu0 0
      %354 = vmatpush2.bf16.xpose.msra.mxu0 0
      %355 = vmatprep.subr.bf16.mxu0 0
      %356 = vmatpush2.bf16.xpose.msra.mxu0 0
      %357 = vmatprep.subr.bf16.mxu0 0
      %358 = vmatpush2.bf16.xpose.msra.mxu0 0
      %359 = vmatprep.subr.bf16.mxu0 0
      %360 = vmatpush2.bf16.xpose.msra.mxu0 0
      %361 = vmatprep.subr.bf16.mxu0 0
      %362 = vmatpush2.bf16.xpose.msra.mxu0 0
      %363 = vmatprep.subr.bf16.mxu0 0
      %364 = vmatpush2.bf16.xpose.msra.mxu0 0
      %365 = vmatprep.mubr.bf16.mxu0 0
      %366 = vmatmul.mubr.bf16.gmra.mxu0 %v286
      %v367 = vpop.f32.mrf.mxu0
      %v368 = vadd.f32 0.0, %v367
      %v369 = vpop.f32.mrf.mxu0
      %v370 = vpop.f32.mrf.mxu0
      %v371 = vadd.f32 0.0, %v370
      %v372 = vpop.f32.mrf.mxu0
      %373 = vmatprep.mubr.bf16.mxu0 0
      %374 = vmatmul.mubr.bf16.gmra.mxu0 %v289
      %v375 = vpop.f32.mrf.mxu0
      %v376 = vadd.f32 0.0, %v375
      %v377 = vpop.f32.mrf.mxu0
      %v378 = vpop.f32.mrf.mxu0
      %v379 = vadd.f32 0.0, %v378
      %v380 = vpop.f32.mrf.mxu0
      %381 = vmatprep.mubr.bf16.mxu0 0
      %382 = vmatmul.mubr.bf16.gmra.mxu0 %v292
      %v383 = vpop.f32.mrf.mxu0
      %v384 = vadd.f32 0.0, %v383
      %v385 = vpop.f32.mrf.mxu0
      %v386 = vpop.f32.mrf.mxu0
      %v387 = vadd.f32 0.0, %v386
      %v388 = vpop.f32.mrf.mxu0
      %389 = vmatprep.mubr.bf16.mxu0 0
      %390 = vmatmul.mubr.bf16.gmra.mxu0 %v295
      %v391 = vpop.f32.mrf.mxu0
      %v392 = vadd.f32 0.0, %v391
      %v393 = vpop.f32.mrf.mxu0
      %v394 = vpop.f32.mrf.mxu0
      %v395 = vadd.f32 0.0, %v394
      %v396 = vpop.f32.mrf.mxu0
      %397 = vmatprep.mubr.bf16.mxu0 0
      %398 = vmatmul.mubr.bf16.gmra.mxu0 %v298
      %v399 = vpop.f32.mrf.mxu0
      %v400 = vadd.f32 0.0, %v399
      %v401 = vpop.f32.mrf.mxu0
      %v402 = vpop.f32.mrf.mxu0
      %v403 = vadd.f32 0.0, %v402
      %v404 = vpop.f32.mrf.mxu0
      %405 = vmatprep.mubr.bf16.mxu0 0
      %406 = vmatmul.mubr.bf16.gmra.mxu0 %v301
      %v407 = vpop.f32.mrf.mxu0
      %v408 = vadd.f32 0.0, %v407
      %v409 = vpop.f32.mrf.mxu0
      %v410 = vpop.f32.mrf.mxu0
      %v411 = vadd.f32 0.0, %v410
      %v412 = vpop.f32.mrf.mxu0
      %413 = vmatprep.mubr.bf16.mxu0 0
      %414 = vmatmul.mubr.bf16.gmra.mxu0 %v304
      %v415 = vpop.f32.mrf.mxu0
      %v416 = vadd.f32 0.0, %v415
      %v417 = vpop.f32.mrf.mxu0
      %v418 = vpop.f32.mrf.mxu0
      %v419 = vadd.f32 0.0, %v418
      %v420 = vpop.f32.mrf.mxu0
      %421 = vmatprep.mubr.bf16.mxu0 0
      %422 = vmatmul.mubr.bf16.gmra.mxu0 %v307
      %v423 = vpop.f32.mrf.mxu0
      %v424 = vadd.f32 0.0, %v423
      %v425 = vpop.f32.mrf.mxu0
      %v426 = vpop.f32.mrf.mxu0
      %v427 = vadd.f32 0.0, %v426
      %v428 = vpop.f32.mrf.mxu0
      %429 = vdwg.mxu0
      %v430 = vmul.f32 %v368, 0.125
      %v431 = vmul.f32 %v371, 0.125
      %v432 = vmul.f32 %v376, 0.125
      %v433 = vmul.f32 %v379, 0.125
      %v434 = vmul.f32 %v384, 0.125
      %v435 = vmul.f32 %v387, 0.125
      %v436 = vmul.f32 %v392, 0.125
      %v437 = vmul.f32 %v395, 0.125
      %v438 = vmul.f32 %v400, 0.125
      %v439 = vmul.f32 %v403, 0.125
      %v440 = vmul.f32 %v408, 0.125
      %v441 = vmul.f32 %v411, 0.125
      %v442 = vmul.f32 %v416, 0.125
      %v443 = vmul.f32 %v419, 0.125
      %v444 = vmul.f32 %v424, 0.125
      %v445 = vmul.f32 %v427, 0.125
      %446 = vmax.xlane.f32.xlu0 %v430
      %v447 = vpop.xlane.xlu0 %446
      %448 = vmax.xlane.f32.xlu0 %v431
      %v449 = vpop.xlane.xlu0 %448
      %450 = vmax.xlane.f32.xlu0 %v432
      %v451 = vpop.xlane.xlu0 %450
      %452 = vmax.xlane.f32.xlu0 %v433
      %v453 = vpop.xlane.xlu0 %452
      %454 = vmax.xlane.f32.xlu0 %v434
      %v455 = vpop.xlane.xlu0 %454
      %456 = vmax.xlane.f32.xlu0 %v435
      %v457 = vpop.xlane.xlu0 %456
      %458 = vmax.xlane.f32.xlu0 %v436
      %v459 = vpop.xlane.xlu0 %458
      %460 = vmax.xlane.f32.xlu0 %v437
      %v461 = vpop.xlane.xlu0 %460
      %462 = vmax.xlane.f32.xlu0 %v438
      %v463 = vpop.xlane.xlu0 %462
      %464 = vmax.xlane.f32.xlu0 %v439
      %v465 = vpop.xlane.xlu0 %464
      %466 = vmax.xlane.f32.xlu0 %v440
      %v467 = vpop.xlane.xlu0 %466
      %468 = vmax.xlane.f32.xlu0 %v441
      %v469 = vpop.xlane.xlu0 %468
      %470 = vmax.xlane.f32.xlu0 %v442
      %v471 = vpop.xlane.xlu0 %470
      %472 = vmax.xlane.f32.xlu0 %v443
      %v473 = vpop.xlane.xlu0 %472
      %474 = vmax.xlane.f32.xlu0 %v444
      %v475 = vpop.xlane.xlu0 %474
      %476 = vmax.xlane.f32.xlu0 %v445
      %v477 = vpop.xlane.xlu0 %476
      %v478 = vsub.f32 %v430, %v447
      %v479 = vsub.f32 %v431, %v449
      %v480 = vsub.f32 %v432, %v451
      %v481 = vsub.f32 %v433, %v453
      %v482 = vsub.f32 %v434, %v455
      %v483 = vsub.f32 %v435, %v457
      %v484 = vsub.f32 %v436, %v459
      %v485 = vsub.f32 %v437, %v461
      %v486 = vsub.f32 %v438, %v463
      %v487 = vsub.f32 %v439, %v465
      %v488 = vsub.f32 %v440, %v467
      %v489 = vsub.f32 %v441, %v469
      %v490 = vsub.f32 %v442, %v471
      %v491 = vsub.f32 %v443, %v473
      %v492 = vsub.f32 %v444, %v475
      %v493 = vsub.f32 %v445, %v477
      %v494 = vmul.f32 %v478, 1.442695
      %v495 = vpow.pop %v494
      %v496 = vmul.f32 %v479, 1.442695
      %v497 = vpow.pop %v496
      %v498 = vmul.f32 %v480, 1.442695
      %v499 = vpow.pop %v498
      %v500 = vmul.f32 %v481, 1.442695
      %v501 = vpow.pop %v500
      %v502 = vmul.f32 %v482, 1.442695
      %v503 = vpow.pop %v502
      %v504 = vmul.f32 %v483, 1.442695
      %v505 = vpow.pop %v504
      %v506 = vmul.f32 %v484, 1.442695
      %v507 = vpow.pop %v506
      %v508 = vmul.f32 %v485, 1.442695
      %v509 = vpow.pop %v508
      %v510 = vmul.f32 %v486, 1.442695
      %v511 = vpow.pop %v510
      %v512 = vmul.f32 %v487, 1.442695
      %v513 = vpow.pop %v512
      %v514 = vmul.f32 %v488, 1.442695
      %v515 = vpow.pop %v514
      %v516 = vmul.f32 %v489, 1.442695
      %v517 = vpow.pop %v516
      %v518 = vmul.f32 %v490, 1.442695
      %v519 = vpow.pop %v518
      %v520 = vmul.f32 %v491, 1.442695
      %v521 = vpow.pop %v520
      %v522 = vmul.f32 %v492, 1.442695
      %v523 = vpow.pop %v522
      %v524 = vmul.f32 %v493, 1.442695
      %v525 = vpow.pop %v524
      %526 = vadd.xlane.f32.xlu0 %v495
      %v527 = vpop.xlane.xlu0 %526
      %528 = vadd.xlane.f32.xlu0 %v497
      %v529 = vpop.xlane.xlu0 %528
      %530 = vadd.xlane.f32.xlu0 %v499
      %v531 = vpop.xlane.xlu0 %530
      %532 = vadd.xlane.f32.xlu0 %v501
      %v533 = vpop.xlane.xlu0 %532
      %534 = vadd.xlane.f32.xlu0 %v503
      %v535 = vpop.xlane.xlu0 %534
      %536 = vadd.xlane.f32.xlu0 %v505
      %v537 = vpop.xlane.xlu0 %536
      %538 = vadd.xlane.f32.xlu0 %v507
      %v539 = vpop.xlane.xlu0 %538
      %540 = vadd.xlane.f32.xlu0 %v509
      %v541 = vpop.xlane.xlu0 %540
      %542 = vadd.xlane.f32.xlu0 %v511
      %v543 = vpop.xlane.xlu0 %542
      %544 = vadd.xlane.f32.xlu0 %v513
      %v545 = vpop.xlane.xlu0 %544
      %546 = vadd.xlane.f32.xlu0 %v515
      %v547 = vpop.xlane.xlu0 %546
      %548 = vadd.xlane.f32.xlu0 %v517
      %v549 = vpop.xlane.xlu0 %548
      %550 = vadd.xlane.f32.xlu0 %v519
      %v551 = vpop.xlane.xlu0 %550
      %552 = vadd.xlane.f32.xlu0 %v521
      %v553 = vpop.xlane.xlu0 %552
      %554 = vadd.xlane.f32.xlu0 %v523
      %v555 = vpop.xlane.xlu0 %554
      %556 = vadd.xlane.f32.xlu0 %v525
      %v557 = vpop.xlane.xlu0 %556
      %v558 = vrcp.pop %v527
      %v559 = vrcp.pop %v529
      %v560 = vrcp.pop %v531
      %v561 = vrcp.pop %v533
      %v562 = vrcp.pop %v535
      %v563 = vrcp.pop %v537
      %v564 = vrcp.pop %v539
      %v565 = vrcp.pop %v541
      %v566 = vrcp.pop %v543
      %v567 = vrcp.pop %v545
      %v568 = vrcp.pop %v547
      %v569 = vrcp.pop %v549
      %v570 = vrcp.pop %v551
      %v571 = vrcp.pop %v553
      %v572 = vrcp.pop %v555
      %v573 = vrcp.pop %v557
      %v574 = vmul.f32 %v495, %v558
      %v575 = vmul.f32 %v497, %v559
      %v576 = vmul.f32 %v499, %v560
      %v577 = vmul.f32 %v501, %v561
      %v578 = vmul.f32 %v503, %v562
      %v579 = vmul.f32 %v505, %v563
      %v580 = vmul.f32 %v507, %v564
      %v581 = vmul.f32 %v509, %v565
      %v582 = vmul.f32 %v511, %v566
      %v583 = vmul.f32 %v513, %v567
      %v584 = vmul.f32 %v515, %v568
      %v585 = vmul.f32 %v517, %v569
      %v586 = vmul.f32 %v519, %v570
      %v587 = vmul.f32 %v521, %v571
      %v588 = vmul.f32 %v523, %v572
      %v589 = vmul.f32 %v525, %v573
      %v590 = vpack.c.bf16 %v575, %v574
      %v591 = vpack.c.bf16 %v577, %v576
      %v592 = vpack.c.bf16 %v579, %v578
      %v593 = vpack.c.bf16 %v581, %v580
      %v594 = vpack.c.bf16 %v583, %v582
      %v595 = vpack.c.bf16 %v585, %v584
      %v596 = vpack.c.bf16 %v587, %v586
      %v597 = vpack.c.bf16 %v589, %v588
      %598 = vmatprep.subr.bf16.mxu0 0
      %599 = vmatpush1.bf16.msra.mxu0 %v283
      %600 = vmatprep.subr.bf16.mxu0 0
      %601 = vmatpush1.bf16.msra.mxu0 %v282
      %602 = vmatprep.subr.bf16.mxu0 0
      %603 = vmatpush1.bf16.msra.mxu0 %v281
      %604 = vmatprep.subr.bf16.mxu0 0
      %605 = vmatpush1.bf16.msra.mxu0 %v280
      %606 = vmatprep.subr.bf16.mxu0 0
      %607 = vmatpush1.bf16.msra.mxu0 %v279
      %608 = vmatprep.subr.bf16.mxu0 0
      %609 = vmatpush1.bf16.msra.mxu0 %v278
      %610 = vmatprep.subr.bf16.mxu0 0
      %611 = vmatpush1.bf16.msra.mxu0 %v277
      %612 = vmatprep.subr.bf16.mxu0 0
      %613 = vmatpush1.bf16.msra.mxu0 %v276
      %614 = vmatprep.subr.bf16.mxu0 0
      %615 = vmatpush2.bf16.msra.mxu0 0
      %616 = vmatprep.subr.bf16.mxu0 0
      %617 = vmatpush2.bf16.msra.mxu0 0
      %618 = vmatprep.subr.bf16.mxu0 0
      %619 = vmatpush2.bf16.msra.mxu0 0
      %620 = vmatprep.subr.bf16.mxu0 0
      %621 = vmatpush2.bf16.msra.mxu0 0
      %622 = vmatprep.subr.bf16.mxu0 0
      %623 = vmatpush2.bf16.msra.mxu0 0
      %624 = vmatprep.subr.bf16.mxu0 0
      %625 = vmatpush2.bf16.msra.mxu0 0
      %626 = vmatprep.subr.bf16.mxu0 0
      %627 = vmatpush2.bf16.msra.mxu0 0
      %628 = vmatprep.subr.bf16.mxu0 0
      %629 = vmatpush2.bf16.msra.mxu0 0
      %630 = vmatprep.mubr.bf16.mxu0 0
      %631 = vmatmul.mubr.bf16.gmra.mxu0 %v590
      %v632 = vpop.f32.mrf.mxu0
      %v633 = vadd.f32 0.0, %v632
      %v634 = vpop.f32.mrf.mxu0
      %v635 = vpop.f32.mrf.mxu0
      %v636 = vadd.f32 0.0, %v635
      %v637 = vpop.f32.mrf.mxu0
      %638 = vmatprep.mubr.bf16.mxu0 0
      %639 = vmatmul.mubr.bf16.gmra.mxu0 %v591
      %v640 = vpop.f32.mrf.mxu0
      %v641 = vadd.f32 0.0, %v640
      %v642 = vpop.f32.mrf.mxu0
      %v643 = vpop.f32.mrf.mxu0
      %v644 = vadd.f32 0.0, %v643
      %v645 = vpop.f32.mrf.mxu0
      %646 = vmatprep.mubr.bf16.mxu0 0
      %647 = vmatmul.mubr.bf16.gmra.mxu0 %v592
      %v648 = vpop.f32.mrf.mxu0
      %v649 = vadd.f32 0.0, %v648
      %v650 = vpop.f32.mrf.mxu0
      %v651 = vpop.f32.mrf.mxu0
      %v652 = vadd.f32 0.0, %v651
      %v653 = vpop.f32.mrf.mxu0
      %654 = vmatprep.mubr.bf16.mxu0 0
      %655 = vmatmul.mubr.bf16.gmra.mxu0 %v593
      %v656 = vpop.f32.mrf.mxu0
      %v657 = vadd.f32 0.0, %v656
      %v658 = vpop.f32.mrf.mxu0
      %v659 = vpop.f32.mrf.mxu0
      %v660 = vadd.f32 0.0, %v659
      %v661 = vpop.f32.mrf.mxu0
      %662 = vmatprep.mubr.bf16.mxu0 0
      %663 = vmatmul.mubr.bf16.gmra.mxu0 %v594
      %v664 = vpop.f32.mrf.mxu0
      %v665 = vadd.f32 0.0, %v664
      %v666 = vpop.f32.mrf.mxu0
      %v667 = vpop.f32.mrf.mxu0
      %v668 = vadd.f32 0.0, %v667
      %v669 = vpop.f32.mrf.mxu0
      %670 = vmatprep.mubr.bf16.mxu0 0
      %671 = vmatmul.mubr.bf16.gmra.mxu0 %v595
      %v672 = vpop.f32.mrf.mxu0
      %v673 = vadd.f32 0.0, %v672
      %v674 = vpop.f32.mrf.mxu0
      %v675 = vpop.f32.mrf.mxu0
      %v676 = vadd.f32 0.0, %v675
      %v677 = vpop.f32.mrf.mxu0
      %678 = vmatprep.mubr.bf16.mxu0 0
      %679 = vmatmul.mubr.bf16.gmra.mxu0 %v596
      %v680 = vpop.f32.mrf.mxu0
      %v681 = vadd.f32 0.0, %v680
      %v682 = vpop.f32.mrf.mxu0
      %v683 = vpop.f32.mrf.mxu0
      %v684 = vadd.f32 0.0, %v683
      %v685 = vpop.f32.mrf.mxu0
      %686 = vmatprep.mubr.bf16.mxu0 0
      %687 = vmatmul.mubr.bf16.gmra.mxu0 %v597
      %v688 = vpop.f32.mrf.mxu0
      %v689 = vadd.f32 0.0, %v688
      %v690 = vpop.f32.mrf.mxu0
      %v691 = vpop.f32.mrf.mxu0
      %v692 = vadd.f32 0.0, %v691
      %v693 = vpop.f32.mrf.mxu0
      %694 = vdwg.mxu0
      %695 = vst.msk [vmem:[%s210] sm:$0xff] %vm284, %v633
      %696 = vst.msk [vmem:[%s210 + $0x8] sm:$0xff] %vm284, %v636
      %697 = vst.msk [vmem:[%s210 + $0x10] sm:$0xff] %vm284, %v641
      %698 = vst.msk [vmem:[%s210 + $0x18] sm:$0xff] %vm284, %v644
      %699 = vst.msk [vmem:[%s210 + $0x20] sm:$0xff] %vm284, %v649
      %700 = vst.msk [vmem:[%s210 + $0x28] sm:$0xff] %vm284, %v652
      %701 = vst.msk [vmem:[%s210 + $0x30] sm:$0xff] %vm284, %v657
      %702 = vst.msk [vmem:[%s210 + $0x38] sm:$0xff] %vm284, %v660
      %703 = vst.msk [vmem:[%s210 + $0x40] sm:$0xff] %vm284, %v665
      %704 = vst.msk [vmem:[%s210 + $0x48] sm:$0xff] %vm284, %v668
      %705 = vst.msk [vmem:[%s210 + $0x50] sm:$0xff] %vm284, %v673
      %706 = vst.msk [vmem:[%s210 + $0x58] sm:$0xff] %vm284, %v676
      %707 = vst.msk [vmem:[%s210 + $0x60] sm:$0xff] %vm284, %v681
      %708 = vst.msk [vmem:[%s210 + $0x68] sm:$0xff] %vm284, %v684
      %709 = vst.msk [vmem:[%s210 + $0x70] sm:$0xff] %vm284, %v689
      %710 = vst.msk [vmem:[%s210 + $0x78] sm:$0xff] %vm284, %v692
      %p711 = scmp.lt.s32.totalorder %s14, 1
      %s712 = scalar_select %p711, %s14, 1
      %s713 = smul.addr %s712, 16
      %s714 = smul.addr %s713, 8
      %s715 = scalar_lea.vmem %s3, %s714
      // Predicated region
      $region33: #{_lambda_.8} parent=31 // pred_check
        %p716 = pneg %p110
      $region34: #{_lambda_.8} parent=31 // pred_check_branch
        %718 = sbr.rel (%p716) target = $region36
      $region35: #{_lambda_.8} parent=31 // pred_region
        _
      $region36: #{_lambda_.8} parent=31 // pred_fallthru
        _
    $region32: #{_lambda_.8} parent=5 // pred_fallthru
      _
    %p719 = scmp.le.s32.totalorder 2, %s9
    // Predicated region
    $region37: #{_lambda_.8} parent=5 // pred_check
      %p720 = pneg %p719
    $region38: #{_lambda_.8} parent=5 // pred_check_branch
      %722 = sbr.rel (%p720) target = $region40
    $region39: #{_lambda_.8} parent=5 // pred_region
      %s723 = ssub.s32 %s9, 2
      // Predicated region
      $region41: #{_lambda_.8} parent=39 // pred_check
        %p724 = pneg %p116
      $region42: #{_lambda_.8} parent=39 // pred_check_branch
        %726 = sbr.rel (%p724) target = $region44
      $region43: #{_lambda_.8} parent=39 // pred_region
        %p727 = scmp.lt.s32.totalorder %s15, 1
        %s728 = scalar_select %p727, %s15, 1
        %s729 = smul.addr %s728, 16
        %s730 = smul.addr %s729, 8
        %s731 = scalar_lea.vmem %s3, %s730
      $region44: #{_lambda_.8} parent=39 // pred_fallthru
        _
    $region40: #{_lambda_.8} parent=5 // pred_fallthru
      _
  $region6: #{_lambda_.8} parent=0 // loop_footer
    %s13 = sadd.s32 1, %s9
  $region7: #{_lambda_.8} parent=0 // loop_footer_branch
    %8 = sbr.rel target = $region3
  $region8: #{_lambda_.8} parent=0 // loop_exit
    _

// kernel: _lambda_.7
$region0: #{_lambda_.7}
  #allocation0 [shape = 'u32[]', space=smem, size = 0x4, offset = 0x4, fixed_abs, tag = 'smem constant byte address 0x4 - core index']
  #allocation1 [shape = 'u32[144,128]{1,0:T(1,128)}', space=vmem, size = 0x12000, scoped, tag = 'internal scratch']
  %s0 = inlined_call_operand.vmem [shape: f32[2,32,256], index: 0, kind: input, shape index: {}]
  %s1 = inlined_call_operand.vmem [shape: f32[2,32,256], index: 1, kind: input, shape index: {}]
  %s2 = inlined_call_operand.vmem [shape: f32[2,32,256], index: 2, kind: input, shape index: {}]
  %s3 = inlined_call_operand.vmem [shape: f32[2,32,256], index: 3, kind: output, shape index: {}]
  %s4 = sld [smem:[#allocation0]]
  $region45: #{_lambda_.7} parent=0
    _
  %s6 = ssub.s32 1, %s4
  %s7 = scalar_select 0, %s6, %s4
  loop: start=0, step=1, limit=4
  $region2: #{_lambda_.7} parent=0 // loop_pre_header
    _
  $region3: #{_lambda_.7} parent=0 // loop_header
    %s9 = sphi 0, %s13
    %p10 = scmp.ge.s32.totalorder %s9, 4
    %s19 = sphi 0, %s21
    %s22 = sphi 0, %s19
    %s23 = sphi 0, %s22
    %s39 = sphi 0, %s23
    %s45 = sphi 0, %s47
    %s48 = sphi 0, %s45
    %s49 = sphi 0, %s48
    %s65 = sphi 0, %s49
    %s71 = sphi 0, %s73
    %s74 = sphi 0, %s71
    %s75 = sphi 0, %s74
    %s91 = sphi 0, %s75
    %s97 = sphi 0, %s99
    %s100 = sphi 0, %s97
    %s101 = sphi 0, %s100
    %s117 = sphi 0, %s101
  $region4: #{_lambda_.7} parent=0 // loop_header_branch
    %12 = sbr.rel (%p10) target = $region8
  $region5: #{_lambda_.7} parent=0 // loop_body
    %s14 = ssub.s32 %s9, 1
    %s15 = ssub.s32 %s9, 2
    %s16 = sadd.s32 %s9, 1
    %s17 = ssub.s32 %s9, %s16
    %p18 = scmp.eq.s32.totalorder %s17, 0
    %s20 = sadd.s32 %s19, 1
    %s21 = scalar_select %p18, %s19, %s20
    %p24 = pneg %p18
    %p25 = scmp.eq.s32.totalorder %s9, 1
    %p26 = por %p24, %p25
    %p27 = scmp.ne.s32.totalorder %s19, %s22
    %p28 = scmp.eq.s32.totalorder %s9, 0
    %p29 = por %p27, %p28
    %p30 = scmp.ne.s32.totalorder %s19, %s22
    %p31 = scmp.eq.s32.totalorder %s14, 1
    %p32 = por %p30, %p31
    %p33 = scmp.ne.s32.totalorder %s22, %s23
    %p34 = scmp.eq.s32.totalorder %s14, 0
    %p35 = por %p33, %p34
    %p36 = scmp.ne.s32.totalorder %s22, %s23
    %p37 = scmp.eq.s32.totalorder %s15, 1
    %p38 = por %p36, %p37
    %p40 = scmp.ne.s32.totalorder %s23, %s39
    %p41 = scmp.eq.s32.totalorder %s15, 0
    %p42 = por %p40, %p41
    %s43 = ssub.s32 %s9, %s16
    %p44 = scmp.eq.s32.totalorder %s43, 0
    %s46 = sadd.s32 %s45, 1
    %s47 = scalar_select %p44, %s45, %s46
    %p50 = pneg %p44
    %p51 = scmp.eq.s32.totalorder %s9, 1
    %p52 = por %p50, %p51
    %p53 = scmp.ne.s32.totalorder %s45, %s48
    %p54 = scmp.eq.s32.totalorder %s9, 0
    %p55 = por %p53, %p54
    %p56 = scmp.ne.s32.totalorder %s45, %s48
    %p57 = scmp.eq.s32.totalorder %s14, 1
    %p58 = por %p56, %p57
    %p59 = scmp.ne.s32.totalorder %s48, %s49
    %p60 = scmp.eq.s32.totalorder %s14, 0
    %p61 = por %p59, %p60
    %p62 = scmp.ne.s32.totalorder %s48, %s49
    %p63 = scmp.eq.s32.totalorder %s15, 1
    %p64 = por %p62, %p63
    %p66 = scmp.ne.s32.totalorder %s49, %s65
    %p67 = scmp.eq.s32.totalorder %s15, 0
    %p68 = por %p66, %p67
    %s69 = ssub.s32 %s9, %s16
    %p70 = scmp.eq.s32.totalorder %s69, 0
    %s72 = sadd.s32 %s71, 1
    %s73 = scalar_select %p70, %s71, %s72
    %p76 = pneg %p70
    %p77 = scmp.eq.s32.totalorder %s9, 1
    %p78 = por %p76, %p77
    %p79 = scmp.ne.s32.totalorder %s71, %s74
    %p80 = scmp.eq.s32.totalorder %s9, 0
    %p81 = por %p79, %p80
    %p82 = scmp.ne.s32.totalorder %s71, %s74
    %p83 = scmp.eq.s32.totalorder %s14, 1
    %p84 = por %p82, %p83
    %p85 = scmp.ne.s32.totalorder %s74, %s75
    %p86 = scmp.eq.s32.totalorder %s14, 0
    %p87 = por %p85, %p86
    %p88 = scmp.ne.s32.totalorder %s74, %s75
    %p89 = scmp.eq.s32.totalorder %s15, 1
    %p90 = por %p88, %p89
    %p92 = scmp.ne.s32.totalorder %s75, %s91
    %p93 = scmp.eq.s32.totalorder %s15, 0
    %p94 = por %p92, %p93
    %s95 = ssub.s32 %s9, %s16
    %p96 = scmp.eq.s32.totalorder %s95, 0
    %s98 = sadd.s32 %s97, 1
    %s99 = scalar_select %p96, %s97, %s98
    %p102 = pneg %p96
    %p103 = scmp.eq.s32.totalorder %s9, 1
    %p104 = por %p102, %p103
    %p105 = scmp.ne.s32.totalorder %s97, %s100
    %p106 = scmp.eq.s32.totalorder %s9, 0
    %p107 = por %p105, %p106
    %p108 = scmp.ne.s32.totalorder %s97, %s100
    %p109 = scmp.eq.s32.totalorder %s14, 1
    %p110 = por %p108, %p109
    %p111 = scmp.ne.s32.totalorder %s100, %s101
    %p112 = scmp.eq.s32.totalorder %s14, 0
    %p113 = por %p111, %p112
    %p114 = scmp.ne.s32.totalorder %s100, %s101
    %p115 = scmp.eq.s32.totalorder %s15, 1
    %p116 = por %p114, %p115
    %p118 = scmp.ne.s32.totalorder %s101, %s117
    %p119 = scmp.eq.s32.totalorder %s15, 0
    %p120 = por %p118, %p119
    %p121 = scmp.le.s32.totalorder 1, %s9
    %p122 = scmp.lt.s32.totalorder %s9, 3
    %p123 = pnand %p121, %p122
    %p124 = pneg %p123
    // Predicated region
    $region9: #{_lambda_.7} parent=5 // pred_check
      _
    $region10: #{_lambda_.7} parent=5 // pred_check_branch
      %126 = sbr.rel (%p123) target = $region12
    $region11: #{_lambda_.7} parent=5 // pred_region
      %s127 = ssub.s32 %s9, 1
    $region12: #{_lambda_.7} parent=5 // pred_fallthru
      _
    %p128 = scmp.lt.s32.totalorder %s9, 2
    // Predicated region
    $region13: #{_lambda_.7} parent=5 // pred_check
      %p129 = pneg %p128
    $region14: #{_lambda_.7} parent=5 // pred_check_branch
      %131 = sbr.rel (%p129) target = $region16
    $region15: #{_lambda_.7} parent=5 // pred_region
      // Predicated region
      $region17: #{_lambda_.7} parent=15 // pred_check
        %p132 = pneg %p29
      $region18: #{_lambda_.7} parent=15 // pred_check_branch
        %134 = sbr.rel (%p132) target = $region20
      $region19: #{_lambda_.7} parent=15 // pred_region
        %p135 = scmp.lt.s32.totalorder %s9, 1
        %s136 = scalar_select %p135, %s9, 1
        %s137 = smul.addr %s136, 8
        %s138 = smul.addr %s137, 8
        %s139 = scalar_lea.vmem %s0, %s138
      $region20: #{_lambda_.7} parent=15 // pred_fallthru
        _
      // Predicated region
      $region21: #{_lambda_.7} parent=15 // pred_check
        %p140 = pneg %p55
      $region22: #{_lambda_.7} parent=15 // pred_check_branch
        %142 = sbr.rel (%p140) target = $region24
      $region23: #{_lambda_.7} parent=15 // pred_region
        %p143 = scmp.lt.s32.totalorder %s9, 1
        %s144 = scalar_select %p143, %s9, 1
        %s145 = smul.addr %s144, 8
        %s146 = smul.addr %s145, 8
        %s147 = scalar_lea.vmem %s1, %s146
      $region24: #{_lambda_.7} parent=15 // pred_fallthru
        _
      // Predicated region
      $region25: #{_lambda_.7} parent=15 // pred_check
        %p148 = pneg %p81
      $region26: #{_lambda_.7} parent=15 // pred_check_branch
        %150 = sbr.rel (%p148) target = $region28
      $region27: #{_lambda_.7} parent=15 // pred_region
        %p151 = scmp.lt.s32.totalorder %s9, 1
        %s152 = scalar_select %p151, %s9, 1
        %s153 = smul.addr %s152, 8
        %s154 = smul.addr %s153, 8
        %s155 = scalar_lea.vmem %s2, %s154
      $region28: #{_lambda_.7} parent=15 // pred_fallthru
        _
    $region16: #{_lambda_.7} parent=5 // pred_fallthru
      _
    %p156 = scmp.le.s32.totalorder 1, %s9
    %p157 = scmp.lt.s32.totalorder %s9, 3
    %p158 = pnand %p156, %p157
    %p159 = pneg %p158
    // Predicated region
    $region29: #{_lambda_.7} parent=5 // pred_check
      _
    $region30: #{_lambda_.7} parent=5 // pred_check_branch
      %161 = sbr.rel (%p158) target = $region32
    $region31: #{_lambda_.7} parent=5 // pred_region
      %s162 = ssub.s32 %s9, 1
      %p163 = scmp.lt.s32.totalorder %s14, 1
      %s164 = scalar_select %p163, %s14, 1
      %s165 = smul.addr %s164, 8
      %s166 = smul.addr %s165, 8
      %s167 = scalar_lea.vmem %s0, %s166
      %p168 = pneg %p35
      %p169 = pneg %p32
      %p170 = scmp.lt.s32.totalorder %s14, 1
      %s171 = scalar_select %p170, %s14, 1
      %s172 = smul.addr %s171, 8
      %s173 = smul.addr %s172, 8
      %s174 = scalar_lea.vmem %s1, %s173
      %p175 = pneg %p61
      %p176 = pneg %p58
      %p177 = scmp.lt.s32.totalorder %s14, 1
      %s178 = scalar_select %p177, %s14, 1
      %s179 = smul.addr %s178, 8
      %s180 = smul.addr %s179, 8
      %s181 = scalar_lea.vmem %s2, %s180
      %p182 = pneg %p87
      %p183 = pneg %p84
      %p184 = pneg %p113
      %p185 = pneg %p110
      %p186 = scmp.lt.s32.totalorder %s14, 1
      %s187 = scalar_select %p186, %s14, 1
      %s188 = smul.addr %s187, 8
      %s189 = smul.addr %s188, 8
      %s190 = scalar_lea.vmem %s3, %s189
      %p191 = scmp.lt.s32.totalorder %s14, 1
      %s192 = scalar_select %p191, %s14, 1
      %s193 = smul.addr %s192, 8
      %s194 = smul.addr %s193, 8
      %s195 = scalar_lea.vmem %s0, %s194
      %p196 = scmp.lt.s32.totalorder %s14, 1
      %s197 = scalar_select %p196, %s14, 1
      %s198 = smul.addr %s197, 8
      %s199 = smul.addr %s198, 8
      %s200 = scalar_lea.vmem %s1, %s199
      %p201 = scmp.lt.s32.totalorder %s14, 1
      %s202 = scalar_select %p201, %s14, 1
      %s203 = smul.addr %s202, 8
      %s204 = smul.addr %s203, 8
      %s205 = scalar_lea.vmem %s2, %s204
      %p206 = scmp.lt.s32.totalorder %s14, 1
      %s207 = scalar_select %p206, %s14, 1
      %s208 = smul.addr %s207, 8
      %s209 = smul.addr %s208, 8
      %s210 = scalar_lea.vmem %s3, %s209
      %v212 = vld [vmem:[%s195] sm:$0xff]
      %v213 = vld [vmem:[%s195 + $0x8] sm:$0xff]
      %v214 = vld [vmem:[%s195 + $0x10] sm:$0xff]
      %v215 = vld [vmem:[%s195 + $0x18] sm:$0xff]
      %v216 = vld [vmem:[%s195 + $0x20] sm:$0xff]
      %v217 = vld [vmem:[%s195 + $0x28] sm:$0xff]
      %v218 = vld [vmem:[%s195 + $0x30] sm:$0xff]
      %v219 = vld [vmem:[%s195 + $0x38] sm:$0xff]
      %v220 = vpack.c.bf16 %v214, %v212
      %v221 = vpack.c.bf16 %v215, %v213
      %v222 = vpack.c.bf16 %v218, %v216
      %v223 = vpack.c.bf16 %v219, %v217
      %v224 = vld [vmem:[%s200] sm:$0xff]
      %v225 = vld [vmem:[%s200 + $0x8] sm:$0xff]
      %v226 = vld [vmem:[%s200 + $0x10] sm:$0xff]
      %v227 = vld [vmem:[%s200 + $0x18] sm:$0xff]
      %v228 = vld [vmem:[%s200 + $0x20] sm:$0xff]
      %v229 = vld [vmem:[%s200 + $0x28] sm:$0xff]
      %v230 = vld [vmem:[%s200 + $0x30] sm:$0xff]
      %v231 = vld [vmem:[%s200 + $0x38] sm:$0xff]
      %v232 = vpack.c.bf16 %v226, %v224
      %v233 = vpack.c.bf16 %v227, %v225
      %v234 = vpack.c.bf16 %v230, %v228
      %v235 = vpack.c.bf16 %v231, %v229
      %v236 = vld [vmem:[%s205] sm:$0xff]
      %v237 = vld [vmem:[%s205 + $0x8] sm:$0xff]
      %v238 = vld [vmem:[%s205 + $0x10] sm:$0xff]
      %v239 = vld [vmem:[%s205 + $0x18] sm:$0xff]
      %v240 = vld [vmem:[%s205 + $0x20] sm:$0xff]
      %v241 = vld [vmem:[%s205 + $0x28] sm:$0xff]
      %v242 = vld [vmem:[%s205 + $0x30] sm:$0xff]
      %v243 = vld [vmem:[%s205 + $0x38] sm:$0xff]
      %v244 = vpack.c.bf16 %v238, %v236
      %v245 = vpack.c.bf16 %v239, %v237
      %v246 = vpack.c.bf16 %v242, %v240
      %v247 = vpack.c.bf16 %v243, %v241
      %248 = vmatprep.subr.bf16.mxu0 0
      %249 = vmatpush1.bf16.xpose.msra.mxu0 0
      %250 = vmatprep.subr.bf16.mxu0 0
      %251 = vmatpush1.bf16.xpose.msra.mxu0 0
      %252 = vmatprep.subr.bf16.mxu0 0
      %253 = vmatpush1.bf16.xpose.msra.mxu0 0
      %254 = vmatprep.subr.bf16.mxu0 0
      %255 = vmatpush1.bf16.xpose.msra.mxu0 0
      %256 = vmatprep.subr.bf16.mxu0 0
      %257 = vmatpush1.bf16.xpose.msra.mxu0 0
      %258 = vmatprep.subr.bf16.mxu0 0
      %259 = vmatpush1.bf16.xpose.msra.mxu0 0
      %260 = vmatprep.subr.bf16.mxu0 %v235
      %261 = vmatpush1.bf16.xpose.msra.mxu0 %v234
      %262 = vmatprep.subr.bf16.mxu0 %v233
      %263 = vmatpush1.bf16.xpose.msra.mxu0 %v232
      %264 = vmatprep.subr.bf16.mxu0 0
      %265 = vmatpush2.bf16.xpose.msra.mxu0 0
      %266 = vmatprep.subr.bf16.mxu0 0
      %267 = vmatpush2.bf16.xpose.msra.mxu0 0
      %268 = vmatprep.subr.bf16.mxu0 0
      %269 = vmatpush2.bf16.xpose.msra.mxu0 0
      %270 = vmatprep.subr.bf16.mxu0 0
      %271 = vmatpush2.bf16.xpose.msra.mxu0 0
      %272 = vmatprep.subr.bf16.mxu0 0
      %273 = vmatpush2.bf16.xpose.msra.mxu0 0
      %274 = vmatprep.subr.bf16.mxu0 0
      %275 = vmatpush2.bf16.xpose.msra.mxu0 0
      %276 = vmatprep.subr.bf16.mxu0 0
      %277 = vmatpush2.bf16.xpose.msra.mxu0 0
      %278 = vmatprep.subr.bf16.mxu0 0
      %279 = vmatpush2.bf16.xpose.msra.mxu0 0
      %280 = vmatprep.mubr.bf16.mxu0 %v221
      %281 = vmatmul.mubr.bf16.gmra.mxu0 %v220
      %v282 = vpop.f32.mrf.mxu0
      %v283 = vadd.f32 0.0, %v282
      %v284 = vpop.f32.mrf.mxu0
      %v285 = vpop.f32.mrf.mxu0
      %v286 = vadd.f32 0.0, %v285
      %v287 = vpop.f32.mrf.mxu0
      %288 = vmatprep.mubr.bf16.mxu0 %v223
      %289 = vmatmul.mubr.bf16.gmra.mxu0 %v222
      %v290 = vpop.f32.mrf.mxu0
      %v291 = vadd.f32 0.0, %v290
      %v292 = vpop.f32.mrf.mxu0
      %v293 = vpop.f32.mrf.mxu0
      %v294 = vadd.f32 0.0, %v293
      %v295 = vpop.f32.mrf.mxu0
      %296 = vdwg.mxu0
      %v297 = vmul.f32 %v283, 0.0625
      %v298 = vmul.f32 %v286, 0.0625
      %v299 = vmul.f32 %v291, 0.0625
      %v300 = vmul.f32 %v294, 0.0625
      %vm301 = vcmask 261120
      %v302 = vsel %vm301, %v297, -inf
      %303 = vmax.xlane.f32.xlu0 %v302
      %v304 = vpop.xlane.xlu0 %303
      %v305 = vsel %vm301, %v298, -inf
      %306 = vmax.xlane.f32.xlu0 %v305
      %v307 = vpop.xlane.xlu0 %306
      %v308 = vsel %vm301, %v299, -inf
      %309 = vmax.xlane.f32.xlu0 %v308
      %v310 = vpop.xlane.xlu0 %309
      %v311 = vsel %vm301, %v300, -inf
      %312 = vmax.xlane.f32.xlu0 %v311
      %v313 = vpop.xlane.xlu0 %312
      %v314 = vsub.f32 %v297, %v304
      %v315 = vsub.f32 %v298, %v307
      %v316 = vsub.f32 %v299, %v310
      %v317 = vsub.f32 %v300, %v313
      %v318 = vmul.f32 %v314, 1.442695
      %v319 = vpow.pop %v318
      %v320 = vmul.f32 %v315, 1.442695
      %v321 = vpow.pop %v320
      %v322 = vmul.f32 %v316, 1.442695
      %v323 = vpow.pop %v322
      %v324 = vmul.f32 %v317, 1.442695
      %v325 = vpow.pop %v324
      %v326 = vsel %vm301, %v319, 0.0
      %327 = vadd.xlane.f32.xlu0 %v326
      %v328 = vpop.xlane.xlu0 %327
      %v329 = vsel %vm301, %v321, 0.0
      %330 = vadd.xlane.f32.xlu0 %v329
      %v331 = vpop.xlane.xlu0 %330
      %v332 = vsel %vm301, %v323, 0.0
      %333 = vadd.xlane.f32.xlu0 %v332
      %v334 = vpop.xlane.xlu0 %333
      %v335 = vsel %vm301, %v325, 0.0
      %336 = vadd.xlane.f32.xlu0 %v335
      %v337 = vpop.xlane.xlu0 %336
      %v338 = vrcp.pop %v328
      %v339 = vrcp.pop %v331
      %v340 = vrcp.pop %v334
      %v341 = vrcp.pop %v337
      %v342 = vmul.f32 %v319, %v338
      %v343 = vmul.f32 %v321, %v339
      %v344 = vmul.f32 %v323, %v340
      %v345 = vmul.f32 %v325, %v341
      %v346 = vpack.c.bf16 %v343, %v342
      %v347 = vpack.c.bf16 %v345, %v344
      %v349 = vsel %vm301, %v346, 0
      %v352 = vsel %vm301, %v347, 0
      %354 = vmatprep.subr.bf16.mxu0 0
      %355 = vmatpush1.bf16.msra.mxu0 0
      %356 = vmatprep.subr.bf16.mxu0 0
      %357 = vmatpush1.bf16.msra.mxu0 0
      %358 = vmatprep.subr.bf16.mxu0 0
      %359 = vmatpush1.bf16.msra.mxu0 0
      %360 = vmatprep.subr.bf16.mxu0 0
      %361 = vmatpush1.bf16.msra.mxu0 0
      %362 = vmatprep.subr.bf16.mxu0 0
      %363 = vmatpush1.bf16.msra.mxu0 0
      %364 = vmatprep.subr.bf16.mxu0 0
      %365 = vmatpush1.bf16.msra.mxu0 0
      %366 = vmatprep.subr.bf16.mxu0 %v247
      %367 = vmatpush1.bf16.msra.mxu0 %v246
      %368 = vmatprep.subr.bf16.mxu0 %v245
      %369 = vmatpush1.bf16.msra.mxu0 %v244
      %370 = vmatprep.subr.bf16.mxu0 0
      %371 = vmatpush2.bf16.msra.mxu0 0
      %372 = vmatprep.subr.bf16.mxu0 0
      %373 = vmatpush2.bf16.msra.mxu0 0
      %374 = vmatprep.subr.bf16.mxu0 0
      %375 = vmatpush2.bf16.msra.mxu0 0
      %376 = vmatprep.subr.bf16.mxu0 0
      %377 = vmatpush2.bf16.msra.mxu0 0
      %378 = vmatprep.subr.bf16.mxu0 0
      %379 = vmatpush2.bf16.msra.mxu0 0
      %380 = vmatprep.subr.bf16.mxu0 0
      %381 = vmatpush2.bf16.msra.mxu0 0
      %382 = vmatprep.subr.bf16.mxu0 0
      %383 = vmatpush2.bf16.msra.mxu0 0
      %384 = vmatprep.subr.bf16.mxu0 0
      %385 = vmatpush2.bf16.msra.mxu0 0
      %386 = vmatprep.mubr.bf16.mxu0 0
      %387 = vmatmul.mubr.bf16.gmra.mxu0 %v349
      %v388 = vpop.f32.mrf.mxu0
      %v389 = vadd.f32 0.0, %v388
      %v390 = vpop.f32.mrf.mxu0
      %v391 = vadd.f32 0.0, %v390
      %v392 = vpop.f32.mrf.mxu0
      %v393 = vadd.f32 0.0, %v392
      %v394 = vpop.f32.mrf.mxu0
      %v395 = vadd.f32 0.0, %v394
      %396 = vmatprep.mubr.bf16.mxu0 0
      %397 = vmatmul.mubr.bf16.gmra.mxu0 %v352
      %v398 = vpop.f32.mrf.mxu0
      %v399 = vadd.f32 0.0, %v398
      %v400 = vpop.f32.mrf.mxu0
      %v401 = vadd.f32 0.0, %v400
      %v402 = vpop.f32.mrf.mxu0
      %v403 = vadd.f32 0.0, %v402
      %v404 = vpop.f32.mrf.mxu0
      %v405 = vadd.f32 0.0, %v404
      %406 = vdwg.mxu0
      %407 = vst [vmem:[%s210] sm:$0xff] %v389
      %408 = vst [vmem:[%s210 + $0x8] sm:$0xff] %v391
      %409 = vst [vmem:[%s210 + $0x10] sm:$0xff] %v393
      %410 = vst [vmem:[%s210 + $0x18] sm:$0xff] %v395
      %411 = vst [vmem:[%s210 + $0x20] sm:$0xff] %v399
      %412 = vst [vmem:[%s210 + $0x28] sm:$0xff] %v401
      %413 = vst [vmem:[%s210 + $0x30] sm:$0xff] %v403
      %414 = vst [vmem:[%s210 + $0x38] sm:$0xff] %v405
      %p415 = scmp.lt.s32.totalorder %s14, 1
      %s416 = scalar_select %p415, %s14, 1
      %s417 = smul.addr %s416, 8
      %s418 = smul.addr %s417, 8
      %s419 = scalar_lea.vmem %s3, %s418
      // Predicated region
      $region33: #{_lambda_.7} parent=31 // pred_check
        %p420 = pneg %p110
      $region34: #{_lambda_.7} parent=31 // pred_check_branch
        %422 = sbr.rel (%p420) target = $region36
      $region35: #{_lambda_.7} parent=31 // pred_region
        _
      $region36: #{_lambda_.7} parent=31 // pred_fallthru
        _
    $region32: #{_lambda_.7} parent=5 // pred_fallthru
      _
    %p423 = scmp.le.s32.totalorder 2, %s9
    // Predicated region
    $region37: #{_lambda_.7} parent=5 // pred_check
      %p424 = pneg %p423
    $region38: #{_lambda_.7} parent=5 // pred_check_branch
      %426 = sbr.rel (%p424) target = $region40
    $region39: #{_lambda_.7} parent=5 // pred_region
      %s427 = ssub.s32 %s9, 2
      // Predicated region
      $region41: #{_lambda_.7} parent=39 // pred_check
        %p428 = pneg %p116
      $region42: #{_lambda_.7} parent=39 // pred_check_branch
        %430 = sbr.rel (%p428) target = $region44
      $region43: #{_lambda_.7} parent=39 // pred_region
        %p431 = scmp.lt.s32.totalorder %s15, 1
        %s432 = scalar_select %p431, %s15, 1
        %s433 = smul.addr %s432, 8
        %s434 = smul.addr %s433, 8
        %s435 = scalar_lea.vmem %s3, %s434
      $region44: #{_lambda_.7} parent=39 // pred_fallthru
        _
    $region40: #{_lambda_.7} parent=5 // pred_fallthru
      _
  $region6: #{_lambda_.7} parent=0 // loop_footer
    %s13 = sadd.s32 1, %s9
  $region7: #{_lambda_.7} parent=0 // loop_footer_branch
    %8 = sbr.rel target = $region3
  $region8: #{_lambda_.7} parent=0 // loop_exit
    _

// kernel: _lambda_.9
$region0: #{_lambda_.9}
  #allocation0 [shape = 'u32[]', space=smem, size = 0x4, offset = 0x4, fixed_abs, tag = 'smem constant byte address 0x4 - core index']
  #allocation1 [shape = 'u32[144,128]{1,0:T(1,128)}', space=vmem, size = 0x12000, scoped, tag = 'internal scratch']
  %s0 = inlined_call_operand.vmem [shape: f32[4,32,256], index: 0, kind: input, shape index: {}]
  %s1 = inlined_call_operand.vmem [shape: bf16[9,32,32], index: 1, kind: input, shape index: {}]
  %s2 = inlined_call_operand.vmem [shape: f32[32,1], index: 2, kind: input, shape index: {}]
  %s3 = inlined_call_operand.vmem [shape: f32[9,1,256], index: 3, kind: input, shape index: {}]
  %s4 = inlined_call_operand.vmem [shape: f32[4,32,256], index: 4, kind: input, shape index: {}]
  %s5 = inlined_call_operand.vmem [shape: f32[4,32,256], index: 5, kind: output, shape index: {}]
  %s6 = sld [smem:[#allocation0]]
  $region53: #{_lambda_.9} parent=0
    _
  %s8 = ssub.s32 1, %s6
  %s9 = scalar_select 0, %s8, %s6
  loop: start=0, step=1, limit=6
  $region2: #{_lambda_.9} parent=0 // loop_pre_header
    _
  $region3: #{_lambda_.9} parent=0 // loop_header
    %s11 = sphi 0, %s15
    %p12 = scmp.ge.s32.totalorder %s11, 6
    %s21 = sphi 0, %s23
    %s24 = sphi 0, %s21
    %s25 = sphi 0, %s24
    %s41 = sphi 0, %s25
    %s45 = sphi 0, %s45
    %s47 = sphi 0, %s45
    %s48 = sphi 0, %s47
    %s62 = sphi 0, %s48
    %s66 = sphi 0, %s66
    %s68 = sphi 0, %s66
    %s69 = sphi 0, %s68
    %s83 = sphi 0, %s69
    %s87 = sphi 0, %s87
    %s89 = sphi 0, %s87
    %s90 = sphi 0, %s89
    %s104 = sphi 0, %s90
    %s110 = sphi 0, %s112
    %s113 = sphi 0, %s110
    %s114 = sphi 0, %s113
    %s130 = sphi 0, %s114
    %s136 = sphi 0, %s138
    %s139 = sphi 0, %s136
    %s140 = sphi 0, %s139
    %s156 = sphi 0, %s140
  $region4: #{_lambda_.9} parent=0 // loop_header_branch
    %14 = sbr.rel (%p12) target = $region8
  $region5: #{_lambda_.9} parent=0 // loop_body
    %s16 = ssub.s32 %s11, 1
    %s17 = ssub.s32 %s11, 2
    %s18 = sadd.s32 %s11, 1
    %s19 = ssub.s32 %s11, %s18
    %p20 = scmp.eq.s32.totalorder %s19, 0
    %s22 = sadd.s32 %s21, 1
    %s23 = scalar_select %p20, %s21, %s22
    %p26 = pneg %p20
    %p27 = scmp.eq.s32.totalorder %s11, 3
    %p28 = por %p26, %p27
    %p29 = scmp.ne.s32.totalorder %s21, %s24
    %p30 = scmp.eq.s32.totalorder %s11, 0
    %p31 = por %p29, %p30
    %p32 = scmp.ne.s32.totalorder %s21, %s24
    %p33 = scmp.eq.s32.totalorder %s16, 3
    %p34 = por %p32, %p33
    %p35 = scmp.ne.s32.totalorder %s24, %s25
    %p36 = scmp.eq.s32.totalorder %s16, 0
    %p37 = por %p35, %p36
    %p38 = scmp.ne.s32.totalorder %s24, %s25
    %p39 = scmp.eq.s32.totalorder %s17, 3
    %p40 = por %p38, %p39
    %p42 = scmp.ne.s32.totalorder %s25, %s41
    %p43 = scmp.eq.s32.totalorder %s17, 0
    %p44 = por %p42, %p43
    %s46 = sadd.s32 %s45, 1
    %p49 = scmp.eq.s32.totalorder %s11, 3
    %p50 = scmp.ne.s32.totalorder %s45, %s47
    %p51 = scmp.eq.s32.totalorder %s11, 0
    %p52 = por %p50, %p51
    %p53 = scmp.ne.s32.totalorder %s45, %s47
    %p54 = scmp.eq.s32.totalorder %s16, 3
    %p55 = por %p53, %p54
    %p56 = scmp.ne.s32.totalorder %s47, %s48
    %p57 = scmp.eq.s32.totalorder %s16, 0
    %p58 = por %p56, %p57
    %p59 = scmp.ne.s32.totalorder %s47, %s48
    %p60 = scmp.eq.s32.totalorder %s17, 3
    %p61 = por %p59, %p60
    %p63 = scmp.ne.s32.totalorder %s48, %s62
    %p64 = scmp.eq.s32.totalorder %s17, 0
    %p65 = por %p63, %p64
    %s67 = sadd.s32 %s66, 1
    %p70 = scmp.eq.s32.totalorder %s11, 3
    %p71 = scmp.ne.s32.totalorder %s66, %s68
    %p72 = scmp.eq.s32.totalorder %s11, 0
    %p73 = por %p71, %p72
    %p74 = scmp.ne.s32.totalorder %s66, %s68
    %p75 = scmp.eq.s32.totalorder %s16, 3
    %p76 = por %p74, %p75
    %p77 = scmp.ne.s32.totalorder %s68, %s69
    %p78 = scmp.eq.s32.totalorder %s16, 0
    %p79 = por %p77, %p78
    %p80 = scmp.ne.s32.totalorder %s68, %s69
    %p81 = scmp.eq.s32.totalorder %s17, 3
    %p82 = por %p80, %p81
    %p84 = scmp.ne.s32.totalorder %s69, %s83
    %p85 = scmp.eq.s32.totalorder %s17, 0
    %p86 = por %p84, %p85
    %s88 = sadd.s32 %s87, 1
    %p91 = scmp.eq.s32.totalorder %s11, 3
    %p92 = scmp.ne.s32.totalorder %s87, %s89
    %p93 = scmp.eq.s32.totalorder %s11, 0
    %p94 = por %p92, %p93
    %p95 = scmp.ne.s32.totalorder %s87, %s89
    %p96 = scmp.eq.s32.totalorder %s16, 3
    %p97 = por %p95, %p96
    %p98 = scmp.ne.s32.totalorder %s89, %s90
    %p99 = scmp.eq.s32.totalorder %s16, 0
    %p100 = por %p98, %p99
    %p101 = scmp.ne.s32.totalorder %s89, %s90
    %p102 = scmp.eq.s32.totalorder %s17, 3
    %p103 = por %p101, %p102
    %p105 = scmp.ne.s32.totalorder %s90, %s104
    %p106 = scmp.eq.s32.totalorder %s17, 0
    %p107 = por %p105, %p106
    %s108 = ssub.s32 %s11, %s18
    %p109 = scmp.eq.s32.totalorder %s108, 0
    %s111 = sadd.s32 %s110, 1
    %s112 = scalar_select %p109, %s110, %s111
    %p115 = pneg %p109
    %p116 = scmp.eq.s32.totalorder %s11, 3
    %p117 = por %p115, %p116
    %p118 = scmp.ne.s32.totalorder %s110, %s113
    %p119 = scmp.eq.s32.totalorder %s11, 0
    %p120 = por %p118, %p119
    %p121 = scmp.ne.s32.totalorder %s110, %s113
    %p122 = scmp.eq.s32.totalorder %s16, 3
    %p123 = por %p121, %p122
    %p124 = scmp.ne.s32.totalorder %s113, %s114
    %p125 = scmp.eq.s32.totalorder %s16, 0
    %p126 = por %p124, %p125
    %p127 = scmp.ne.s32.totalorder %s113, %s114
    %p128 = scmp.eq.s32.totalorder %s17, 3
    %p129 = por %p127, %p128
    %p131 = scmp.ne.s32.totalorder %s114, %s130
    %p132 = scmp.eq.s32.totalorder %s17, 0
    %p133 = por %p131, %p132
    %s134 = ssub.s32 %s11, %s18
    %p135 = scmp.eq.s32.totalorder %s134, 0
    %s137 = sadd.s32 %s136, 1
    %s138 = scalar_select %p135, %s136, %s137
    %p141 = pneg %p135
    %p142 = scmp.eq.s32.totalorder %s11, 3
    %p143 = por %p141, %p142
    %p144 = scmp.ne.s32.totalorder %s136, %s139
    %p145 = scmp.eq.s32.totalorder %s11, 0
    %p146 = por %p144, %p145
    %p147 = scmp.ne.s32.totalorder %s136, %s139
    %p148 = scmp.eq.s32.totalorder %s16, 3
    %p149 = por %p147, %p148
    %p150 = scmp.ne.s32.totalorder %s139, %s140
    %p151 = scmp.eq.s32.totalorder %s16, 0
    %p152 = por %p150, %p151
    %p153 = scmp.ne.s32.totalorder %s139, %s140
    %p154 = scmp.eq.s32.totalorder %s17, 3
    %p155 = por %p153, %p154
    %p157 = scmp.ne.s32.totalorder %s140, %s156
    %p158 = scmp.eq.s32.totalorder %s17, 0
    %p159 = por %p157, %p158
    %p160 = scmp.le.s32.totalorder 1, %s11
    %p161 = scmp.lt.s32.totalorder %s11, 5
    %p162 = pnand %p160, %p161
    %p163 = pneg %p162
    // Predicated region
    $region9: #{_lambda_.9} parent=5 // pred_check
      _
    $region10: #{_lambda_.9} parent=5 // pred_check_branch
      %165 = sbr.rel (%p162) target = $region12
    $region11: #{_lambda_.9} parent=5 // pred_region
      %s166 = ssub.s32 %s11, 1
      // Predicated region
      $region13: #{_lambda_.9} parent=11 // pred_check
        %p167 = pneg %p58
      $region14: #{_lambda_.9} parent=11 // pred_check_branch
        %169 = sbr.rel (%p167) target = $region16
      $region15: #{_lambda_.9} parent=11 // pred_region
        _
      $region16: #{_lambda_.9} parent=11 // pred_fallthru
        _
      // Predicated region
      $region17: #{_lambda_.9} parent=11 // pred_check
        %p170 = pneg %p79
      $region18: #{_lambda_.9} parent=11 // pred_check_branch
        %172 = sbr.rel (%p170) target = $region20
      $region19: #{_lambda_.9} parent=11 // pred_region
        _
      $region20: #{_lambda_.9} parent=11 // pred_fallthru
        _
      // Predicated region
      $region21: #{_lambda_.9} parent=11 // pred_check
        %p173 = pneg %p100
      $region22: #{_lambda_.9} parent=11 // pred_check_branch
        %175 = sbr.rel (%p173) target = $region24
      $region23: #{_lambda_.9} parent=11 // pred_region
        _
      $region24: #{_lambda_.9} parent=11 // pred_fallthru
        _
    $region12: #{_lambda_.9} parent=5 // pred_fallthru
      _
    %p176 = scmp.lt.s32.totalorder %s11, 4
    // Predicated region
    $region25: #{_lambda_.9} parent=5 // pred_check
      %p177 = pneg %p176
    $region26: #{_lambda_.9} parent=5 // pred_check_branch
      %179 = sbr.rel (%p177) target = $region28
    $region27: #{_lambda_.9} parent=5 // pred_region
      // Predicated region
      $region29: #{_lambda_.9} parent=27 // pred_check
        %p180 = pneg %p31
      $region30: #{_lambda_.9} parent=27 // pred_check_branch
        %182 = sbr.rel (%p180) target = $region32
      $region31: #{_lambda_.9} parent=27 // pred_region
        %p183 = scmp.lt.s32.totalorder %s11, 3
        %s184 = scalar_select %p183, %s11, 3
        %s185 = smul.addr %s184, 8
        %s186 = smul.addr %s185, 8
        %s187 = scalar_lea.vmem %s0, %s186
      $region32: #{_lambda_.9} parent=27 // pred_fallthru
        _
      // Predicated region
      $region33: #{_lambda_.9} parent=27 // pred_check
        %p188 = pneg %p120
      $region34: #{_lambda_.9} parent=27 // pred_check_branch
        %190 = sbr.rel (%p188) target = $region36
      $region35: #{_lambda_.9} parent=27 // pred_region
        %p191 = scmp.lt.s32.totalorder %s11, 3
        %s192 = scalar_select %p191, %s11, 3
        %s193 = smul.addr %s192, 8
        %s194 = smul.addr %s193, 8
        %s195 = scalar_lea.vmem %s4, %s194
      $region36: #{_lambda_.9} parent=27 // pred_fallthru
        _
    $region28: #{_lambda_.9} parent=5 // pred_fallthru
      _
    %p196 = scmp.le.s32.totalorder 1, %s11
    %p197 = scmp.lt.s32.totalorder %s11, 5
    %p198 = pnand %p196, %p197
    %p199 = pneg %p198
    // Predicated region
    $region37: #{_lambda_.9} parent=5 // pred_check
      _
    $region38: #{_lambda_.9} parent=5 // pred_check_branch
      %201 = sbr.rel (%p198) target = $region40
    $region39: #{_lambda_.9} parent=5 // pred_region
      %s202 = ssub.s32 %s11, 1
      %p203 = scmp.lt.s32.totalorder %s16, 3
      %s204 = scalar_select %p203, %s16, 3
      %s205 = smul.addr %s204, 8
      %s206 = smul.addr %s205, 8
      %s207 = scalar_lea.vmem %s0, %s206
      %p208 = pneg %p37
      %p209 = pneg %p34
      %p210 = pneg %p58
      %p211 = pneg %p55
      %p212 = pneg %p79
      %p213 = pneg %p76
      %p214 = pneg %p100
      %p215 = pneg %p97
      %p216 = scmp.lt.s32.totalorder %s16, 3
      %s217 = scalar_select %p216, %s16, 3
      %s218 = smul.addr %s217, 8
      %s219 = smul.addr %s218, 8
      %s220 = scalar_lea.vmem %s4, %s219
      %p221 = pneg %p126
      %p222 = pneg %p123
      %p223 = pneg %p152
      %p224 = pneg %p149
      %p225 = scmp.lt.s32.totalorder %s16, 3
      %s226 = scalar_select %p225, %s16, 3
      %s227 = smul.addr %s226, 8
      %s228 = smul.addr %s227, 8
      %s229 = scalar_lea.vmem %s5, %s228
      %p230 = scmp.lt.s32.totalorder %s16, 3
      %s231 = scalar_select %p230, %s16, 3
      %s232 = smul.addr %s231, 8
      %s233 = smul.addr %s232, 8
      %s234 = scalar_lea.vmem %s0, %s233
      %p235 = scmp.lt.s32.totalorder %s16, 3
      %s236 = scalar_select %p235, %s16, 3
      %s237 = smul.addr %s236, 8
      %s238 = smul.addr %s237, 8
      %s239 = scalar_lea.vmem %s4, %s238
      %p240 = scmp.lt.s32.totalorder %s16, 3
      %s241 = scalar_select %p240, %s16, 3
      %s242 = smul.addr %s241, 8
      %s243 = smul.addr %s242, 8
      %s244 = scalar_lea.vmem %s5, %s243
      %v246 = vld [vmem:[%s234] sm:$0xff]
      %v247 = vld [vmem:[%s234 + $0x8] sm:$0xff]
      %v248 = vld [vmem:[%s234 + $0x10] sm:$0xff]
      %v249 = vld [vmem:[%s234 + $0x18] sm:$0xff]
      %v250 = vld [vmem:[%s234 + $0x20] sm:$0xff]
      %v251 = vld [vmem:[%s234 + $0x28] sm:$0xff]
      %v252 = vld [vmem:[%s234 + $0x30] sm:$0xff]
      %v253 = vld [vmem:[%s234 + $0x38] sm:$0xff]
      %254 = vrot.lane.b32.xlu0 %v246, 17
      %v255 = vpop.permute.xlu0 %254
      %256 = vrot.lane.b32.xlu0 %v248, 17
      %v257 = vpop.permute.xlu0 %256
      %258 = vrot.lane.b32.xlu0 %v250, 17
      %v259 = vpop.permute.xlu0 %258
      %260 = vrot.lane.b32.xlu0 %v252, 17
      %v261 = vpop.permute.xlu0 %260
      %262 = vrot.lane.b32.xlu0 %v247, 17
      %v263 = vpop.permute.xlu0 %262
      %264 = vrot.lane.b32.xlu0 %v249, 17
      %v265 = vpop.permute.xlu0 %264
      %266 = vrot.lane.b32.xlu0 %v251, 17
      %v267 = vpop.permute.xlu0 %266
      %268 = vrot.lane.b32.xlu0 %v253, 17
      %v269 = vpop.permute.xlu0 %268
      %v270 = vlaneseq
      %v271 = vand.u32 %v270, 127
      %vm272 = vcmp.lt.s32.totalorder %v271, 17
      %v273 = vsel %vm272, %v255, %v263
      %v274 = vsel %vm272, %v257, %v265
      %v275 = vsel %vm272, %v259, %v267
      %v276 = vsel %vm272, %v261, %v269
      %v277 = vsel %vm272, %v263, %v255
      %v278 = vsel %vm272, %v265, %v257
      %v279 = vsel %vm272, %v267, %v259
      %v280 = vsel %vm272, %v269, %v261
      %v281 = vld [vmem:[%s3] sm:$0x3]
      %v283 = vlaneseq
      %v284 = vshrl.u32 %v283, 7
      %v285 = vsub.s32 0, %v284
      %v286 = vrot.slane %v281, %v285
      %v287 = vlaneseq
      %v288 = vshrl.u32 %v287, 7
      %v289 = vsub.s32 1, %v288
      %v290 = vrot.slane %v281, %v289
      %v293 = vmul.f32 %v277, %v286
      %v294 = vmul.f32 %v273, %v290
      %v295 = vmul.f32 %v278, %v286
      %v296 = vmul.f32 %v274, %v290
      %v297 = vmul.f32 %v279, %v286
      %v298 = vmul.f32 %v275, %v290
      %v299 = vmul.f32 %v280, %v286
      %v300 = vmul.f32 %v276, %v290
      %v301 = vpack.c.bf16 %v295, %v293
      %v302 = vpack.c.bf16 %v296, %v294
      %v303 = vpack.c.bf16 %v299, %v297
      %v304 = vpack.c.bf16 %v300, %v298
      %v305 = vld [vmem:[%s1] sm:$0xf]
      %v306 = vld [vmem:[%s1 + $0x4] sm:$0xf]
      %v307 = vld [vmem:[%s1 + $0x8] sm:$0xf]
      %v308 = vld [vmem:[%s1 + $0xc] sm:$0xf]
      %309 = vrot.lane.b32.xlu0 %v246, 16
      %v310 = vpop.permute.xlu0 %309
      %311 = vrot.lane.b32.xlu0 %v248, 16
      %v312 = vpop.permute.xlu0 %311
      %313 = vrot.lane.b32.xlu0 %v250, 16
      %v314 = vpop.permute.xlu0 %313
      %315 = vrot.lane.b32.xlu0 %v252, 16
      %v316 = vpop.permute.xlu0 %315
      %317 = vrot.lane.b32.xlu0 %v247, 16
      %v318 = vpop.permute.xlu0 %317
      %319 = vrot.lane.b32.xlu0 %v249, 16
      %v320 = vpop.permute.xlu0 %319
      %321 = vrot.lane.b32.xlu0 %v251, 16
      %v322 = vpop.permute.xlu0 %321
      %323 = vrot.lane.b32.xlu0 %v253, 16
      %v324 = vpop.permute.xlu0 %323
      %vm325 = vcmp.lt.s32.totalorder %v271, 16
      %v326 = vsel %vm325, %v310, %v318
      %v327 = vsel %vm325, %v312, %v320
      %v328 = vsel %vm325, %v314, %v322
      %v329 = vsel %vm325, %v316, %v324
      %v330 = vsel %vm325, %v318, %v310
      %v331 = vsel %vm325, %v320, %v312
      %v332 = vsel %vm325, %v322, %v314
      %v333 = vsel %vm325, %v324, %v316
      %s334 = scalar_lea.vmem %s3, 2
      %v335 = vld [vmem:[%s334] sm:$0x3]
      %v337 = vlaneseq
      %v338 = vshrl.u32 %v337, 7
      %v339 = vsub.s32 0, %v338
      %v340 = vrot.slane %v335, %v339
      %v341 = vlaneseq
      %v342 = vshrl.u32 %v341, 7
      %v343 = vsub.s32 1, %v342
      %v344 = vrot.slane %v335, %v343
      %v347 = vmul.f32 %v330, %v340
      %v348 = vmul.f32 %v326, %v344
      %v349 = vmul.f32 %v331, %v340
      %v350 = vmul.f32 %v327, %v344
      %v351 = vmul.f32 %v332, %v340
      %v352 = vmul.f32 %v328, %v344
      %v353 = vmul.f32 %v333, %v340
      %v354 = vmul.f32 %v329, %v344
      %v355 = vpack.c.bf16 %v349, %v347
      %v356 = vpack.c.bf16 %v350, %v348
      %v357 = vpack.c.bf16 %v353, %v351
      %v358 = vpack.c.bf16 %v354, %v352
      %s359 = scalar_lea.vmem %s1, 16
      %v360 = vld [vmem:[%s359] sm:$0xf]
      %v361 = vld [vmem:[%s359 + $0x4] sm:$0xf]
      %v362 = vld [vmem:[%s359 + $0x8] sm:$0xf]
      %v363 = vld [vmem:[%s359 + $0xc] sm:$0xf]
      %v368 = vunpack.c.l.b16 %v360
      %v369 = vunpack.c.l.b16 %v361
      %v370 = vunpack.c.l.b16 %v362
      %v371 = vunpack.c.l.b16 %v363
      %v372 = vpack.c.b16 %v369, %v368
      %v373 = vpack.c.b16 %v371, %v370
      %vm374 = vcmask 261120
      %v376 = vsel %vm374, %v372, 0
      %v379 = vsel %vm374, %v373, 0
      %381 = vmatprep.subr.bf16.mxu0 0
      %382 = vmatpush1.bf16.msra.mxu0 0
      %383 = vmatprep.subr.bf16.mxu0 0
      %384 = vmatpush1.bf16.msra.mxu0 0
      %385 = vmatprep.subr.bf16.mxu0 0
      %386 = vmatpush1.bf16.msra.mxu0 0
      %387 = vmatprep.subr.bf16.mxu0 0
      %388 = vmatpush1.bf16.msra.mxu0 0
      %389 = vmatprep.subr.bf16.mxu0 0
      %390 = vmatpush1.bf16.msra.mxu0 0
      %391 = vmatprep.subr.bf16.mxu0 0
      %392 = vmatpush1.bf16.msra.mxu0 0
      %393 = vmatprep.subr.bf16.mxu0 %v358
      %394 = vmatpush1.bf16.msra.mxu0 %v357
      %395 = vmatprep.subr.bf16.mxu0 %v356
      %396 = vmatpush1.bf16.msra.mxu0 %v355
      %397 = vmatprep.subr.bf16.mxu0 0
      %398 = vmatpush2.bf16.msra.mxu0 0
      %399 = vmatprep.subr.bf16.mxu0 0
      %400 = vmatpush2.bf16.msra.mxu0 0
      %401 = vmatprep.subr.bf16.mxu0 0
      %402 = vmatpush2.bf16.msra.mxu0 0
      %403 = vmatprep.subr.bf16.mxu0 0
      %404 = vmatpush2.bf16.msra.mxu0 0
      %405 = vmatprep.subr.bf16.mxu0 0
      %406 = vmatpush2.bf16.msra.mxu0 0
      %407 = vmatprep.subr.bf16.mxu0 0
      %408 = vmatpush2.bf16.msra.mxu0 0
      %409 = vmatprep.subr.bf16.mxu0 0
      %410 = vmatpush2.bf16.msra.mxu0 0
      %411 = vmatprep.subr.bf16.mxu0 0
      %412 = vmatpush2.bf16.msra.mxu0 0
      %413 = vmatprep.mubr.bf16.mxu0 0
      %414 = vmatmul.mubr.bf16.gmra.mxu0 %v376
      %v415 = vpop.f32.mrf.mxu0
      %v416 = vadd.f32 0.0, %v415
      %v417 = vpop.f32.mrf.mxu0
      %v418 = vadd.f32 0.0, %v417
      %v419 = vpop.f32.mrf.mxu0
      %v420 = vadd.f32 0.0, %v419
      %v421 = vpop.f32.mrf.mxu0
      %v422 = vadd.f32 0.0, %v421
      %423 = vmatprep.mubr.bf16.mxu0 0
      %424 = vmatmul.mubr.bf16.gmra.mxu0 %v379
      %v425 = vpop.f32.mrf.mxu0
      %v426 = vadd.f32 0.0, %v425
      %v427 = vpop.f32.mrf.mxu0
      %v428 = vadd.f32 0.0, %v427
      %v429 = vpop.f32.mrf.mxu0
      %v430 = vadd.f32 0.0, %v429
      %v431 = vpop.f32.mrf.mxu0
      %v432 = vadd.f32 0.0, %v431
      %433 = vdwg.mxu0
      %v438 = vunpack.c.l.b16 %v305
      %v439 = vunpack.c.l.b16 %v306
      %v440 = vunpack.c.l.b16 %v307
      %v441 = vunpack.c.l.b16 %v308
      %v442 = vpack.c.b16 %v439, %v438
      %v443 = vpack.c.b16 %v441, %v440
      %v445 = vsel %vm374, %v442, 0
      %v448 = vsel %vm374, %v443, 0
      %450 = vmatprep.subr.bf16.mxu0 0
      %451 = vmatpush1.bf16.msra.mxu0 0
      %452 = vmatprep.subr.bf16.mxu0 0
      %453 = vmatpush1.bf16.msra.mxu0 0
      %454 = vmatprep.subr.bf16.mxu0 0
      %455 = vmatpush1.bf16.msra.mxu0 0
      %456 = vmatprep.subr.bf16.mxu0 0
      %457 = vmatpush1.bf16.msra.mxu0 0
      %458 = vmatprep.subr.bf16.mxu0 0
      %459 = vmatpush1.bf16.msra.mxu0 0
      %460 = vmatprep.subr.bf16.mxu0 0
      %461 = vmatpush1.bf16.msra.mxu0 0
      %462 = vmatprep.subr.bf16.mxu0 %v304
      %463 = vmatpush1.bf16.msra.mxu0 %v303
      %464 = vmatprep.subr.bf16.mxu0 %v302
      %465 = vmatpush1.bf16.msra.mxu0 %v301
      %466 = vmatprep.subr.bf16.mxu0 0
      %467 = vmatpush2.bf16.msra.mxu0 0
      %468 = vmatprep.subr.bf16.mxu0 0
      %469 = vmatpush2.bf16.msra.mxu0 0
      %470 = vmatprep.subr.bf16.mxu0 0
      %471 = vmatpush2.bf16.msra.mxu0 0
      %472 = vmatprep.subr.bf16.mxu0 0
      %473 = vmatpush2.bf16.msra.mxu0 0
      %474 = vmatprep.subr.bf16.mxu0 0
      %475 = vmatpush2.bf16.msra.mxu0 0
      %476 = vmatprep.subr.bf16.mxu0 0
      %477 = vmatpush2.bf16.msra.mxu0 0
      %478 = vmatprep.subr.bf16.mxu0 0
      %479 = vmatpush2.bf16.msra.mxu0 0
      %480 = vmatprep.subr.bf16.mxu0 0
      %481 = vmatpush2.bf16.msra.mxu0 0
      %482 = vmatprep.mubr.bf16.mxu0 0
      %483 = vmatmul.mubr.bf16.gmra.mxu0 %v445
      %v484 = vpop.f32.mrf.mxu0
      %v485 = vadd.f32 %v416, %v484
      %v486 = vpop.f32.mrf.mxu0
      %v487 = vadd.f32 %v418, %v486
      %v488 = vpop.f32.mrf.mxu0
      %v489 = vadd.f32 %v420, %v488
      %v490 = vpop.f32.mrf.mxu0
      %v491 = vadd.f32 %v422, %v490
      %492 = vmatprep.mubr.bf16.mxu0 0
      %493 = vmatmul.mubr.bf16.gmra.mxu0 %v448
      %v494 = vpop.f32.mrf.mxu0
      %v495 = vadd.f32 %v426, %v494
      %v496 = vpop.f32.mrf.mxu0
      %v497 = vadd.f32 %v428, %v496
      %v498 = vpop.f32.mrf.mxu0
      %v499 = vadd.f32 %v430, %v498
      %v500 = vpop.f32.mrf.mxu0
      %v501 = vadd.f32 %v432, %v500
      %502 = vdwg.mxu0
      %503 = vrot.lane.b32.xlu0 %v246, 15
      %v504 = vpop.permute.xlu0 %503
      %505 = vrot.lane.b32.xlu0 %v248, 15
      %v506 = vpop.permute.xlu0 %505
      %507 = vrot.lane.b32.xlu0 %v250, 15
      %v508 = vpop.permute.xlu0 %507
      %509 = vrot.lane.b32.xlu0 %v252, 15
      %v510 = vpop.permute.xlu0 %509
      %511 = vrot.lane.b32.xlu0 %v247, 15
      %v512 = vpop.permute.xlu0 %511
      %513 = vrot.lane.b32.xlu0 %v249, 15
      %v514 = vpop.permute.xlu0 %513
      %515 = vrot.lane.b32.xlu0 %v251, 15
      %v516 = vpop.permute.xlu0 %515
      %517 = vrot.lane.b32.xlu0 %v253, 15
      %v518 = vpop.permute.xlu0 %517
      %vm519 = vcmp.lt.s32.totalorder %v271, 15
      %v520 = vsel %vm519, %v504, %v512
      %v521 = vsel %vm519, %v506, %v514
      %v522 = vsel %vm519, %v508, %v516
      %v523 = vsel %vm519, %v510, %v518
      %v524 = vsel %vm519, %v512, %v504
      %v525 = vsel %vm519, %v514, %v506
      %v526 = vsel %vm519, %v516, %v508
      %v527 = vsel %vm519, %v518, %v510
      %s528 = scalar_lea.vmem %s3, 4
      %v529 = vld [vmem:[%s528] sm:$0x3]
      %v531 = vlaneseq
      %v532 = vshrl.u32 %v531, 7
      %v533 = vsub.s32 0, %v532
      %v534 = vrot.slane %v529, %v533
      %v535 = vlaneseq
      %v536 = vshrl.u32 %v535, 7
      %v537 = vsub.s32 1, %v536
      %v538 = vrot.slane %v529, %v537
      %v541 = vmul.f32 %v524, %v534
      %v542 = vmul.f32 %v520, %v538
      %v543 = vmul.f32 %v525, %v534
      %v544 = vmul.f32 %v521, %v538
      %v545 = vmul.f32 %v526, %v534
      %v546 = vmul.f32 %v522, %v538
      %v547 = vmul.f32 %v527, %v534
      %v548 = vmul.f32 %v523, %v538
      %v549 = vpack.c.bf16 %v543, %v541
      %v550 = vpack.c.bf16 %v544, %v542
      %v551 = vpack.c.bf16 %v547, %v545
      %v552 = vpack.c.bf16 %v548, %v546
      %s553 = scalar_lea.vmem %s1, 32
      %v554 = vld [vmem:[%s553] sm:$0xf]
      %v555 = vld [vmem:[%s553 + $0x4] sm:$0xf]
      %v556 = vld [vmem:[%s553 + $0x8] sm:$0xf]
      %v557 = vld [vmem:[%s553 + $0xc] sm:$0xf]
      %v562 = vunpack.c.l.b16 %v554
      %v563 = vunpack.c.l.b16 %v555
      %v564 = vunpack.c.l.b16 %v556
      %v565 = vunpack.c.l.b16 %v557
      %v566 = vpack.c.b16 %v563, %v562
      %v567 = vpack.c.b16 %v565, %v564
      %v569 = vsel %vm374, %v566, 0
      %v572 = vsel %vm374, %v567, 0
      %574 = vmatprep.subr.bf16.mxu0 0
      %575 = vmatpush1.bf16.msra.mxu0 0
      %576 = vmatprep.subr.bf16.mxu0 0
      %577 = vmatpush1.bf16.msra.mxu0 0
      %578 = vmatprep.subr.bf16.mxu0 0
      %579 = vmatpush1.bf16.msra.mxu0 0
      %580 = vmatprep.subr.bf16.mxu0 0
      %581 = vmatpush1.bf16.msra.mxu0 0
      %582 = vmatprep.subr.bf16.mxu0 0
      %583 = vmatpush1.bf16.msra.mxu0 0
      %584 = vmatprep.subr.bf16.mxu0 0
      %585 = vmatpush1.bf16.msra.mxu0 0
      %586 = vmatprep.subr.bf16.mxu0 %v552
      %587 = vmatpush1.bf16.msra.mxu0 %v551
      %588 = vmatprep.subr.bf16.mxu0 %v550
      %589 = vmatpush1.bf16.msra.mxu0 %v549
      %590 = vmatprep.subr.bf16.mxu0 0
      %591 = vmatpush2.bf16.msra.mxu0 0
      %592 = vmatprep.subr.bf16.mxu0 0
      %593 = vmatpush2.bf16.msra.mxu0 0
      %594 = vmatprep.subr.bf16.mxu0 0
      %595 = vmatpush2.bf16.msra.mxu0 0
      %596 = vmatprep.subr.bf16.mxu0 0
      %597 = vmatpush2.bf16.msra.mxu0 0
      %598 = vmatprep.subr.bf16.mxu0 0
      %599 = vmatpush2.bf16.msra.mxu0 0
      %600 = vmatprep.subr.bf16.mxu0 0
      %601 = vmatpush2.bf16.msra.mxu0 0
      %602 = vmatprep.subr.bf16.mxu0 0
      %603 = vmatpush2.bf16.msra.mxu0 0
      %604 = vmatprep.subr.bf16.mxu0 0
      %605 = vmatpush2.bf16.msra.mxu0 0
      %606 = vmatprep.mubr.bf16.mxu0 0
      %607 = vmatmul.mubr.bf16.gmra.mxu0 %v569
      %v608 = vpop.f32.mrf.mxu0
      %v609 = vadd.f32 0.0, %v608
      %v610 = vpop.f32.mrf.mxu0
      %v611 = vadd.f32 0.0, %v610
      %v612 = vpop.f32.mrf.mxu0
      %v613 = vadd.f32 0.0, %v612
      %v614 = vpop.f32.mrf.mxu0
      %v615 = vadd.f32 0.0, %v614
      %616 = vmatprep.mubr.bf16.mxu0 0
      %617 = vmatmul.mubr.bf16.gmra.mxu0 %v572
      %v618 = vpop.f32.mrf.mxu0
      %v619 = vadd.f32 0.0, %v618
      %v620 = vpop.f32.mrf.mxu0
      %v621 = vadd.f32 0.0, %v620
      %v622 = vpop.f32.mrf.mxu0
      %v623 = vadd.f32 0.0, %v622
      %v624 = vpop.f32.mrf.mxu0
      %v625 = vadd.f32 0.0, %v624
      %626 = vdwg.mxu0
      %v627 = vadd.f32 %v485, %v609
      %v628 = vadd.f32 %v487, %v611
      %v629 = vadd.f32 %v489, %v613
      %v630 = vadd.f32 %v491, %v615
      %v631 = vadd.f32 %v495, %v619
      %v632 = vadd.f32 %v497, %v621
      %v633 = vadd.f32 %v499, %v623
      %v634 = vadd.f32 %v501, %v625
      %635 = vrot.lane.b32.xlu0 %v246, 1
      %v636 = vpop.permute.xlu0 %635
      %637 = vrot.lane.b32.xlu0 %v248, 1
      %v638 = vpop.permute.xlu0 %637
      %639 = vrot.lane.b32.xlu0 %v250, 1
      %v640 = vpop.permute.xlu0 %639
      %641 = vrot.lane.b32.xlu0 %v252, 1
      %v642 = vpop.permute.xlu0 %641
      %643 = vrot.lane.b32.xlu0 %v247, 1
      %v644 = vpop.permute.xlu0 %643
      %645 = vrot.lane.b32.xlu0 %v249, 1
      %v646 = vpop.permute.xlu0 %645
      %647 = vrot.lane.b32.xlu0 %v251, 1
      %v648 = vpop.permute.xlu0 %647
      %649 = vrot.lane.b32.xlu0 %v253, 1
      %v650 = vpop.permute.xlu0 %649
      %vm651 = vcmp.lt.s32.totalorder %v271, 1
      %v652 = vsel %vm651, %v636, %v644
      %v653 = vsel %vm651, %v638, %v646
      %v654 = vsel %vm651, %v640, %v648
      %v655 = vsel %vm651, %v642, %v650
      %v656 = vsel %vm651, %v644, %v636
      %v657 = vsel %vm651, %v646, %v638
      %v658 = vsel %vm651, %v648, %v640
      %v659 = vsel %vm651, %v650, %v642
      %s660 = scalar_lea.vmem %s3, 6
      %v661 = vld [vmem:[%s660] sm:$0x3]
      %v663 = vlaneseq
      %v664 = vshrl.u32 %v663, 7
      %v665 = vsub.s32 0, %v664
      %v666 = vrot.slane %v661, %v665
      %v667 = vlaneseq
      %v668 = vshrl.u32 %v667, 7
      %v669 = vsub.s32 1, %v668
      %v670 = vrot.slane %v661, %v669
      %v673 = vmul.f32 %v656, %v666
      %v674 = vmul.f32 %v652, %v670
      %v675 = vmul.f32 %v657, %v666
      %v676 = vmul.f32 %v653, %v670
      %v677 = vmul.f32 %v658, %v666
      %v678 = vmul.f32 %v654, %v670
      %v679 = vmul.f32 %v659, %v666
      %v680 = vmul.f32 %v655, %v670
      %v681 = vpack.c.bf16 %v675, %v673
      %v682 = vpack.c.bf16 %v676, %v674
      %v683 = vpack.c.bf16 %v679, %v677
      %v684 = vpack.c.bf16 %v680, %v678
      %s685 = scalar_lea.vmem %s1, 48
      %v686 = vld [vmem:[%s685] sm:$0xf]
      %v687 = vld [vmem:[%s685 + $0x4] sm:$0xf]
      %v688 = vld [vmem:[%s685 + $0x8] sm:$0xf]
      %v689 = vld [vmem:[%s685 + $0xc] sm:$0xf]
      %v694 = vunpack.c.l.b16 %v686
      %v695 = vunpack.c.l.b16 %v687
      %v696 = vunpack.c.l.b16 %v688
      %v697 = vunpack.c.l.b16 %v689
      %v698 = vpack.c.b16 %v695, %v694
      %v699 = vpack.c.b16 %v697, %v696
      %v701 = vsel %vm374, %v698, 0
      %v704 = vsel %vm374, %v699, 0
      %706 = vmatprep.subr.bf16.mxu0 0
      %707 = vmatpush1.bf16.msra.mxu0 0
      %708 = vmatprep.subr.bf16.mxu0 0
      %709 = vmatpush1.bf16.msra.mxu0 0
      %710 = vmatprep.subr.bf16.mxu0 0
      %711 = vmatpush1.bf16.msra.mxu0 0
      %712 = vmatprep.subr.bf16.mxu0 0
      %713 = vmatpush1.bf16.msra.mxu0 0
      %714 = vmatprep.subr.bf16.mxu0 0
      %715 = vmatpush1.bf16.msra.mxu0 0
      %716 = vmatprep.subr.bf16.mxu0 0
      %717 = vmatpush1.bf16.msra.mxu0 0
      %718 = vmatprep.subr.bf16.mxu0 %v684
      %719 = vmatpush1.bf16.msra.mxu0 %v683
      %720 = vmatprep.subr.bf16.mxu0 %v682
      %721 = vmatpush1.bf16.msra.mxu0 %v681
      %722 = vmatprep.subr.bf16.mxu0 0
      %723 = vmatpush2.bf16.msra.mxu0 0
      %724 = vmatprep.subr.bf16.mxu0 0
      %725 = vmatpush2.bf16.msra.mxu0 0
      %726 = vmatprep.subr.bf16.mxu0 0
      %727 = vmatpush2.bf16.msra.mxu0 0
      %728 = vmatprep.subr.bf16.mxu0 0
      %729 = vmatpush2.bf16.msra.mxu0 0
      %730 = vmatprep.subr.bf16.mxu0 0
      %731 = vmatpush2.bf16.msra.mxu0 0
      %732 = vmatprep.subr.bf16.mxu0 0
      %733 = vmatpush2.bf16.msra.mxu0 0
      %734 = vmatprep.subr.bf16.mxu0 0
      %735 = vmatpush2.bf16.msra.mxu0 0
      %736 = vmatprep.subr.bf16.mxu0 0
      %737 = vmatpush2.bf16.msra.mxu0 0
      %738 = vmatprep.mubr.bf16.mxu0 0
      %739 = vmatmul.mubr.bf16.gmra.mxu0 %v701
      %v740 = vpop.f32.mrf.mxu0
      %v741 = vadd.f32 0.0, %v740
      %v742 = vpop.f32.mrf.mxu0
      %v743 = vadd.f32 0.0, %v742
      %v744 = vpop.f32.mrf.mxu0
      %v745 = vadd.f32 0.0, %v744
      %v746 = vpop.f32.mrf.mxu0
      %v747 = vadd.f32 0.0, %v746
      %748 = vmatprep.mubr.bf16.mxu0 0
      %749 = vmatmul.mubr.bf16.gmra.mxu0 %v704
      %v750 = vpop.f32.mrf.mxu0
      %v751 = vadd.f32 0.0, %v750
      %v752 = vpop.f32.mrf.mxu0
      %v753 = vadd.f32 0.0, %v752
      %v754 = vpop.f32.mrf.mxu0
      %v755 = vadd.f32 0.0, %v754
      %v756 = vpop.f32.mrf.mxu0
      %v757 = vadd.f32 0.0, %v756
      %758 = vdwg.mxu0
      %v759 = vadd.f32 %v627, %v741
      %v760 = vadd.f32 %v628, %v743
      %v761 = vadd.f32 %v629, %v745
      %v762 = vadd.f32 %v630, %v747
      %v763 = vadd.f32 %v631, %v751
      %v764 = vadd.f32 %v632, %v753
      %v765 = vadd.f32 %v633, %v755
      %v766 = vadd.f32 %v634, %v757
      %s767 = scalar_lea.vmem %s3, 8
      %v768 = vld [vmem:[%s767] sm:$0x3]
      %v770 = vlaneseq
      %v771 = vshrl.u32 %v770, 7
      %v772 = vsub.s32 0, %v771
      %v773 = vrot.slane %v768, %v772
      %v774 = vlaneseq
      %v775 = vshrl.u32 %v774, 7
      %v776 = vsub.s32 1, %v775
      %v777 = vrot.slane %v768, %v776
      %v780 = vmul.f32 %v246, %v773
      %v781 = vmul.f32 %v247, %v777
      %v782 = vmul.f32 %v248, %v773
      %v783 = vmul.f32 %v249, %v777
      %v784 = vmul.f32 %v250, %v773
      %v785 = vmul.f32 %v251, %v777
      %v786 = vmul.f32 %v252, %v773
      %v787 = vmul.f32 %v253, %v777
      %v788 = vpack.c.bf16 %v782, %v780
      %v789 = vpack.c.bf16 %v783, %v781
      %v790 = vpack.c.bf16 %v786, %v784
      %v791 = vpack.c.bf16 %v787, %v785
      %s792 = scalar_lea.vmem %s1, 64
      %v793 = vld [vmem:[%s792] sm:$0xf]
      %v794 = vld [vmem:[%s792 + $0x4] sm:$0xf]
      %v795 = vld [vmem:[%s792 + $0x8] sm:$0xf]
      %v796 = vld [vmem:[%s792 + $0xc] sm:$0xf]
      %v801 = vunpack.c.l.b16 %v793
      %v802 = vunpack.c.l.b16 %v794
      %v803 = vunpack.c.l.b16 %v795
      %v804 = vunpack.c.l.b16 %v796
      %v805 = vpack.c.b16 %v802, %v801
      %v806 = vpack.c.b16 %v804, %v803
      %v808 = vsel %vm374, %v805, 0
      %v811 = vsel %vm374, %v806, 0
      %813 = vmatprep.subr.bf16.mxu0 0
      %814 = vmatpush1.bf16.msra.mxu0 0
      %815 = vmatprep.subr.bf16.mxu0 0
      %816 = vmatpush1.bf16.msra.mxu0 0
      %817 = vmatprep.subr.bf16.mxu0 0
      %818 = vmatpush1.bf16.msra.mxu0 0
      %819 = vmatprep.subr.bf16.mxu0 0
      %820 = vmatpush1.bf16.msra.mxu0 0
      %821 = vmatprep.subr.bf16.mxu0 0
      %822 = vmatpush1.bf16.msra.mxu0 0
      %823 = vmatprep.subr.bf16.mxu0 0
      %824 = vmatpush1.bf16.msra.mxu0 0
      %825 = vmatprep.subr.bf16.mxu0 %v791
      %826 = vmatpush1.bf16.msra.mxu0 %v790
      %827 = vmatprep.subr.bf16.mxu0 %v789
      %828 = vmatpush1.bf16.msra.mxu0 %v788
      %829 = vmatprep.subr.bf16.mxu0 0
      %830 = vmatpush2.bf16.msra.mxu0 0
      %831 = vmatprep.subr.bf16.mxu0 0
      %832 = vmatpush2.bf16.msra.mxu0 0
      %833 = vmatprep.subr.bf16.mxu0 0
      %834 = vmatpush2.bf16.msra.mxu0 0
      %835 = vmatprep.subr.bf16.mxu0 0
      %836 = vmatpush2.bf16.msra.mxu0 0
      %837 = vmatprep.subr.bf16.mxu0 0
      %838 = vmatpush2.bf16.msra.mxu0 0
      %839 = vmatprep.subr.bf16.mxu0 0
      %840 = vmatpush2.bf16.msra.mxu0 0
      %841 = vmatprep.subr.bf16.mxu0 0
      %842 = vmatpush2.bf16.msra.mxu0 0
      %843 = vmatprep.subr.bf16.mxu0 0
      %844 = vmatpush2.bf16.msra.mxu0 0
      %845 = vmatprep.mubr.bf16.mxu0 0
      %846 = vmatmul.mubr.bf16.gmra.mxu0 %v808
      %v847 = vpop.f32.mrf.mxu0
      %v848 = vadd.f32 0.0, %v847
      %v849 = vpop.f32.mrf.mxu0
      %v850 = vadd.f32 0.0, %v849
      %v851 = vpop.f32.mrf.mxu0
      %v852 = vadd.f32 0.0, %v851
      %v853 = vpop.f32.mrf.mxu0
      %v854 = vadd.f32 0.0, %v853
      %855 = vmatprep.mubr.bf16.mxu0 0
      %856 = vmatmul.mubr.bf16.gmra.mxu0 %v811
      %v857 = vpop.f32.mrf.mxu0
      %v858 = vadd.f32 0.0, %v857
      %v859 = vpop.f32.mrf.mxu0
      %v860 = vadd.f32 0.0, %v859
      %v861 = vpop.f32.mrf.mxu0
      %v862 = vadd.f32 0.0, %v861
      %v863 = vpop.f32.mrf.mxu0
      %v864 = vadd.f32 0.0, %v863
      %865 = vdwg.mxu0
      %v866 = vadd.f32 %v759, %v848
      %v867 = vadd.f32 %v760, %v850
      %v868 = vadd.f32 %v761, %v852
      %v869 = vadd.f32 %v762, %v854
      %v870 = vadd.f32 %v763, %v858
      %v871 = vadd.f32 %v764, %v860
      %v872 = vadd.f32 %v765, %v862
      %v873 = vadd.f32 %v766, %v864
      %874 = vrot.lane.b32.xlu0 %v246, 127
      %v875 = vpop.permute.xlu0 %874
      %876 = vrot.lane.b32.xlu0 %v248, 127
      %v877 = vpop.permute.xlu0 %876
      %878 = vrot.lane.b32.xlu0 %v250, 127
      %v879 = vpop.permute.xlu0 %878
      %880 = vrot.lane.b32.xlu0 %v252, 127
      %v881 = vpop.permute.xlu0 %880
      %882 = vrot.lane.b32.xlu0 %v247, 127
      %v883 = vpop.permute.xlu0 %882
      %884 = vrot.lane.b32.xlu0 %v249, 127
      %v885 = vpop.permute.xlu0 %884
      %886 = vrot.lane.b32.xlu0 %v251, 127
      %v887 = vpop.permute.xlu0 %886
      %888 = vrot.lane.b32.xlu0 %v253, 127
      %v889 = vpop.permute.xlu0 %888
      %vm890 = vcmp.lt.s32.totalorder %v271, 127
      %v891 = vsel %vm890, %v875, %v883
      %v892 = vsel %vm890, %v877, %v885
      %v893 = vsel %vm890, %v879, %v887
      %v894 = vsel %vm890, %v881, %v889
      %v895 = vsel %vm890, %v883, %v875
      %v896 = vsel %vm890, %v885, %v877
      %v897 = vsel %vm890, %v887, %v879
      %v898 = vsel %vm890, %v889, %v881
      %s899 = scalar_lea.vmem %s3, 10
      %v900 = vld [vmem:[%s899] sm:$0x3]
      %v902 = vlaneseq
      %v903 = vshrl.u32 %v902, 7
      %v904 = vsub.s32 0, %v903
      %v905 = vrot.slane %v900, %v904
      %v906 = vlaneseq
      %v907 = vshrl.u32 %v906, 7
      %v908 = vsub.s32 1, %v907
      %v909 = vrot.slane %v900, %v908
      %v912 = vmul.f32 %v891, %v905
      %v913 = vmul.f32 %v895, %v909
      %v914 = vmul.f32 %v892, %v905
      %v915 = vmul.f32 %v896, %v909
      %v916 = vmul.f32 %v893, %v905
      %v917 = vmul.f32 %v897, %v909
      %v918 = vmul.f32 %v894, %v905
      %v919 = vmul.f32 %v898, %v909
      %v920 = vpack.c.bf16 %v914, %v912
      %v921 = vpack.c.bf16 %v915, %v913
      %v922 = vpack.c.bf16 %v918, %v916
      %v923 = vpack.c.bf16 %v919, %v917
      %s924 = scalar_lea.vmem %s1, 80
      %v925 = vld [vmem:[%s924] sm:$0xf]
      %v926 = vld [vmem:[%s924 + $0x4] sm:$0xf]
      %v927 = vld [vmem:[%s924 + $0x8] sm:$0xf]
      %v928 = vld [vmem:[%s924 + $0xc] sm:$0xf]
      %v933 = vunpack.c.l.b16 %v925
      %v934 = vunpack.c.l.b16 %v926
      %v935 = vunpack.c.l.b16 %v927
      %v936 = vunpack.c.l.b16 %v928
      %v937 = vpack.c.b16 %v934, %v933
      %v938 = vpack.c.b16 %v936, %v935
      %v940 = vsel %vm374, %v937, 0
      %v943 = vsel %vm374, %v938, 0
      %945 = vmatprep.subr.bf16.mxu0 0
      %946 = vmatpush1.bf16.msra.mxu0 0
      %947 = vmatprep.subr.bf16.mxu0 0
      %948 = vmatpush1.bf16.msra.mxu0 0
      %949 = vmatprep.subr.bf16.mxu0 0
      %950 = vmatpush1.bf16.msra.mxu0 0
      %951 = vmatprep.subr.bf16.mxu0 0
      %952 = vmatpush1.bf16.msra.mxu0 0
      %953 = vmatprep.subr.bf16.mxu0 0
      %954 = vmatpush1.bf16.msra.mxu0 0
      %955 = vmatprep.subr.bf16.mxu0 0
      %956 = vmatpush1.bf16.msra.mxu0 0
      %957 = vmatprep.subr.bf16.mxu0 %v923
      %958 = vmatpush1.bf16.msra.mxu0 %v922
      %959 = vmatprep.subr.bf16.mxu0 %v921
      %960 = vmatpush1.bf16.msra.mxu0 %v920
      %961 = vmatprep.subr.bf16.mxu0 0
      %962 = vmatpush2.bf16.msra.mxu0 0
      %963 = vmatprep.subr.bf16.mxu0 0
      %964 = vmatpush2.bf16.msra.mxu0 0
      %965 = vmatprep.subr.bf16.mxu0 0
      %966 = vmatpush2.bf16.msra.mxu0 0
      %967 = vmatprep.subr.bf16.mxu0 0
      %968 = vmatpush2.bf16.msra.mxu0 0
      %969 = vmatprep.subr.bf16.mxu0 0
      %970 = vmatpush2.bf16.msra.mxu0 0
      %971 = vmatprep.subr.bf16.mxu0 0
      %972 = vmatpush2.bf16.msra.mxu0 0
      %973 = vmatprep.subr.bf16.mxu0 0
      %974 = vmatpush2.bf16.msra.mxu0 0
      %975 = vmatprep.subr.bf16.mxu0 0
      %976 = vmatpush2.bf16.msra.mxu0 0
      %977 = vmatprep.mubr.bf16.mxu0 0
      %978 = vmatmul.mubr.bf16.gmra.mxu0 %v940
      %v979 = vpop.f32.mrf.mxu0
      %v980 = vadd.f32 0.0, %v979
      %v981 = vpop.f32.mrf.mxu0
      %v982 = vadd.f32 0.0, %v981
      %v983 = vpop.f32.mrf.mxu0
      %v984 = vadd.f32 0.0, %v983
      %v985 = vpop.f32.mrf.mxu0
      %v986 = vadd.f32 0.0, %v985
      %987 = vmatprep.mubr.bf16.mxu0 0
      %988 = vmatmul.mubr.bf16.gmra.mxu0 %v943
      %v989 = vpop.f32.mrf.mxu0
      %v990 = vadd.f32 0.0, %v989
      %v991 = vpop.f32.mrf.mxu0
      %v992 = vadd.f32 0.0, %v991
      %v993 = vpop.f32.mrf.mxu0
      %v994 = vadd.f32 0.0, %v993
      %v995 = vpop.f32.mrf.mxu0
      %v996 = vadd.f32 0.0, %v995
      %997 = vdwg.mxu0
      %v998 = vadd.f32 %v866, %v980
      %v999 = vadd.f32 %v867, %v982
      %v1000 = vadd.f32 %v868, %v984
      %v1001 = vadd.f32 %v869, %v986
      %v1002 = vadd.f32 %v870, %v990
      %v1003 = vadd.f32 %v871, %v992
      %v1004 = vadd.f32 %v872, %v994
      %v1005 = vadd.f32 %v873, %v996
      %1006 = vrot.lane.b32.xlu0 %v246, 113
      %v1007 = vpop.permute.xlu0 %1006
      %1008 = vrot.lane.b32.xlu0 %v248, 113
      %v1009 = vpop.permute.xlu0 %1008
      %1010 = vrot.lane.b32.xlu0 %v250, 113
      %v1011 = vpop.permute.xlu0 %1010
      %1012 = vrot.lane.b32.xlu0 %v252, 113
      %v1013 = vpop.permute.xlu0 %1012
      %1014 = vrot.lane.b32.xlu0 %v247, 113
      %v1015 = vpop.permute.xlu0 %1014
      %1016 = vrot.lane.b32.xlu0 %v249, 113
      %v1017 = vpop.permute.xlu0 %1016
      %1018 = vrot.lane.b32.xlu0 %v251, 113
      %v1019 = vpop.permute.xlu0 %1018
      %1020 = vrot.lane.b32.xlu0 %v253, 113
      %v1021 = vpop.permute.xlu0 %1020
      %vm1022 = vcmp.lt.s32.totalorder %v271, 113
      %v1023 = vsel %vm1022, %v1007, %v1015
      %v1024 = vsel %vm1022, %v1009, %v1017
      %v1025 = vsel %vm1022, %v1011, %v1019
      %v1026 = vsel %vm1022, %v1013, %v1021
      %v1027 = vsel %vm1022, %v1015, %v1007
      %v1028 = vsel %vm1022, %v1017, %v1009
      %v1029 = vsel %vm1022, %v1019, %v1011
      %v1030 = vsel %vm1022, %v1021, %v1013
      %s1031 = scalar_lea.vmem %s3, 12
      %v1032 = vld [vmem:[%s1031] sm:$0x3]
      %v1034 = vlaneseq
      %v1035 = vshrl.u32 %v1034, 7
      %v1036 = vsub.s32 0, %v1035
      %v1037 = vrot.slane %v1032, %v1036
      %v1038 = vlaneseq
      %v1039 = vshrl.u32 %v1038, 7
      %v1040 = vsub.s32 1, %v1039
      %v1041 = vrot.slane %v1032, %v1040
      %v1044 = vmul.f32 %v1023, %v1037
      %v1045 = vmul.f32 %v1027, %v1041
      %v1046 = vmul.f32 %v1024, %v1037
      %v1047 = vmul.f32 %v1028, %v1041
      %v1048 = vmul.f32 %v1025, %v1037
      %v1049 = vmul.f32 %v1029, %v1041
      %v1050 = vmul.f32 %v1026, %v1037
      %v1051 = vmul.f32 %v1030, %v1041
      %v1052 = vpack.c.bf16 %v1046, %v1044
      %v1053 = vpack.c.bf16 %v1047, %v1045
      %v1054 = vpack.c.bf16 %v1050, %v1048
      %v1055 = vpack.c.bf16 %v1051, %v1049
      %s1056 = scalar_lea.vmem %s1, 96
      %v1057 = vld [vmem:[%s1056] sm:$0xf]
      %v1058 = vld [vmem:[%s1056 + $0x4] sm:$0xf]
      %v1059 = vld [vmem:[%s1056 + $0x8] sm:$0xf]
      %v1060 = vld [vmem:[%s1056 + $0xc] sm:$0xf]
      %v1065 = vunpack.c.l.b16 %v1057
      %v1066 = vunpack.c.l.b16 %v1058
      %v1067 = vunpack.c.l.b16 %v1059
      %v1068 = vunpack.c.l.b16 %v1060
      %v1069 = vpack.c.b16 %v1066, %v1065
      %v1070 = vpack.c.b16 %v1068, %v1067
      %v1072 = vsel %vm374, %v1069, 0
      %v1075 = vsel %vm374, %v1070, 0
      %1077 = vmatprep.subr.bf16.mxu0 0
      %1078 = vmatpush1.bf16.msra.mxu0 0
      %1079 = vmatprep.subr.bf16.mxu0 0
      %1080 = vmatpush1.bf16.msra.mxu0 0
      %1081 = vmatprep.subr.bf16.mxu0 0
      %1082 = vmatpush1.bf16.msra.mxu0 0
      %1083 = vmatprep.subr.bf16.mxu0 0
      %1084 = vmatpush1.bf16.msra.mxu0 0
      %1085 = vmatprep.subr.bf16.mxu0 0
      %1086 = vmatpush1.bf16.msra.mxu0 0
      %1087 = vmatprep.subr.bf16.mxu0 0
      %1088 = vmatpush1.bf16.msra.mxu0 0
      %1089 = vmatprep.subr.bf16.mxu0 %v1055
      %1090 = vmatpush1.bf16.msra.mxu0 %v1054
      %1091 = vmatprep.subr.bf16.mxu0 %v1053
      %1092 = vmatpush1.bf16.msra.mxu0 %v1052
      %1093 = vmatprep.subr.bf16.mxu0 0
      %1094 = vmatpush2.bf16.msra.mxu0 0
      %1095 = vmatprep.subr.bf16.mxu0 0
      %1096 = vmatpush2.bf16.msra.mxu0 0
      %1097 = vmatprep.subr.bf16.mxu0 0
      %1098 = vmatpush2.bf16.msra.mxu0 0
      %1099 = vmatprep.subr.bf16.mxu0 0
      %1100 = vmatpush2.bf16.msra.mxu0 0
      %1101 = vmatprep.subr.bf16.mxu0 0
      %1102 = vmatpush2.bf16.msra.mxu0 0
      %1103 = vmatprep.subr.bf16.mxu0 0
      %1104 = vmatpush2.bf16.msra.mxu0 0
      %1105 = vmatprep.subr.bf16.mxu0 0
      %1106 = vmatpush2.bf16.msra.mxu0 0
      %1107 = vmatprep.subr.bf16.mxu0 0
      %1108 = vmatpush2.bf16.msra.mxu0 0
      %1109 = vmatprep.mubr.bf16.mxu0 0
      %1110 = vmatmul.mubr.bf16.gmra.mxu0 %v1072
      %v1111 = vpop.f32.mrf.mxu0
      %v1112 = vadd.f32 0.0, %v1111
      %v1113 = vpop.f32.mrf.mxu0
      %v1114 = vadd.f32 0.0, %v1113
      %v1115 = vpop.f32.mrf.mxu0
      %v1116 = vadd.f32 0.0, %v1115
      %v1117 = vpop.f32.mrf.mxu0
      %v1118 = vadd.f32 0.0, %v1117
      %1119 = vmatprep.mubr.bf16.mxu0 0
      %1120 = vmatmul.mubr.bf16.gmra.mxu0 %v1075
      %v1121 = vpop.f32.mrf.mxu0
      %v1122 = vadd.f32 0.0, %v1121
      %v1123 = vpop.f32.mrf.mxu0
      %v1124 = vadd.f32 0.0, %v1123
      %v1125 = vpop.f32.mrf.mxu0
      %v1126 = vadd.f32 0.0, %v1125
      %v1127 = vpop.f32.mrf.mxu0
      %v1128 = vadd.f32 0.0, %v1127
      %1129 = vdwg.mxu0
      %v1130 = vadd.f32 %v998, %v1112
      %v1131 = vadd.f32 %v999, %v1114
      %v1132 = vadd.f32 %v1000, %v1116
      %v1133 = vadd.f32 %v1001, %v1118
      %v1134 = vadd.f32 %v1002, %v1122
      %v1135 = vadd.f32 %v1003, %v1124
      %v1136 = vadd.f32 %v1004, %v1126
      %v1137 = vadd.f32 %v1005, %v1128
      %1138 = vrot.lane.b32.xlu0 %v246, 112
      %v1139 = vpop.permute.xlu0 %1138
      %1140 = vrot.lane.b32.xlu0 %v248, 112
      %v1141 = vpop.permute.xlu0 %1140
      %1142 = vrot.lane.b32.xlu0 %v250, 112
      %v1143 = vpop.permute.xlu0 %1142
      %1144 = vrot.lane.b32.xlu0 %v252, 112
      %v1145 = vpop.permute.xlu0 %1144
      %1146 = vrot.lane.b32.xlu0 %v247, 112
      %v1147 = vpop.permute.xlu0 %1146
      %1148 = vrot.lane.b32.xlu0 %v249, 112
      %v1149 = vpop.permute.xlu0 %1148
      %1150 = vrot.lane.b32.xlu0 %v251, 112
      %v1151 = vpop.permute.xlu0 %1150
      %1152 = vrot.lane.b32.xlu0 %v253, 112
      %v1153 = vpop.permute.xlu0 %1152
      %vm1154 = vcmp.lt.s32.totalorder %v271, 112
      %v1155 = vsel %vm1154, %v1139, %v1147
      %v1156 = vsel %vm1154, %v1141, %v1149
      %v1157 = vsel %vm1154, %v1143, %v1151
      %v1158 = vsel %vm1154, %v1145, %v1153
      %v1159 = vsel %vm1154, %v1147, %v1139
      %v1160 = vsel %vm1154, %v1149, %v1141
      %v1161 = vsel %vm1154, %v1151, %v1143
      %v1162 = vsel %vm1154, %v1153, %v1145
      %s1163 = scalar_lea.vmem %s3, 14
      %v1164 = vld [vmem:[%s1163] sm:$0x3]
      %v1166 = vlaneseq
      %v1167 = vshrl.u32 %v1166, 7
      %v1168 = vsub.s32 0, %v1167
      %v1169 = vrot.slane %v1164, %v1168
      %v1170 = vlaneseq
      %v1171 = vshrl.u32 %v1170, 7
      %v1172 = vsub.s32 1, %v1171
      %v1173 = vrot.slane %v1164, %v1172
      %v1176 = vmul.f32 %v1155, %v1169
      %v1177 = vmul.f32 %v1159, %v1173
      %v1178 = vmul.f32 %v1156, %v1169
      %v1179 = vmul.f32 %v1160, %v1173
      %v1180 = vmul.f32 %v1157, %v1169
      %v1181 = vmul.f32 %v1161, %v1173
      %v1182 = vmul.f32 %v1158, %v1169
      %v1183 = vmul.f32 %v1162, %v1173
      %v1184 = vpack.c.bf16 %v1178, %v1176
      %v1185 = vpack.c.bf16 %v1179, %v1177
      %v1186 = vpack.c.bf16 %v1182, %v1180
      %v1187 = vpack.c.bf16 %v1183, %v1181
      %s1188 = scalar_lea.vmem %s1, 112
      %v1189 = vld [vmem:[%s1188] sm:$0xf]
      %v1190 = vld [vmem:[%s1188 + $0x4] sm:$0xf]
      %v1191 = vld [vmem:[%s1188 + $0x8] sm:$0xf]
      %v1192 = vld [vmem:[%s1188 + $0xc] sm:$0xf]
      %v1197 = vunpack.c.l.b16 %v1189
      %v1198 = vunpack.c.l.b16 %v1190
      %v1199 = vunpack.c.l.b16 %v1191
      %v1200 = vunpack.c.l.b16 %v1192
      %v1201 = vpack.c.b16 %v1198, %v1197
      %v1202 = vpack.c.b16 %v1200, %v1199
      %v1204 = vsel %vm374, %v1201, 0
      %v1207 = vsel %vm374, %v1202, 0
      %1209 = vmatprep.subr.bf16.mxu0 0
      %1210 = vmatpush1.bf16.msra.mxu0 0
      %1211 = vmatprep.subr.bf16.mxu0 0
      %1212 = vmatpush1.bf16.msra.mxu0 0
      %1213 = vmatprep.subr.bf16.mxu0 0
      %1214 = vmatpush1.bf16.msra.mxu0 0
      %1215 = vmatprep.subr.bf16.mxu0 0
      %1216 = vmatpush1.bf16.msra.mxu0 0
      %1217 = vmatprep.subr.bf16.mxu0 0
      %1218 = vmatpush1.bf16.msra.mxu0 0
      %1219 = vmatprep.subr.bf16.mxu0 0
      %1220 = vmatpush1.bf16.msra.mxu0 0
      %1221 = vmatprep.subr.bf16.mxu0 %v1187
      %1222 = vmatpush1.bf16.msra.mxu0 %v1186
      %1223 = vmatprep.subr.bf16.mxu0 %v1185
      %1224 = vmatpush1.bf16.msra.mxu0 %v1184
      %1225 = vmatprep.subr.bf16.mxu0 0
      %1226 = vmatpush2.bf16.msra.mxu0 0
      %1227 = vmatprep.subr.bf16.mxu0 0
      %1228 = vmatpush2.bf16.msra.mxu0 0
      %1229 = vmatprep.subr.bf16.mxu0 0
      %1230 = vmatpush2.bf16.msra.mxu0 0
      %1231 = vmatprep.subr.bf16.mxu0 0
      %1232 = vmatpush2.bf16.msra.mxu0 0
      %1233 = vmatprep.subr.bf16.mxu0 0
      %1234 = vmatpush2.bf16.msra.mxu0 0
      %1235 = vmatprep.subr.bf16.mxu0 0
      %1236 = vmatpush2.bf16.msra.mxu0 0
      %1237 = vmatprep.subr.bf16.mxu0 0
      %1238 = vmatpush2.bf16.msra.mxu0 0
      %1239 = vmatprep.subr.bf16.mxu0 0
      %1240 = vmatpush2.bf16.msra.mxu0 0
      %1241 = vmatprep.mubr.bf16.mxu0 0
      %1242 = vmatmul.mubr.bf16.gmra.mxu0 %v1204
      %v1243 = vpop.f32.mrf.mxu0
      %v1244 = vadd.f32 0.0, %v1243
      %v1245 = vpop.f32.mrf.mxu0
      %v1246 = vadd.f32 0.0, %v1245
      %v1247 = vpop.f32.mrf.mxu0
      %v1248 = vadd.f32 0.0, %v1247
      %v1249 = vpop.f32.mrf.mxu0
      %v1250 = vadd.f32 0.0, %v1249
      %1251 = vmatprep.mubr.bf16.mxu0 0
      %1252 = vmatmul.mubr.bf16.gmra.mxu0 %v1207
      %v1253 = vpop.f32.mrf.mxu0
      %v1254 = vadd.f32 0.0, %v1253
      %v1255 = vpop.f32.mrf.mxu0
      %v1256 = vadd.f32 0.0, %v1255
      %v1257 = vpop.f32.mrf.mxu0
      %v1258 = vadd.f32 0.0, %v1257
      %v1259 = vpop.f32.mrf.mxu0
      %v1260 = vadd.f32 0.0, %v1259
      %1261 = vdwg.mxu0
      %v1262 = vadd.f32 %v1130, %v1244
      %v1263 = vadd.f32 %v1131, %v1246
      %v1264 = vadd.f32 %v1132, %v1248
      %v1265 = vadd.f32 %v1133, %v1250
      %v1266 = vadd.f32 %v1134, %v1254
      %v1267 = vadd.f32 %v1135, %v1256
      %v1268 = vadd.f32 %v1136, %v1258
      %v1269 = vadd.f32 %v1137, %v1260
      %1270 = vrot.lane.b32.xlu0 %v246, 111
      %v1271 = vpop.permute.xlu0 %1270
      %1272 = vrot.lane.b32.xlu0 %v248, 111
      %v1273 = vpop.permute.xlu0 %1272
      %1274 = vrot.lane.b32.xlu0 %v250, 111
      %v1275 = vpop.permute.xlu0 %1274
      %1276 = vrot.lane.b32.xlu0 %v252, 111
      %v1277 = vpop.permute.xlu0 %1276
      %1278 = vrot.lane.b32.xlu0 %v247, 111
      %v1279 = vpop.permute.xlu0 %1278
      %1280 = vrot.lane.b32.xlu0 %v249, 111
      %v1281 = vpop.permute.xlu0 %1280
      %1282 = vrot.lane.b32.xlu0 %v251, 111
      %v1283 = vpop.permute.xlu0 %1282
      %1284 = vrot.lane.b32.xlu0 %v253, 111
      %v1285 = vpop.permute.xlu0 %1284
      %vm1286 = vcmp.lt.s32.totalorder %v271, 111
      %v1287 = vsel %vm1286, %v1271, %v1279
      %v1288 = vsel %vm1286, %v1273, %v1281
      %v1289 = vsel %vm1286, %v1275, %v1283
      %v1290 = vsel %vm1286, %v1277, %v1285
      %v1291 = vsel %vm1286, %v1279, %v1271
      %v1292 = vsel %vm1286, %v1281, %v1273
      %v1293 = vsel %vm1286, %v1283, %v1275
      %v1294 = vsel %vm1286, %v1285, %v1277
      %s1295 = scalar_lea.vmem %s3, 16
      %v1296 = vld [vmem:[%s1295] sm:$0x3]
      %v1298 = vlaneseq
      %v1299 = vshrl.u32 %v1298, 7
      %v1300 = vsub.s32 0, %v1299
      %v1301 = vrot.slane %v1296, %v1300
      %v1302 = vlaneseq
      %v1303 = vshrl.u32 %v1302, 7
      %v1304 = vsub.s32 1, %v1303
      %v1305 = vrot.slane %v1296, %v1304
      %v1308 = vmul.f32 %v1287, %v1301
      %v1309 = vmul.f32 %v1291, %v1305
      %v1310 = vmul.f32 %v1288, %v1301
      %v1311 = vmul.f32 %v1292, %v1305
      %v1312 = vmul.f32 %v1289, %v1301
      %v1313 = vmul.f32 %v1293, %v1305
      %v1314 = vmul.f32 %v1290, %v1301
      %v1315 = vmul.f32 %v1294, %v1305
      %v1316 = vpack.c.bf16 %v1310, %v1308
      %v1317 = vpack.c.bf16 %v1311, %v1309
      %v1318 = vpack.c.bf16 %v1314, %v1312
      %v1319 = vpack.c.bf16 %v1315, %v1313
      %s1320 = scalar_lea.vmem %s1, 128
      %v1321 = vld [vmem:[%s1320] sm:$0xf]
      %v1322 = vld [vmem:[%s1320 + $0x4] sm:$0xf]
      %v1323 = vld [vmem:[%s1320 + $0x8] sm:$0xf]
      %v1324 = vld [vmem:[%s1320 + $0xc] sm:$0xf]
      %v1329 = vunpack.c.l.b16 %v1321
      %v1330 = vunpack.c.l.b16 %v1322
      %v1331 = vunpack.c.l.b16 %v1323
      %v1332 = vunpack.c.l.b16 %v1324
      %v1333 = vpack.c.b16 %v1330, %v1329
      %v1334 = vpack.c.b16 %v1332, %v1331
      %v1336 = vsel %vm374, %v1333, 0
      %v1339 = vsel %vm374, %v1334, 0
      %1341 = vmatprep.subr.bf16.mxu0 0
      %1342 = vmatpush1.bf16.msra.mxu0 0
      %1343 = vmatprep.subr.bf16.mxu0 0
      %1344 = vmatpush1.bf16.msra.mxu0 0
      %1345 = vmatprep.subr.bf16.mxu0 0
      %1346 = vmatpush1.bf16.msra.mxu0 0
      %1347 = vmatprep.subr.bf16.mxu0 0
      %1348 = vmatpush1.bf16.msra.mxu0 0
      %1349 = vmatprep.subr.bf16.mxu0 0
      %1350 = vmatpush1.bf16.msra.mxu0 0
      %1351 = vmatprep.subr.bf16.mxu0 0
      %1352 = vmatpush1.bf16.msra.mxu0 0
      %1353 = vmatprep.subr.bf16.mxu0 %v1319
      %1354 = vmatpush1.bf16.msra.mxu0 %v1318
      %1355 = vmatprep.subr.bf16.mxu0 %v1317
      %1356 = vmatpush1.bf16.msra.mxu0 %v1316
      %1357 = vmatprep.subr.bf16.mxu0 0
      %1358 = vmatpush2.bf16.msra.mxu0 0
      %1359 = vmatprep.subr.bf16.mxu0 0
      %1360 = vmatpush2.bf16.msra.mxu0 0
      %1361 = vmatprep.subr.bf16.mxu0 0
      %1362 = vmatpush2.bf16.msra.mxu0 0
      %1363 = vmatprep.subr.bf16.mxu0 0
      %1364 = vmatpush2.bf16.msra.mxu0 0
      %1365 = vmatprep.subr.bf16.mxu0 0
      %1366 = vmatpush2.bf16.msra.mxu0 0
      %1367 = vmatprep.subr.bf16.mxu0 0
      %1368 = vmatpush2.bf16.msra.mxu0 0
      %1369 = vmatprep.subr.bf16.mxu0 0
      %1370 = vmatpush2.bf16.msra.mxu0 0
      %1371 = vmatprep.subr.bf16.mxu0 0
      %1372 = vmatpush2.bf16.msra.mxu0 0
      %1373 = vmatprep.mubr.bf16.mxu0 0
      %1374 = vmatmul.mubr.bf16.gmra.mxu0 %v1336
      %v1375 = vpop.f32.mrf.mxu0
      %v1376 = vadd.f32 0.0, %v1375
      %v1377 = vpop.f32.mrf.mxu0
      %v1378 = vadd.f32 0.0, %v1377
      %v1379 = vpop.f32.mrf.mxu0
      %v1380 = vadd.f32 0.0, %v1379
      %v1381 = vpop.f32.mrf.mxu0
      %v1382 = vadd.f32 0.0, %v1381
      %1383 = vmatprep.mubr.bf16.mxu0 0
      %1384 = vmatmul.mubr.bf16.gmra.mxu0 %v1339
      %v1385 = vpop.f32.mrf.mxu0
      %v1386 = vadd.f32 0.0, %v1385
      %v1387 = vpop.f32.mrf.mxu0
      %v1388 = vadd.f32 0.0, %v1387
      %v1389 = vpop.f32.mrf.mxu0
      %v1390 = vadd.f32 0.0, %v1389
      %v1391 = vpop.f32.mrf.mxu0
      %v1392 = vadd.f32 0.0, %v1391
      %1393 = vdwg.mxu0
      %v1394 = vadd.f32 %v1262, %v1376
      %v1395 = vadd.f32 %v1263, %v1378
      %v1396 = vadd.f32 %v1264, %v1380
      %v1397 = vadd.f32 %v1265, %v1382
      %v1398 = vadd.f32 %v1266, %v1386
      %v1399 = vadd.f32 %v1267, %v1388
      %v1400 = vadd.f32 %v1268, %v1390
      %v1401 = vadd.f32 %v1269, %v1392
      %v1402 = vld [vmem:[%s2] sm:$0xff]
      %v1403 = vld [vmem:[%s2 + $0x8] sm:$0xff]
      %v1404 = vld [vmem:[%s2 + $0x10] sm:$0xff]
      %v1405 = vld [vmem:[%s2 + $0x18] sm:$0xff]
      %1407 = vset.pattern.permute.xlu0 0
      %1408 = vperm.xlu0 %1407, %v1402
      %v1409 = vpop.permute.xlu0 %1408
      %1412 = vset.pattern.permute.xlu0 0
      %1413 = vperm.xlu0 %1412, %v1403
      %v1414 = vpop.permute.xlu0 %1413
      %1417 = vset.pattern.permute.xlu0 0
      %1418 = vperm.xlu0 %1417, %v1404
      %v1419 = vpop.permute.xlu0 %1418
      %1422 = vset.pattern.permute.xlu0 0
      %1423 = vperm.xlu0 %1422, %v1405
      %v1424 = vpop.permute.xlu0 %1423
      %v1426 = vadd.f32 %v1394, %v1409
      %v1427 = vadd.f32 %v1395, %v1409
      %v1428 = vadd.f32 %v1396, %v1414
      %v1429 = vadd.f32 %v1397, %v1414
      %v1430 = vadd.f32 %v1398, %v1419
      %v1431 = vadd.f32 %v1399, %v1419
      %v1432 = vadd.f32 %v1400, %v1424
      %v1433 = vadd.f32 %v1401, %v1424
      %vm1434 = vcmp.gt.f32.partialorder %v1426, 0.0
      %vm1435 = vcmp.gt.f32.partialorder %v1427, 0.0
      %vm1436 = vcmp.gt.f32.partialorder %v1428, 0.0
      %vm1437 = vcmp.gt.f32.partialorder %v1429, 0.0
      %vm1438 = vcmp.gt.f32.partialorder %v1430, 0.0
      %vm1439 = vcmp.gt.f32.partialorder %v1431, 0.0
      %vm1440 = vcmp.gt.f32.partialorder %v1432, 0.0
      %vm1441 = vcmp.gt.f32.partialorder %v1433, 0.0
      %v1442 = vmul.f32 %v1426, 0.2
      %v1443 = vmul.f32 %v1427, 0.2
      %v1444 = vmul.f32 %v1428, 0.2
      %v1445 = vmul.f32 %v1429, 0.2
      %v1446 = vmul.f32 %v1430, 0.2
      %v1447 = vmul.f32 %v1431, 0.2
      %v1448 = vmul.f32 %v1432, 0.2
      %v1449 = vmul.f32 %v1433, 0.2
      %v1450 = vsel %vm1434, %v1426, %v1442
      %v1451 = vsel %vm1435, %v1427, %v1443
      %v1452 = vsel %vm1436, %v1428, %v1444
      %v1453 = vsel %vm1437, %v1429, %v1445
      %v1454 = vsel %vm1438, %v1430, %v1446
      %v1455 = vsel %vm1439, %v1431, %v1447
      %v1456 = vsel %vm1440, %v1432, %v1448
      %v1457 = vsel %vm1441, %v1433, %v1449
      %v1458 = vld [vmem:[%s239] sm:$0xff]
      %v1459 = vld [vmem:[%s239 + $0x8] sm:$0xff]
      %v1460 = vld [vmem:[%s239 + $0x10] sm:$0xff]
      %v1461 = vld [vmem:[%s239 + $0x18] sm:$0xff]
      %v1462 = vld [vmem:[%s239 + $0x20] sm:$0xff]
      %v1463 = vld [vmem:[%s239 + $0x28] sm:$0xff]
      %v1464 = vld [vmem:[%s239 + $0x30] sm:$0xff]
      %v1465 = vld [vmem:[%s239 + $0x38] sm:$0xff]
      %v1466 = vadd.f32 %v1450, %v1458
      %v1467 = vadd.f32 %v1451, %v1459
      %v1468 = vadd.f32 %v1452, %v1460
      %v1469 = vadd.f32 %v1453, %v1461
      %v1470 = vadd.f32 %v1454, %v1462
      %v1471 = vadd.f32 %v1455, %v1463
      %v1472 = vadd.f32 %v1456, %v1464
      %v1473 = vadd.f32 %v1457, %v1465
      %1474 = vst [vmem:[%s244] sm:$0xff] %v1466
      %1475 = vst [vmem:[%s244 + $0x8] sm:$0xff] %v1467
      %1476 = vst [vmem:[%s244 + $0x10] sm:$0xff] %v1468
      %1477 = vst [vmem:[%s244 + $0x18] sm:$0xff] %v1469
      %1478 = vst [vmem:[%s244 + $0x20] sm:$0xff] %v1470
      %1479 = vst [vmem:[%s244 + $0x28] sm:$0xff] %v1471
      %1480 = vst [vmem:[%s244 + $0x30] sm:$0xff] %v1472
      %1481 = vst [vmem:[%s244 + $0x38] sm:$0xff] %v1473
      %p1482 = scmp.lt.s32.totalorder %s16, 3
      %s1483 = scalar_select %p1482, %s16, 3
      %s1484 = smul.addr %s1483, 8
      %s1485 = smul.addr %s1484, 8
      %s1486 = scalar_lea.vmem %s5, %s1485
      // Predicated region
      $region41: #{_lambda_.9} parent=39 // pred_check
        %p1487 = pneg %p149
      $region42: #{_lambda_.9} parent=39 // pred_check_branch
        %1489 = sbr.rel (%p1487) target = $region44
      $region43: #{_lambda_.9} parent=39 // pred_region
        _
      $region44: #{_lambda_.9} parent=39 // pred_fallthru
        _
    $region40: #{_lambda_.9} parent=5 // pred_fallthru
      _
    %p1490 = scmp.le.s32.totalorder 2, %s11
    // Predicated region
    $region45: #{_lambda_.9} parent=5 // pred_check
      %p1491 = pneg %p1490
    $region46: #{_lambda_.9} parent=5 // pred_check_branch
      %1493 = sbr.rel (%p1491) target = $region48
    $region47: #{_lambda_.9} parent=5 // pred_region
      %s1494 = ssub.s32 %s11, 2
      // Predicated region
      $region49: #{_lambda_.9} parent=47 // pred_check
        %p1495 = pneg %p155
      $region50: #{_lambda_.9} parent=47 // pred_check_branch
        %1497 = sbr.rel (%p1495) target = $region52
      $region51: #{_lambda_.9} parent=47 // pred_region
        %p1498 = scmp.lt.s32.totalorder %s17, 3
        %s1499 = scalar_select %p1498, %s17, 3
        %s1500 = smul.addr %s1499, 8
        %s1501 = smul.addr %s1500, 8
        %s1502 = scalar_lea.vmem %s5, %s1501
      $region52: #{_lambda_.9} parent=47 // pred_fallthru
        _
    $region48: #{_lambda_.9} parent=5 // pred_fallthru
      _
  $region6: #{_lambda_.9} parent=0 // loop_footer
    %s15 = sadd.s32 1, %s11
  $region7: #{_lambda_.9} parent=0 // loop_footer_branch
    %10 = sbr.rel target = $region3
  $region8: #{_lambda_.9} parent=0 // loop_exit
    _

// kernel: _lambda_.10
$region0: #{_lambda_.10}
  #allocation0 [shape = 'u32[]', space=smem, size = 0x4, offset = 0x4, fixed_abs, tag = 'smem constant byte address 0x4 - core index']
  #allocation1 [shape = 'u32[144,128]{1,0:T(1,128)}', space=vmem, size = 0x12000, scoped, tag = 'internal scratch']
  %s0 = inlined_call_operand.vmem [shape: f32[4,32,256], index: 0, kind: input, shape index: {}]
  %s1 = inlined_call_operand.vmem [shape: bf16[9,32,32], index: 1, kind: input, shape index: {}]
  %s2 = inlined_call_operand.vmem [shape: f32[32,1], index: 2, kind: input, shape index: {}]
  %s3 = inlined_call_operand.vmem [shape: f32[9,1,256], index: 3, kind: input, shape index: {}]
  %s4 = inlined_call_operand.vmem [shape: f32[4,32,256], index: 4, kind: output, shape index: {}]
  %s5 = sld [smem:[#allocation0]]
  $region49: #{_lambda_.10} parent=0
    _
  %s7 = ssub.s32 1, %s5
  %s8 = scalar_select 0, %s7, %s5
  loop: start=0, step=1, limit=6
  $region2: #{_lambda_.10} parent=0 // loop_pre_header
    _
  $region3: #{_lambda_.10} parent=0 // loop_header
    %s10 = sphi 0, %s14
    %p11 = scmp.ge.s32.totalorder %s10, 6
    %s20 = sphi 0, %s22
    %s23 = sphi 0, %s20
    %s24 = sphi 0, %s23
    %s40 = sphi 0, %s24
    %s44 = sphi 0, %s44
    %s46 = sphi 0, %s44
    %s47 = sphi 0, %s46
    %s61 = sphi 0, %s47
    %s65 = sphi 0, %s65
    %s67 = sphi 0, %s65
    %s68 = sphi 0, %s67
    %s82 = sphi 0, %s68
    %s86 = sphi 0, %s86
    %s88 = sphi 0, %s86
    %s89 = sphi 0, %s88
    %s103 = sphi 0, %s89
    %s109 = sphi 0, %s111
    %s112 = sphi 0, %s109
    %s113 = sphi 0, %s112
    %s129 = sphi 0, %s113
  $region4: #{_lambda_.10} parent=0 // loop_header_branch
    %13 = sbr.rel (%p11) target = $region8
  $region5: #{_lambda_.10} parent=0 // loop_body
    %s15 = ssub.s32 %s10, 1
    %s16 = ssub.s32 %s10, 2
    %s17 = sadd.s32 %s10, 1
    %s18 = ssub.s32 %s10, %s17
    %p19 = scmp.eq.s32.totalorder %s18, 0
    %s21 = sadd.s32 %s20, 1
    %s22 = scalar_select %p19, %s20, %s21
    %p25 = pneg %p19
    %p26 = scmp.eq.s32.totalorder %s10, 3
    %p27 = por %p25, %p26
    %p28 = scmp.ne.s32.totalorder %s20, %s23
    %p29 = scmp.eq.s32.totalorder %s10, 0
    %p30 = por %p28, %p29
    %p31 = scmp.ne.s32.totalorder %s20, %s23
    %p32 = scmp.eq.s32.totalorder %s15, 3
    %p33 = por %p31, %p32
    %p34 = scmp.ne.s32.totalorder %s23, %s24
    %p35 = scmp.eq.s32.totalorder %s15, 0
    %p36 = por %p34, %p35
    %p37 = scmp.ne.s32.totalorder %s23, %s24
    %p38 = scmp.eq.s32.totalorder %s16, 3
    %p39 = por %p37, %p38
    %p41 = scmp.ne.s32.totalorder %s24, %s40
    %p42 = scmp.eq.s32.totalorder %s16, 0
    %p43 = por %p41, %p42
    %s45 = sadd.s32 %s44, 1
    %p48 = scmp.eq.s32.totalorder %s10, 3
    %p49 = scmp.ne.s32.totalorder %s44, %s46
    %p50 = scmp.eq.s32.totalorder %s10, 0
    %p51 = por %p49, %p50
    %p52 = scmp.ne.s32.totalorder %s44, %s46
    %p53 = scmp.eq.s32.totalorder %s15, 3
    %p54 = por %p52, %p53
    %p55 = scmp.ne.s32.totalorder %s46, %s47
    %p56 = scmp.eq.s32.totalorder %s15, 0
    %p57 = por %p55, %p56
    %p58 = scmp.ne.s32.totalorder %s46, %s47
    %p59 = scmp.eq.s32.totalorder %s16, 3
    %p60 = por %p58, %p59
    %p62 = scmp.ne.s32.totalorder %s47, %s61
    %p63 = scmp.eq.s32.totalorder %s16, 0
    %p64 = por %p62, %p63
    %s66 = sadd.s32 %s65, 1
    %p69 = scmp.eq.s32.totalorder %s10, 3
    %p70 = scmp.ne.s32.totalorder %s65, %s67
    %p71 = scmp.eq.s32.totalorder %s10, 0
    %p72 = por %p70, %p71
    %p73 = scmp.ne.s32.totalorder %s65, %s67
    %p74 = scmp.eq.s32.totalorder %s15, 3
    %p75 = por %p73, %p74
    %p76 = scmp.ne.s32.totalorder %s67, %s68
    %p77 = scmp.eq.s32.totalorder %s15, 0
    %p78 = por %p76, %p77
    %p79 = scmp.ne.s32.totalorder %s67, %s68
    %p80 = scmp.eq.s32.totalorder %s16, 3
    %p81 = por %p79, %p80
    %p83 = scmp.ne.s32.totalorder %s68, %s82
    %p84 = scmp.eq.s32.totalorder %s16, 0
    %p85 = por %p83, %p84
    %s87 = sadd.s32 %s86, 1
    %p90 = scmp.eq.s32.totalorder %s10, 3
    %p91 = scmp.ne.s32.totalorder %s86, %s88
    %p92 = scmp.eq.s32.totalorder %s10, 0
    %p93 = por %p91, %p92
    %p94 = scmp.ne.s32.totalorder %s86, %s88
    %p95 = scmp.eq.s32.totalorder %s15, 3
    %p96 = por %p94, %p95
    %p97 = scmp.ne.s32.totalorder %s88, %s89
    %p98 = scmp.eq.s32.totalorder %s15, 0
    %p99 = por %p97, %p98
    %p100 = scmp.ne.s32.totalorder %s88, %s89
    %p101 = scmp.eq.s32.totalorder %s16, 3
    %p102 = por %p100, %p101
    %p104 = scmp.ne.s32.totalorder %s89, %s103
    %p105 = scmp.eq.s32.totalorder %s16, 0
    %p106 = por %p104, %p105
    %s107 = ssub.s32 %s10, %s17
    %p108 = scmp.eq.s32.totalorder %s107, 0
    %s110 = sadd.s32 %s109, 1
    %s111 = scalar_select %p108, %s109, %s110
    %p114 = pneg %p108
    %p115 = scmp.eq.s32.totalorder %s10, 3
    %p116 = por %p114, %p115
    %p117 = scmp.ne.s32.totalorder %s109, %s112
    %p118 = scmp.eq.s32.totalorder %s10, 0
    %p119 = por %p117, %p118
    %p120 = scmp.ne.s32.totalorder %s109, %s112
    %p121 = scmp.eq.s32.totalorder %s15, 3
    %p122 = por %p120, %p121
    %p123 = scmp.ne.s32.totalorder %s112, %s113
    %p124 = scmp.eq.s32.totalorder %s15, 0
    %p125 = por %p123, %p124
    %p126 = scmp.ne.s32.totalorder %s112, %s113
    %p127 = scmp.eq.s32.totalorder %s16, 3
    %p128 = por %p126, %p127
    %p130 = scmp.ne.s32.totalorder %s113, %s129
    %p131 = scmp.eq.s32.totalorder %s16, 0
    %p132 = por %p130, %p131
    %p133 = scmp.le.s32.totalorder 1, %s10
    %p134 = scmp.lt.s32.totalorder %s10, 5
    %p135 = pnand %p133, %p134
    %p136 = pneg %p135
    // Predicated region
    $region9: #{_lambda_.10} parent=5 // pred_check
      _
    $region10: #{_lambda_.10} parent=5 // pred_check_branch
      %138 = sbr.rel (%p135) target = $region12
    $region11: #{_lambda_.10} parent=5 // pred_region
      %s139 = ssub.s32 %s10, 1
      // Predicated region
      $region13: #{_lambda_.10} parent=11 // pred_check
        %p140 = pneg %p57
      $region14: #{_lambda_.10} parent=11 // pred_check_branch
        %142 = sbr.rel (%p140) target = $region16
      $region15: #{_lambda_.10} parent=11 // pred_region
        _
      $region16: #{_lambda_.10} parent=11 // pred_fallthru
        _
      // Predicated region
      $region17: #{_lambda_.10} parent=11 // pred_check
        %p143 = pneg %p78
      $region18: #{_lambda_.10} parent=11 // pred_check_branch
        %145 = sbr.rel (%p143) target = $region20
      $region19: #{_lambda_.10} parent=11 // pred_region
        _
      $region20: #{_lambda_.10} parent=11 // pred_fallthru
        _
      // Predicated region
      $region21: #{_lambda_.10} parent=11 // pred_check
        %p146 = pneg %p99
      $region22: #{_lambda_.10} parent=11 // pred_check_branch
        %148 = sbr.rel (%p146) target = $region24
      $region23: #{_lambda_.10} parent=11 // pred_region
        _
      $region24: #{_lambda_.10} parent=11 // pred_fallthru
        _
    $region12: #{_lambda_.10} parent=5 // pred_fallthru
      _
    %p149 = scmp.lt.s32.totalorder %s10, 4
    // Predicated region
    $region25: #{_lambda_.10} parent=5 // pred_check
      %p150 = pneg %p149
    $region26: #{_lambda_.10} parent=5 // pred_check_branch
      %152 = sbr.rel (%p150) target = $region28
    $region27: #{_lambda_.10} parent=5 // pred_region
      // Predicated region
      $region29: #{_lambda_.10} parent=27 // pred_check
        %p153 = pneg %p30
      $region30: #{_lambda_.10} parent=27 // pred_check_branch
        %155 = sbr.rel (%p153) target = $region32
      $region31: #{_lambda_.10} parent=27 // pred_region
        %p156 = scmp.lt.s32.totalorder %s10, 3
        %s157 = scalar_select %p156, %s10, 3
        %s158 = smul.addr %s157, 8
        %s159 = smul.addr %s158, 8
        %s160 = scalar_lea.vmem %s0, %s159
      $region32: #{_lambda_.10} parent=27 // pred_fallthru
        _
    $region28: #{_lambda_.10} parent=5 // pred_fallthru
      _
    %p161 = scmp.le.s32.totalorder 1, %s10
    %p162 = scmp.lt.s32.totalorder %s10, 5
    %p163 = pnand %p161, %p162
    %p164 = pneg %p163
    // Predicated region
    $region33: #{_lambda_.10} parent=5 // pred_check
      _
    $region34: #{_lambda_.10} parent=5 // pred_check_branch
      %166 = sbr.rel (%p163) target = $region36
    $region35: #{_lambda_.10} parent=5 // pred_region
      %s167 = ssub.s32 %s10, 1
      %p168 = scmp.lt.s32.totalorder %s15, 3
      %s169 = scalar_select %p168, %s15, 3
      %s170 = smul.addr %s169, 8
      %s171 = smul.addr %s170, 8
      %s172 = scalar_lea.vmem %s0, %s171
      %p173 = pneg %p36
      %p174 = pneg %p33
      %p175 = pneg %p57
      %p176 = pneg %p54
      %p177 = pneg %p78
      %p178 = pneg %p75
      %p179 = pneg %p99
      %p180 = pneg %p96
      %p181 = pneg %p125
      %p182 = pneg %p122
      %p183 = scmp.lt.s32.totalorder %s15, 3
      %s184 = scalar_select %p183, %s15, 3
      %s185 = smul.addr %s184, 8
      %s186 = smul.addr %s185, 8
      %s187 = scalar_lea.vmem %s4, %s186
      %p188 = scmp.lt.s32.totalorder %s15, 3
      %s189 = scalar_select %p188, %s15, 3
      %s190 = smul.addr %s189, 8
      %s191 = smul.addr %s190, 8
      %s192 = scalar_lea.vmem %s0, %s191
      %p193 = scmp.lt.s32.totalorder %s15, 3
      %s194 = scalar_select %p193, %s15, 3
      %s195 = smul.addr %s194, 8
      %s196 = smul.addr %s195, 8
      %s197 = scalar_lea.vmem %s4, %s196
      %v199 = vld [vmem:[%s192] sm:$0xff]
      %v200 = vld [vmem:[%s192 + $0x8] sm:$0xff]
      %v201 = vld [vmem:[%s192 + $0x10] sm:$0xff]
      %v202 = vld [vmem:[%s192 + $0x18] sm:$0xff]
      %v203 = vld [vmem:[%s192 + $0x20] sm:$0xff]
      %v204 = vld [vmem:[%s192 + $0x28] sm:$0xff]
      %v205 = vld [vmem:[%s192 + $0x30] sm:$0xff]
      %v206 = vld [vmem:[%s192 + $0x38] sm:$0xff]
      %207 = vrot.lane.b32.xlu0 %v199, 34
      %v208 = vpop.permute.xlu0 %207
      %209 = vrot.lane.b32.xlu0 %v201, 34
      %v210 = vpop.permute.xlu0 %209
      %211 = vrot.lane.b32.xlu0 %v203, 34
      %v212 = vpop.permute.xlu0 %211
      %213 = vrot.lane.b32.xlu0 %v205, 34
      %v214 = vpop.permute.xlu0 %213
      %215 = vrot.lane.b32.xlu0 %v200, 34
      %v216 = vpop.permute.xlu0 %215
      %217 = vrot.lane.b32.xlu0 %v202, 34
      %v218 = vpop.permute.xlu0 %217
      %219 = vrot.lane.b32.xlu0 %v204, 34
      %v220 = vpop.permute.xlu0 %219
      %221 = vrot.lane.b32.xlu0 %v206, 34
      %v222 = vpop.permute.xlu0 %221
      %v223 = vlaneseq
      %v224 = vand.u32 %v223, 127
      %vm225 = vcmp.lt.s32.totalorder %v224, 34
      %v226 = vsel %vm225, %v208, %v216
      %v227 = vsel %vm225, %v210, %v218
      %v228 = vsel %vm225, %v212, %v220
      %v229 = vsel %vm225, %v214, %v222
      %v230 = vsel %vm225, %v216, %v208
      %v231 = vsel %vm225, %v218, %v210
      %v232 = vsel %vm225, %v220, %v212
      %v233 = vsel %vm225, %v222, %v214
      %v234 = vld [vmem:[%s3] sm:$0x3]
      %v236 = vlaneseq
      %v237 = vshrl.u32 %v236, 7
      %v238 = vsub.s32 0, %v237
      %v239 = vrot.slane %v234, %v238
      %v240 = vlaneseq
      %v241 = vshrl.u32 %v240, 7
      %v242 = vsub.s32 1, %v241
      %v243 = vrot.slane %v234, %v242
      %v246 = vmul.f32 %v230, %v239
      %v247 = vmul.f32 %v226, %v243
      %v248 = vmul.f32 %v231, %v239
      %v249 = vmul.f32 %v227, %v243
      %v250 = vmul.f32 %v232, %v239
      %v251 = vmul.f32 %v228, %v243
      %v252 = vmul.f32 %v233, %v239
      %v253 = vmul.f32 %v229, %v243
      %v254 = vpack.c.bf16 %v248, %v246
      %v255 = vpack.c.bf16 %v249, %v247
      %v256 = vpack.c.bf16 %v252, %v250
      %v257 = vpack.c.bf16 %v253, %v251
      %v258 = vld [vmem:[%s1] sm:$0xf]
      %v259 = vld [vmem:[%s1 + $0x4] sm:$0xf]
      %v260 = vld [vmem:[%s1 + $0x8] sm:$0xf]
      %v261 = vld [vmem:[%s1 + $0xc] sm:$0xf]
      %262 = vrot.lane.b32.xlu0 %v199, 32
      %v263 = vpop.permute.xlu0 %262
      %264 = vrot.lane.b32.xlu0 %v201, 32
      %v265 = vpop.permute.xlu0 %264
      %266 = vrot.lane.b32.xlu0 %v203, 32
      %v267 = vpop.permute.xlu0 %266
      %268 = vrot.lane.b32.xlu0 %v205, 32
      %v269 = vpop.permute.xlu0 %268
      %270 = vrot.lane.b32.xlu0 %v200, 32
      %v271 = vpop.permute.xlu0 %270
      %272 = vrot.lane.b32.xlu0 %v202, 32
      %v273 = vpop.permute.xlu0 %272
      %274 = vrot.lane.b32.xlu0 %v204, 32
      %v275 = vpop.permute.xlu0 %274
      %276 = vrot.lane.b32.xlu0 %v206, 32
      %v277 = vpop.permute.xlu0 %276
      %vm278 = vcmp.lt.s32.totalorder %v224, 32
      %v279 = vsel %vm278, %v263, %v271
      %v280 = vsel %vm278, %v265, %v273
      %v281 = vsel %vm278, %v267, %v275
      %v282 = vsel %vm278, %v269, %v277
      %v283 = vsel %vm278, %v271, %v263
      %v284 = vsel %vm278, %v273, %v265
      %v285 = vsel %vm278, %v275, %v267
      %v286 = vsel %vm278, %v277, %v269
      %s287 = scalar_lea.vmem %s3, 2
      %v288 = vld [vmem:[%s287] sm:$0x3]
      %v290 = vlaneseq
      %v291 = vshrl.u32 %v290, 7
      %v292 = vsub.s32 0, %v291
      %v293 = vrot.slane %v288, %v292
      %v294 = vlaneseq
      %v295 = vshrl.u32 %v294, 7
      %v296 = vsub.s32 1, %v295
      %v297 = vrot.slane %v288, %v296
      %v300 = vmul.f32 %v283, %v293
      %v301 = vmul.f32 %v279, %v297
      %v302 = vmul.f32 %v284, %v293
      %v303 = vmul.f32 %v280, %v297
      %v304 = vmul.f32 %v285, %v293
      %v305 = vmul.f32 %v281, %v297
      %v306 = vmul.f32 %v286, %v293
      %v307 = vmul.f32 %v282, %v297
      %v308 = vpack.c.bf16 %v302, %v300
      %v309 = vpack.c.bf16 %v303, %v301
      %v310 = vpack.c.bf16 %v306, %v304
      %v311 = vpack.c.bf16 %v307, %v305
      %s312 = scalar_lea.vmem %s1, 16
      %v313 = vld [vmem:[%s312] sm:$0xf]
      %v314 = vld [vmem:[%s312 + $0x4] sm:$0xf]
      %v315 = vld [vmem:[%s312 + $0x8] sm:$0xf]
      %v316 = vld [vmem:[%s312 + $0xc] sm:$0xf]
      %v321 = vunpack.c.l.b16 %v313
      %v322 = vunpack.c.l.b16 %v314
      %v323 = vunpack.c.l.b16 %v315
      %v324 = vunpack.c.l.b16 %v316
      %v325 = vpack.c.b16 %v322, %v321
      %v326 = vpack.c.b16 %v324, %v323
      %vm327 = vcmask 261120
      %v329 = vsel %vm327, %v325, 0
      %v332 = vsel %vm327, %v326, 0
      %334 = vmatprep.subr.bf16.mxu0 0
      %335 = vmatpush1.bf16.msra.mxu0 0
      %336 = vmatprep.subr.bf16.mxu0 0
      %337 = vmatpush1.bf16.msra.mxu0 0
      %338 = vmatprep.subr.bf16.mxu0 0
      %339 = vmatpush1.bf16.msra.mxu0 0
      %340 = vmatprep.subr.bf16.mxu0 0
      %341 = vmatpush1.bf16.msra.mxu0 0
      %342 = vmatprep.subr.bf16.mxu0 0
      %343 = vmatpush1.bf16.msra.mxu0 0
      %344 = vmatprep.subr.bf16.mxu0 0
      %345 = vmatpush1.bf16.msra.mxu0 0
      %346 = vmatprep.subr.bf16.mxu0 %v311
      %347 = vmatpush1.bf16.msra.mxu0 %v310
      %348 = vmatprep.subr.bf16.mxu0 %v309
      %349 = vmatpush1.bf16.msra.mxu0 %v308
      %350 = vmatprep.subr.bf16.mxu0 0
      %351 = vmatpush2.bf16.msra.mxu0 0
      %352 = vmatprep.subr.bf16.mxu0 0
      %353 = vmatpush2.bf16.msra.mxu0 0
      %354 = vmatprep.subr.bf16.mxu0 0
      %355 = vmatpush2.bf16.msra.mxu0 0
      %356 = vmatprep.subr.bf16.mxu0 0
      %357 = vmatpush2.bf16.msra.mxu0 0
      %358 = vmatprep.subr.bf16.mxu0 0
      %359 = vmatpush2.bf16.msra.mxu0 0
      %360 = vmatprep.subr.bf16.mxu0 0
      %361 = vmatpush2.bf16.msra.mxu0 0
      %362 = vmatprep.subr.bf16.mxu0 0
      %363 = vmatpush2.bf16.msra.mxu0 0
      %364 = vmatprep.subr.bf16.mxu0 0
      %365 = vmatpush2.bf16.msra.mxu0 0
      %366 = vmatprep.mubr.bf16.mxu0 0
      %367 = vmatmul.mubr.bf16.gmra.mxu0 %v329
      %v368 = vpop.f32.mrf.mxu0
      %v369 = vadd.f32 0.0, %v368
      %v370 = vpop.f32.mrf.mxu0
      %v371 = vadd.f32 0.0, %v370
      %v372 = vpop.f32.mrf.mxu0
      %v373 = vadd.f32 0.0, %v372
      %v374 = vpop.f32.mrf.mxu0
      %v375 = vadd.f32 0.0, %v374
      %376 = vmatprep.mubr.bf16.mxu0 0
      %377 = vmatmul.mubr.bf16.gmra.mxu0 %v332
      %v378 = vpop.f32.mrf.mxu0
      %v379 = vadd.f32 0.0, %v378
      %v380 = vpop.f32.mrf.mxu0
      %v381 = vadd.f32 0.0, %v380
      %v382 = vpop.f32.mrf.mxu0
      %v383 = vadd.f32 0.0, %v382
      %v384 = vpop.f32.mrf.mxu0
      %v385 = vadd.f32 0.0, %v384
      %386 = vdwg.mxu0
      %v391 = vunpack.c.l.b16 %v258
      %v392 = vunpack.c.l.b16 %v259
      %v393 = vunpack.c.l.b16 %v260
      %v394 = vunpack.c.l.b16 %v261
      %v395 = vpack.c.b16 %v392, %v391
      %v396 = vpack.c.b16 %v394, %v393
      %v398 = vsel %vm327, %v395, 0
      %v401 = vsel %vm327, %v396, 0
      %403 = vmatprep.subr.bf16.mxu0 0
      %404 = vmatpush1.bf16.msra.mxu0 0
      %405 = vmatprep.subr.bf16.mxu0 0
      %406 = vmatpush1.bf16.msra.mxu0 0
      %407 = vmatprep.subr.bf16.mxu0 0
      %408 = vmatpush1.bf16.msra.mxu0 0
      %409 = vmatprep.subr.bf16.mxu0 0
      %410 = vmatpush1.bf16.msra.mxu0 0
      %411 = vmatprep.subr.bf16.mxu0 0
      %412 = vmatpush1.bf16.msra.mxu0 0
      %413 = vmatprep.subr.bf16.mxu0 0
      %414 = vmatpush1.bf16.msra.mxu0 0
      %415 = vmatprep.subr.bf16.mxu0 %v257
      %416 = vmatpush1.bf16.msra.mxu0 %v256
      %417 = vmatprep.subr.bf16.mxu0 %v255
      %418 = vmatpush1.bf16.msra.mxu0 %v254
      %419 = vmatprep.subr.bf16.mxu0 0
      %420 = vmatpush2.bf16.msra.mxu0 0
      %421 = vmatprep.subr.bf16.mxu0 0
      %422 = vmatpush2.bf16.msra.mxu0 0
      %423 = vmatprep.subr.bf16.mxu0 0
      %424 = vmatpush2.bf16.msra.mxu0 0
      %425 = vmatprep.subr.bf16.mxu0 0
      %426 = vmatpush2.bf16.msra.mxu0 0
      %427 = vmatprep.subr.bf16.mxu0 0
      %428 = vmatpush2.bf16.msra.mxu0 0
      %429 = vmatprep.subr.bf16.mxu0 0
      %430 = vmatpush2.bf16.msra.mxu0 0
      %431 = vmatprep.subr.bf16.mxu0 0
      %432 = vmatpush2.bf16.msra.mxu0 0
      %433 = vmatprep.subr.bf16.mxu0 0
      %434 = vmatpush2.bf16.msra.mxu0 0
      %435 = vmatprep.mubr.bf16.mxu0 0
      %436 = vmatmul.mubr.bf16.gmra.mxu0 %v398
      %v437 = vpop.f32.mrf.mxu0
      %v438 = vadd.f32 %v369, %v437
      %v439 = vpop.f32.mrf.mxu0
      %v440 = vadd.f32 %v371, %v439
      %v441 = vpop.f32.mrf.mxu0
      %v442 = vadd.f32 %v373, %v441
      %v443 = vpop.f32.mrf.mxu0
      %v444 = vadd.f32 %v375, %v443
      %445 = vmatprep.mubr.bf16.mxu0 0
      %446 = vmatmul.mubr.bf16.gmra.mxu0 %v401
      %v447 = vpop.f32.mrf.mxu0
      %v448 = vadd.f32 %v379, %v447
      %v449 = vpop.f32.mrf.mxu0
      %v450 = vadd.f32 %v381, %v449
      %v451 = vpop.f32.mrf.mxu0
      %v452 = vadd.f32 %v383, %v451
      %v453 = vpop.f32.mrf.mxu0
      %v454 = vadd.f32 %v385, %v453
      %455 = vdwg.mxu0
      %456 = vrot.lane.b32.xlu0 %v199, 30
      %v457 = vpop.permute.xlu0 %456
      %458 = vrot.lane.b32.xlu0 %v201, 30
      %v459 = vpop.permute.xlu0 %458
      %460 = vrot.lane.b32.xlu0 %v203, 30
      %v461 = vpop.permute.xlu0 %460
      %462 = vrot.lane.b32.xlu0 %v205, 30
      %v463 = vpop.permute.xlu0 %462
      %464 = vrot.lane.b32.xlu0 %v200, 30
      %v465 = vpop.permute.xlu0 %464
      %466 = vrot.lane.b32.xlu0 %v202, 30
      %v467 = vpop.permute.xlu0 %466
      %468 = vrot.lane.b32.xlu0 %v204, 30
      %v469 = vpop.permute.xlu0 %468
      %470 = vrot.lane.b32.xlu0 %v206, 30
      %v471 = vpop.permute.xlu0 %470
      %vm472 = vcmp.lt.s32.totalorder %v224, 30
      %v473 = vsel %vm472, %v457, %v465
      %v474 = vsel %vm472, %v459, %v467
      %v475 = vsel %vm472, %v461, %v469
      %v476 = vsel %vm472, %v463, %v471
      %v477 = vsel %vm472, %v465, %v457
      %v478 = vsel %vm472, %v467, %v459
      %v479 = vsel %vm472, %v469, %v461
      %v480 = vsel %vm472, %v471, %v463
      %s481 = scalar_lea.vmem %s3, 4
      %v482 = vld [vmem:[%s481] sm:$0x3]
      %v484 = vlaneseq
      %v485 = vshrl.u32 %v484, 7
      %v486 = vsub.s32 0, %v485
      %v487 = vrot.slane %v482, %v486
      %v488 = vlaneseq
      %v489 = vshrl.u32 %v488, 7
      %v490 = vsub.s32 1, %v489
      %v491 = vrot.slane %v482, %v490
      %v494 = vmul.f32 %v477, %v487
      %v495 = vmul.f32 %v473, %v491
      %v496 = vmul.f32 %v478, %v487
      %v497 = vmul.f32 %v474, %v491
      %v498 = vmul.f32 %v479, %v487
      %v499 = vmul.f32 %v475, %v491
      %v500 = vmul.f32 %v480, %v487
      %v501 = vmul.f32 %v476, %v491
      %v502 = vpack.c.bf16 %v496, %v494
      %v503 = vpack.c.bf16 %v497, %v495
      %v504 = vpack.c.bf16 %v500, %v498
      %v505 = vpack.c.bf16 %v501, %v499
      %s506 = scalar_lea.vmem %s1, 32
      %v507 = vld [vmem:[%s506] sm:$0xf]
      %v508 = vld [vmem:[%s506 + $0x4] sm:$0xf]
      %v509 = vld [vmem:[%s506 + $0x8] sm:$0xf]
      %v510 = vld [vmem:[%s506 + $0xc] sm:$0xf]
      %v515 = vunpack.c.l.b16 %v507
      %v516 = vunpack.c.l.b16 %v508
      %v517 = vunpack.c.l.b16 %v509
      %v518 = vunpack.c.l.b16 %v510
      %v519 = vpack.c.b16 %v516, %v515
      %v520 = vpack.c.b16 %v518, %v517
      %v522 = vsel %vm327, %v519, 0
      %v525 = vsel %vm327, %v520, 0
      %527 = vmatprep.subr.bf16.mxu0 0
      %528 = vmatpush1.bf16.msra.mxu0 0
      %529 = vmatprep.subr.bf16.mxu0 0
      %530 = vmatpush1.bf16.msra.mxu0 0
      %531 = vmatprep.subr.bf16.mxu0 0
      %532 = vmatpush1.bf16.msra.mxu0 0
      %533 = vmatprep.subr.bf16.mxu0 0
      %534 = vmatpush1.bf16.msra.mxu0 0
      %535 = vmatprep.subr.bf16.mxu0 0
      %536 = vmatpush1.bf16.msra.mxu0 0
      %537 = vmatprep.subr.bf16.mxu0 0
      %538 = vmatpush1.bf16.msra.mxu0 0
      %539 = vmatprep.subr.bf16.mxu0 %v505
      %540 = vmatpush1.bf16.msra.mxu0 %v504
      %541 = vmatprep.subr.bf16.mxu0 %v503
      %542 = vmatpush1.bf16.msra.mxu0 %v502
      %543 = vmatprep.subr.bf16.mxu0 0
      %544 = vmatpush2.bf16.msra.mxu0 0
      %545 = vmatprep.subr.bf16.mxu0 0
      %546 = vmatpush2.bf16.msra.mxu0 0
      %547 = vmatprep.subr.bf16.mxu0 0
      %548 = vmatpush2.bf16.msra.mxu0 0
      %549 = vmatprep.subr.bf16.mxu0 0
      %550 = vmatpush2.bf16.msra.mxu0 0
      %551 = vmatprep.subr.bf16.mxu0 0
      %552 = vmatpush2.bf16.msra.mxu0 0
      %553 = vmatprep.subr.bf16.mxu0 0
      %554 = vmatpush2.bf16.msra.mxu0 0
      %555 = vmatprep.subr.bf16.mxu0 0
      %556 = vmatpush2.bf16.msra.mxu0 0
      %557 = vmatprep.subr.bf16.mxu0 0
      %558 = vmatpush2.bf16.msra.mxu0 0
      %559 = vmatprep.mubr.bf16.mxu0 0
      %560 = vmatmul.mubr.bf16.gmra.mxu0 %v522
      %v561 = vpop.f32.mrf.mxu0
      %v562 = vadd.f32 0.0, %v561
      %v563 = vpop.f32.mrf.mxu0
      %v564 = vadd.f32 0.0, %v563
      %v565 = vpop.f32.mrf.mxu0
      %v566 = vadd.f32 0.0, %v565
      %v567 = vpop.f32.mrf.mxu0
      %v568 = vadd.f32 0.0, %v567
      %569 = vmatprep.mubr.bf16.mxu0 0
      %570 = vmatmul.mubr.bf16.gmra.mxu0 %v525
      %v571 = vpop.f32.mrf.mxu0
      %v572 = vadd.f32 0.0, %v571
      %v573 = vpop.f32.mrf.mxu0
      %v574 = vadd.f32 0.0, %v573
      %v575 = vpop.f32.mrf.mxu0
      %v576 = vadd.f32 0.0, %v575
      %v577 = vpop.f32.mrf.mxu0
      %v578 = vadd.f32 0.0, %v577
      %579 = vdwg.mxu0
      %v580 = vadd.f32 %v438, %v562
      %v581 = vadd.f32 %v440, %v564
      %v582 = vadd.f32 %v442, %v566
      %v583 = vadd.f32 %v444, %v568
      %v584 = vadd.f32 %v448, %v572
      %v585 = vadd.f32 %v450, %v574
      %v586 = vadd.f32 %v452, %v576
      %v587 = vadd.f32 %v454, %v578
      %588 = vrot.lane.b32.xlu0 %v199, 2
      %v589 = vpop.permute.xlu0 %588
      %590 = vrot.lane.b32.xlu0 %v201, 2
      %v591 = vpop.permute.xlu0 %590
      %592 = vrot.lane.b32.xlu0 %v203, 2
      %v593 = vpop.permute.xlu0 %592
      %594 = vrot.lane.b32.xlu0 %v205, 2
      %v595 = vpop.permute.xlu0 %594
      %596 = vrot.lane.b32.xlu0 %v200, 2
      %v597 = vpop.permute.xlu0 %596
      %598 = vrot.lane.b32.xlu0 %v202, 2
      %v599 = vpop.permute.xlu0 %598
      %600 = vrot.lane.b32.xlu0 %v204, 2
      %v601 = vpop.permute.xlu0 %600
      %602 = vrot.lane.b32.xlu0 %v206, 2
      %v603 = vpop.permute.xlu0 %602
      %vm604 = vcmp.lt.s32.totalorder %v224, 2
      %v605 = vsel %vm604, %v589, %v597
      %v606 = vsel %vm604, %v591, %v599
      %v607 = vsel %vm604, %v593, %v601
      %v608 = vsel %vm604, %v595, %v603
      %v609 = vsel %vm604, %v597, %v589
      %v610 = vsel %vm604, %v599, %v591
      %v611 = vsel %vm604, %v601, %v593
      %v612 = vsel %vm604, %v603, %v595
      %s613 = scalar_lea.vmem %s3, 6
      %v614 = vld [vmem:[%s613] sm:$0x3]
      %v616 = vlaneseq
      %v617 = vshrl.u32 %v616, 7
      %v618 = vsub.s32 0, %v617
      %v619 = vrot.slane %v614, %v618
      %v620 = vlaneseq
      %v621 = vshrl.u32 %v620, 7
      %v622 = vsub.s32 1, %v621
      %v623 = vrot.slane %v614, %v622
      %v626 = vmul.f32 %v609, %v619
      %v627 = vmul.f32 %v605, %v623
      %v628 = vmul.f32 %v610, %v619
      %v629 = vmul.f32 %v606, %v623
      %v630 = vmul.f32 %v611, %v619
      %v631 = vmul.f32 %v607, %v623
      %v632 = vmul.f32 %v612, %v619
      %v633 = vmul.f32 %v608, %v623
      %v634 = vpack.c.bf16 %v628, %v626
      %v635 = vpack.c.bf16 %v629, %v627
      %v636 = vpack.c.bf16 %v632, %v630
      %v637 = vpack.c.bf16 %v633, %v631
      %s638 = scalar_lea.vmem %s1, 48
      %v639 = vld [vmem:[%s638] sm:$0xf]
      %v640 = vld [vmem:[%s638 + $0x4] sm:$0xf]
      %v641 = vld [vmem:[%s638 + $0x8] sm:$0xf]
      %v642 = vld [vmem:[%s638 + $0xc] sm:$0xf]
      %v647 = vunpack.c.l.b16 %v639
      %v648 = vunpack.c.l.b16 %v640
      %v649 = vunpack.c.l.b16 %v641
      %v650 = vunpack.c.l.b16 %v642
      %v651 = vpack.c.b16 %v648, %v647
      %v652 = vpack.c.b16 %v650, %v649
      %v654 = vsel %vm327, %v651, 0
      %v657 = vsel %vm327, %v652, 0
      %659 = vmatprep.subr.bf16.mxu0 0
      %660 = vmatpush1.bf16.msra.mxu0 0
      %661 = vmatprep.subr.bf16.mxu0 0
      %662 = vmatpush1.bf16.msra.mxu0 0
      %663 = vmatprep.subr.bf16.mxu0 0
      %664 = vmatpush1.bf16.msra.mxu0 0
      %665 = vmatprep.subr.bf16.mxu0 0
      %666 = vmatpush1.bf16.msra.mxu0 0
      %667 = vmatprep.subr.bf16.mxu0 0
      %668 = vmatpush1.bf16.msra.mxu0 0
      %669 = vmatprep.subr.bf16.mxu0 0
      %670 = vmatpush1.bf16.msra.mxu0 0
      %671 = vmatprep.subr.bf16.mxu0 %v637
      %672 = vmatpush1.bf16.msra.mxu0 %v636
      %673 = vmatprep.subr.bf16.mxu0 %v635
      %674 = vmatpush1.bf16.msra.mxu0 %v634
      %675 = vmatprep.subr.bf16.mxu0 0
      %676 = vmatpush2.bf16.msra.mxu0 0
      %677 = vmatprep.subr.bf16.mxu0 0
      %678 = vmatpush2.bf16.msra.mxu0 0
      %679 = vmatprep.subr.bf16.mxu0 0
      %680 = vmatpush2.bf16.msra.mxu0 0
      %681 = vmatprep.subr.bf16.mxu0 0
      %682 = vmatpush2.bf16.msra.mxu0 0
      %683 = vmatprep.subr.bf16.mxu0 0
      %684 = vmatpush2.bf16.msra.mxu0 0
      %685 = vmatprep.subr.bf16.mxu0 0
      %686 = vmatpush2.bf16.msra.mxu0 0
      %687 = vmatprep.subr.bf16.mxu0 0
      %688 = vmatpush2.bf16.msra.mxu0 0
      %689 = vmatprep.subr.bf16.mxu0 0
      %690 = vmatpush2.bf16.msra.mxu0 0
      %691 = vmatprep.mubr.bf16.mxu0 0
      %692 = vmatmul.mubr.bf16.gmra.mxu0 %v654
      %v693 = vpop.f32.mrf.mxu0
      %v694 = vadd.f32 0.0, %v693
      %v695 = vpop.f32.mrf.mxu0
      %v696 = vadd.f32 0.0, %v695
      %v697 = vpop.f32.mrf.mxu0
      %v698 = vadd.f32 0.0, %v697
      %v699 = vpop.f32.mrf.mxu0
      %v700 = vadd.f32 0.0, %v699
      %701 = vmatprep.mubr.bf16.mxu0 0
      %702 = vmatmul.mubr.bf16.gmra.mxu0 %v657
      %v703 = vpop.f32.mrf.mxu0
      %v704 = vadd.f32 0.0, %v703
      %v705 = vpop.f32.mrf.mxu0
      %v706 = vadd.f32 0.0, %v705
      %v707 = vpop.f32.mrf.mxu0
      %v708 = vadd.f32 0.0, %v707
      %v709 = vpop.f32.mrf.mxu0
      %v710 = vadd.f32 0.0, %v709
      %711 = vdwg.mxu0
      %v712 = vadd.f32 %v580, %v694
      %v713 = vadd.f32 %v581, %v696
      %v714 = vadd.f32 %v582, %v698
      %v715 = vadd.f32 %v583, %v700
      %v716 = vadd.f32 %v584, %v704
      %v717 = vadd.f32 %v585, %v706
      %v718 = vadd.f32 %v586, %v708
      %v719 = vadd.f32 %v587, %v710
      %s720 = scalar_lea.vmem %s3, 8
      %v721 = vld [vmem:[%s720] sm:$0x3]
      %v723 = vlaneseq
      %v724 = vshrl.u32 %v723, 7
      %v725 = vsub.s32 0, %v724
      %v726 = vrot.slane %v721, %v725
      %v727 = vlaneseq
      %v728 = vshrl.u32 %v727, 7
      %v729 = vsub.s32 1, %v728
      %v730 = vrot.slane %v721, %v729
      %v733 = vmul.f32 %v199, %v726
      %v734 = vmul.f32 %v200, %v730
      %v735 = vmul.f32 %v201, %v726
      %v736 = vmul.f32 %v202, %v730
      %v737 = vmul.f32 %v203, %v726
      %v738 = vmul.f32 %v204, %v730
      %v739 = vmul.f32 %v205, %v726
      %v740 = vmul.f32 %v206, %v730
      %v741 = vpack.c.bf16 %v735, %v733
      %v742 = vpack.c.bf16 %v736, %v734
      %v743 = vpack.c.bf16 %v739, %v737
      %v744 = vpack.c.bf16 %v740, %v738
      %s745 = scalar_lea.vmem %s1, 64
      %v746 = vld [vmem:[%s745] sm:$0xf]
      %v747 = vld [vmem:[%s745 + $0x4] sm:$0xf]
      %v748 = vld [vmem:[%s745 + $0x8] sm:$0xf]
      %v749 = vld [vmem:[%s745 + $0xc] sm:$0xf]
      %v754 = vunpack.c.l.b16 %v746
      %v755 = vunpack.c.l.b16 %v747
      %v756 = vunpack.c.l.b16 %v748
      %v757 = vunpack.c.l.b16 %v749
      %v758 = vpack.c.b16 %v755, %v754
      %v759 = vpack.c.b16 %v757, %v756
      %v761 = vsel %vm327, %v758, 0
      %v764 = vsel %vm327, %v759, 0
      %766 = vmatprep.subr.bf16.mxu0 0
      %767 = vmatpush1.bf16.msra.mxu0 0
      %768 = vmatprep.subr.bf16.mxu0 0
      %769 = vmatpush1.bf16.msra.mxu0 0
      %770 = vmatprep.subr.bf16.mxu0 0
      %771 = vmatpush1.bf16.msra.mxu0 0
      %772 = vmatprep.subr.bf16.mxu0 0
      %773 = vmatpush1.bf16.msra.mxu0 0
      %774 = vmatprep.subr.bf16.mxu0 0
      %775 = vmatpush1.bf16.msra.mxu0 0
      %776 = vmatprep.subr.bf16.mxu0 0
      %777 = vmatpush1.bf16.msra.mxu0 0
      %778 = vmatprep.subr.bf16.mxu0 %v744
      %779 = vmatpush1.bf16.msra.mxu0 %v743
      %780 = vmatprep.subr.bf16.mxu0 %v742
      %781 = vmatpush1.bf16.msra.mxu0 %v741
      %782 = vmatprep.subr.bf16.mxu0 0
      %783 = vmatpush2.bf16.msra.mxu0 0
      %784 = vmatprep.subr.bf16.mxu0 0
      %785 = vmatpush2.bf16.msra.mxu0 0
      %786 = vmatprep.subr.bf16.mxu0 0
      %787 = vmatpush2.bf16.msra.mxu0 0
      %788 = vmatprep.subr.bf16.mxu0 0
      %789 = vmatpush2.bf16.msra.mxu0 0
      %790 = vmatprep.subr.bf16.mxu0 0
      %791 = vmatpush2.bf16.msra.mxu0 0
      %792 = vmatprep.subr.bf16.mxu0 0
      %793 = vmatpush2.bf16.msra.mxu0 0
      %794 = vmatprep.subr.bf16.mxu0 0
      %795 = vmatpush2.bf16.msra.mxu0 0
      %796 = vmatprep.subr.bf16.mxu0 0
      %797 = vmatpush2.bf16.msra.mxu0 0
      %798 = vmatprep.mubr.bf16.mxu0 0
      %799 = vmatmul.mubr.bf16.gmra.mxu0 %v761
      %v800 = vpop.f32.mrf.mxu0
      %v801 = vadd.f32 0.0, %v800
      %v802 = vpop.f32.mrf.mxu0
      %v803 = vadd.f32 0.0, %v802
      %v804 = vpop.f32.mrf.mxu0
      %v805 = vadd.f32 0.0, %v804
      %v806 = vpop.f32.mrf.mxu0
      %v807 = vadd.f32 0.0, %v806
      %808 = vmatprep.mubr.bf16.mxu0 0
      %809 = vmatmul.mubr.bf16.gmra.mxu0 %v764
      %v810 = vpop.f32.mrf.mxu0
      %v811 = vadd.f32 0.0, %v810
      %v812 = vpop.f32.mrf.mxu0
      %v813 = vadd.f32 0.0, %v812
      %v814 = vpop.f32.mrf.mxu0
      %v815 = vadd.f32 0.0, %v814
      %v816 = vpop.f32.mrf.mxu0
      %v817 = vadd.f32 0.0, %v816
      %818 = vdwg.mxu0
      %v819 = vadd.f32 %v712, %v801
      %v820 = vadd.f32 %v713, %v803
      %v821 = vadd.f32 %v714, %v805
      %v822 = vadd.f32 %v715, %v807
      %v823 = vadd.f32 %v716, %v811
      %v824 = vadd.f32 %v717, %v813
      %v825 = vadd.f32 %v718, %v815
      %v826 = vadd.f32 %v719, %v817
      %827 = vrot.lane.b32.xlu0 %v199, 126
      %v828 = vpop.permute.xlu0 %827
      %829 = vrot.lane.b32.xlu0 %v201, 126
      %v830 = vpop.permute.xlu0 %829
      %831 = vrot.lane.b32.xlu0 %v203, 126
      %v832 = vpop.permute.xlu0 %831
      %833 = vrot.lane.b32.xlu0 %v205, 126
      %v834 = vpop.permute.xlu0 %833
      %835 = vrot.lane.b32.xlu0 %v200, 126
      %v836 = vpop.permute.xlu0 %835
      %837 = vrot.lane.b32.xlu0 %v202, 126
      %v838 = vpop.permute.xlu0 %837
      %839 = vrot.lane.b32.xlu0 %v204, 126
      %v840 = vpop.permute.xlu0 %839
      %841 = vrot.lane.b32.xlu0 %v206, 126
      %v842 = vpop.permute.xlu0 %841
      %vm843 = vcmp.lt.s32.totalorder %v224, 126
      %v844 = vsel %vm843, %v828, %v836
      %v845 = vsel %vm843, %v830, %v838
      %v846 = vsel %vm843, %v832, %v840
      %v847 = vsel %vm843, %v834, %v842
      %v848 = vsel %vm843, %v836, %v828
      %v849 = vsel %vm843, %v838, %v830
      %v850 = vsel %vm843, %v840, %v832
      %v851 = vsel %vm843, %v842, %v834
      %s852 = scalar_lea.vmem %s3, 10
      %v853 = vld [vmem:[%s852] sm:$0x3]
      %v855 = vlaneseq
      %v856 = vshrl.u32 %v855, 7
      %v857 = vsub.s32 0, %v856
      %v858 = vrot.slane %v853, %v857
      %v859 = vlaneseq
      %v860 = vshrl.u32 %v859, 7
      %v861 = vsub.s32 1, %v860
      %v862 = vrot.slane %v853, %v861
      %v865 = vmul.f32 %v844, %v858
      %v866 = vmul.f32 %v848, %v862
      %v867 = vmul.f32 %v845, %v858
      %v868 = vmul.f32 %v849, %v862
      %v869 = vmul.f32 %v846, %v858
      %v870 = vmul.f32 %v850, %v862
      %v871 = vmul.f32 %v847, %v858
      %v872 = vmul.f32 %v851, %v862
      %v873 = vpack.c.bf16 %v867, %v865
      %v874 = vpack.c.bf16 %v868, %v866
      %v875 = vpack.c.bf16 %v871, %v869
      %v876 = vpack.c.bf16 %v872, %v870
      %s877 = scalar_lea.vmem %s1, 80
      %v878 = vld [vmem:[%s877] sm:$0xf]
      %v879 = vld [vmem:[%s877 + $0x4] sm:$0xf]
      %v880 = vld [vmem:[%s877 + $0x8] sm:$0xf]
      %v881 = vld [vmem:[%s877 + $0xc] sm:$0xf]
      %v886 = vunpack.c.l.b16 %v878
      %v887 = vunpack.c.l.b16 %v879
      %v888 = vunpack.c.l.b16 %v880
      %v889 = vunpack.c.l.b16 %v881
      %v890 = vpack.c.b16 %v887, %v886
      %v891 = vpack.c.b16 %v889, %v888
      %v893 = vsel %vm327, %v890, 0
      %v896 = vsel %vm327, %v891, 0
      %898 = vmatprep.subr.bf16.mxu0 0
      %899 = vmatpush1.bf16.msra.mxu0 0
      %900 = vmatprep.subr.bf16.mxu0 0
      %901 = vmatpush1.bf16.msra.mxu0 0
      %902 = vmatprep.subr.bf16.mxu0 0
      %903 = vmatpush1.bf16.msra.mxu0 0
      %904 = vmatprep.subr.bf16.mxu0 0
      %905 = vmatpush1.bf16.msra.mxu0 0
      %906 = vmatprep.subr.bf16.mxu0 0
      %907 = vmatpush1.bf16.msra.mxu0 0
      %908 = vmatprep.subr.bf16.mxu0 0
      %909 = vmatpush1.bf16.msra.mxu0 0
      %910 = vmatprep.subr.bf16.mxu0 %v876
      %911 = vmatpush1.bf16.msra.mxu0 %v875
      %912 = vmatprep.subr.bf16.mxu0 %v874
      %913 = vmatpush1.bf16.msra.mxu0 %v873
      %914 = vmatprep.subr.bf16.mxu0 0
      %915 = vmatpush2.bf16.msra.mxu0 0
      %916 = vmatprep.subr.bf16.mxu0 0
      %917 = vmatpush2.bf16.msra.mxu0 0
      %918 = vmatprep.subr.bf16.mxu0 0
      %919 = vmatpush2.bf16.msra.mxu0 0
      %920 = vmatprep.subr.bf16.mxu0 0
      %921 = vmatpush2.bf16.msra.mxu0 0
      %922 = vmatprep.subr.bf16.mxu0 0
      %923 = vmatpush2.bf16.msra.mxu0 0
      %924 = vmatprep.subr.bf16.mxu0 0
      %925 = vmatpush2.bf16.msra.mxu0 0
      %926 = vmatprep.subr.bf16.mxu0 0
      %927 = vmatpush2.bf16.msra.mxu0 0
      %928 = vmatprep.subr.bf16.mxu0 0
      %929 = vmatpush2.bf16.msra.mxu0 0
      %930 = vmatprep.mubr.bf16.mxu0 0
      %931 = vmatmul.mubr.bf16.gmra.mxu0 %v893
      %v932 = vpop.f32.mrf.mxu0
      %v933 = vadd.f32 0.0, %v932
      %v934 = vpop.f32.mrf.mxu0
      %v935 = vadd.f32 0.0, %v934
      %v936 = vpop.f32.mrf.mxu0
      %v937 = vadd.f32 0.0, %v936
      %v938 = vpop.f32.mrf.mxu0
      %v939 = vadd.f32 0.0, %v938
      %940 = vmatprep.mubr.bf16.mxu0 0
      %941 = vmatmul.mubr.bf16.gmra.mxu0 %v896
      %v942 = vpop.f32.mrf.mxu0
      %v943 = vadd.f32 0.0, %v942
      %v944 = vpop.f32.mrf.mxu0
      %v945 = vadd.f32 0.0, %v944
      %v946 = vpop.f32.mrf.mxu0
      %v947 = vadd.f32 0.0, %v946
      %v948 = vpop.f32.mrf.mxu0
      %v949 = vadd.f32 0.0, %v948
      %950 = vdwg.mxu0
      %v951 = vadd.f32 %v819, %v933
      %v952 = vadd.f32 %v820, %v935
      %v953 = vadd.f32 %v821, %v937
      %v954 = vadd.f32 %v822, %v939
      %v955 = vadd.f32 %v823, %v943
      %v956 = vadd.f32 %v824, %v945
      %v957 = vadd.f32 %v825, %v947
      %v958 = vadd.f32 %v826, %v949
      %959 = vrot.lane.b32.xlu0 %v199, 98
      %v960 = vpop.permute.xlu0 %959
      %961 = vrot.lane.b32.xlu0 %v201, 98
      %v962 = vpop.permute.xlu0 %961
      %963 = vrot.lane.b32.xlu0 %v203, 98
      %v964 = vpop.permute.xlu0 %963
      %965 = vrot.lane.b32.xlu0 %v205, 98
      %v966 = vpop.permute.xlu0 %965
      %967 = vrot.lane.b32.xlu0 %v200, 98
      %v968 = vpop.permute.xlu0 %967
      %969 = vrot.lane.b32.xlu0 %v202, 98
      %v970 = vpop.permute.xlu0 %969
      %971 = vrot.lane.b32.xlu0 %v204, 98
      %v972 = vpop.permute.xlu0 %971
      %973 = vrot.lane.b32.xlu0 %v206, 98
      %v974 = vpop.permute.xlu0 %973
      %vm975 = vcmp.lt.s32.totalorder %v224, 98
      %v976 = vsel %vm975, %v960, %v968
      %v977 = vsel %vm975, %v962, %v970
      %v978 = vsel %vm975, %v964, %v972
      %v979 = vsel %vm975, %v966, %v974
      %v980 = vsel %vm975, %v968, %v960
      %v981 = vsel %vm975, %v970, %v962
      %v982 = vsel %vm975, %v972, %v964
      %v983 = vsel %vm975, %v974, %v966
      %s984 = scalar_lea.vmem %s3, 12
      %v985 = vld [vmem:[%s984] sm:$0x3]
      %v987 = vlaneseq
      %v988 = vshrl.u32 %v987, 7
      %v989 = vsub.s32 0, %v988
      %v990 = vrot.slane %v985, %v989
      %v991 = vlaneseq
      %v992 = vshrl.u32 %v991, 7
      %v993 = vsub.s32 1, %v992
      %v994 = vrot.slane %v985, %v993
      %v997 = vmul.f32 %v976, %v990
      %v998 = vmul.f32 %v980, %v994
      %v999 = vmul.f32 %v977, %v990
      %v1000 = vmul.f32 %v981, %v994
      %v1001 = vmul.f32 %v978, %v990
      %v1002 = vmul.f32 %v982, %v994
      %v1003 = vmul.f32 %v979, %v990
      %v1004 = vmul.f32 %v983, %v994
      %v1005 = vpack.c.bf16 %v999, %v997
      %v1006 = vpack.c.bf16 %v1000, %v998
      %v1007 = vpack.c.bf16 %v1003, %v1001
      %v1008 = vpack.c.bf16 %v1004, %v1002
      %s1009 = scalar_lea.vmem %s1, 96
      %v1010 = vld [vmem:[%s1009] sm:$0xf]
      %v1011 = vld [vmem:[%s1009 + $0x4] sm:$0xf]
      %v1012 = vld [vmem:[%s1009 + $0x8] sm:$0xf]
      %v1013 = vld [vmem:[%s1009 + $0xc] sm:$0xf]
      %v1018 = vunpack.c.l.b16 %v1010
      %v1019 = vunpack.c.l.b16 %v1011
      %v1020 = vunpack.c.l.b16 %v1012
      %v1021 = vunpack.c.l.b16 %v1013
      %v1022 = vpack.c.b16 %v1019, %v1018
      %v1023 = vpack.c.b16 %v1021, %v1020
      %v1025 = vsel %vm327, %v1022, 0
      %v1028 = vsel %vm327, %v1023, 0
      %1030 = vmatprep.subr.bf16.mxu0 0
      %1031 = vmatpush1.bf16.msra.mxu0 0
      %1032 = vmatprep.subr.bf16.mxu0 0
      %1033 = vmatpush1.bf16.msra.mxu0 0
      %1034 = vmatprep.subr.bf16.mxu0 0
      %1035 = vmatpush1.bf16.msra.mxu0 0
      %1036 = vmatprep.subr.bf16.mxu0 0
      %1037 = vmatpush1.bf16.msra.mxu0 0
      %1038 = vmatprep.subr.bf16.mxu0 0
      %1039 = vmatpush1.bf16.msra.mxu0 0
      %1040 = vmatprep.subr.bf16.mxu0 0
      %1041 = vmatpush1.bf16.msra.mxu0 0
      %1042 = vmatprep.subr.bf16.mxu0 %v1008
      %1043 = vmatpush1.bf16.msra.mxu0 %v1007
      %1044 = vmatprep.subr.bf16.mxu0 %v1006
      %1045 = vmatpush1.bf16.msra.mxu0 %v1005
      %1046 = vmatprep.subr.bf16.mxu0 0
      %1047 = vmatpush2.bf16.msra.mxu0 0
      %1048 = vmatprep.subr.bf16.mxu0 0
      %1049 = vmatpush2.bf16.msra.mxu0 0
      %1050 = vmatprep.subr.bf16.mxu0 0
      %1051 = vmatpush2.bf16.msra.mxu0 0
      %1052 = vmatprep.subr.bf16.mxu0 0
      %1053 = vmatpush2.bf16.msra.mxu0 0
      %1054 = vmatprep.subr.bf16.mxu0 0
      %1055 = vmatpush2.bf16.msra.mxu0 0
      %1056 = vmatprep.subr.bf16.mxu0 0
      %1057 = vmatpush2.bf16.msra.mxu0 0
      %1058 = vmatprep.subr.bf16.mxu0 0
      %1059 = vmatpush2.bf16.msra.mxu0 0
      %1060 = vmatprep.subr.bf16.mxu0 0
      %1061 = vmatpush2.bf16.msra.mxu0 0
      %1062 = vmatprep.mubr.bf16.mxu0 0
      %1063 = vmatmul.mubr.bf16.gmra.mxu0 %v1025
      %v1064 = vpop.f32.mrf.mxu0
      %v1065 = vadd.f32 0.0, %v1064
      %v1066 = vpop.f32.mrf.mxu0
      %v1067 = vadd.f32 0.0, %v1066
      %v1068 = vpop.f32.mrf.mxu0
      %v1069 = vadd.f32 0.0, %v1068
      %v1070 = vpop.f32.mrf.mxu0
      %v1071 = vadd.f32 0.0, %v1070
      %1072 = vmatprep.mubr.bf16.mxu0 0
      %1073 = vmatmul.mubr.bf16.gmra.mxu0 %v1028
      %v1074 = vpop.f32.mrf.mxu0
      %v1075 = vadd.f32 0.0, %v1074
      %v1076 = vpop.f32.mrf.mxu0
      %v1077 = vadd.f32 0.0, %v1076
      %v1078 = vpop.f32.mrf.mxu0
      %v1079 = vadd.f32 0.0, %v1078
      %v1080 = vpop.f32.mrf.mxu0
      %v1081 = vadd.f32 0.0, %v1080
      %1082 = vdwg.mxu0
      %v1083 = vadd.f32 %v951, %v1065
      %v1084 = vadd.f32 %v952, %v1067
      %v1085 = vadd.f32 %v953, %v1069
      %v1086 = vadd.f32 %v954, %v1071
      %v1087 = vadd.f32 %v955, %v1075
      %v1088 = vadd.f32 %v956, %v1077
      %v1089 = vadd.f32 %v957, %v1079
      %v1090 = vadd.f32 %v958, %v1081
      %1091 = vrot.lane.b32.xlu0 %v199, 96
      %v1092 = vpop.permute.xlu0 %1091
      %1093 = vrot.lane.b32.xlu0 %v201, 96
      %v1094 = vpop.permute.xlu0 %1093
      %1095 = vrot.lane.b32.xlu0 %v203, 96
      %v1096 = vpop.permute.xlu0 %1095
      %1097 = vrot.lane.b32.xlu0 %v205, 96
      %v1098 = vpop.permute.xlu0 %1097
      %1099 = vrot.lane.b32.xlu0 %v200, 96
      %v1100 = vpop.permute.xlu0 %1099
      %1101 = vrot.lane.b32.xlu0 %v202, 96
      %v1102 = vpop.permute.xlu0 %1101
      %1103 = vrot.lane.b32.xlu0 %v204, 96
      %v1104 = vpop.permute.xlu0 %1103
      %1105 = vrot.lane.b32.xlu0 %v206, 96
      %v1106 = vpop.permute.xlu0 %1105
      %vm1107 = vcmp.lt.s32.totalorder %v224, 96
      %v1108 = vsel %vm1107, %v1092, %v1100
      %v1109 = vsel %vm1107, %v1094, %v1102
      %v1110 = vsel %vm1107, %v1096, %v1104
      %v1111 = vsel %vm1107, %v1098, %v1106
      %v1112 = vsel %vm1107, %v1100, %v1092
      %v1113 = vsel %vm1107, %v1102, %v1094
      %v1114 = vsel %vm1107, %v1104, %v1096
      %v1115 = vsel %vm1107, %v1106, %v1098
      %s1116 = scalar_lea.vmem %s3, 14
      %v1117 = vld [vmem:[%s1116] sm:$0x3]
      %v1119 = vlaneseq
      %v1120 = vshrl.u32 %v1119, 7
      %v1121 = vsub.s32 0, %v1120
      %v1122 = vrot.slane %v1117, %v1121
      %v1123 = vlaneseq
      %v1124 = vshrl.u32 %v1123, 7
      %v1125 = vsub.s32 1, %v1124
      %v1126 = vrot.slane %v1117, %v1125
      %v1129 = vmul.f32 %v1108, %v1122
      %v1130 = vmul.f32 %v1112, %v1126
      %v1131 = vmul.f32 %v1109, %v1122
      %v1132 = vmul.f32 %v1113, %v1126
      %v1133 = vmul.f32 %v1110, %v1122
      %v1134 = vmul.f32 %v1114, %v1126
      %v1135 = vmul.f32 %v1111, %v1122
      %v1136 = vmul.f32 %v1115, %v1126
      %v1137 = vpack.c.bf16 %v1131, %v1129
      %v1138 = vpack.c.bf16 %v1132, %v1130
      %v1139 = vpack.c.bf16 %v1135, %v1133
      %v1140 = vpack.c.bf16 %v1136, %v1134
      %s1141 = scalar_lea.vmem %s1, 112
      %v1142 = vld [vmem:[%s1141] sm:$0xf]
      %v1143 = vld [vmem:[%s1141 + $0x4] sm:$0xf]
      %v1144 = vld [vmem:[%s1141 + $0x8] sm:$0xf]
      %v1145 = vld [vmem:[%s1141 + $0xc] sm:$0xf]
      %v1150 = vunpack.c.l.b16 %v1142
      %v1151 = vunpack.c.l.b16 %v1143
      %v1152 = vunpack.c.l.b16 %v1144
      %v1153 = vunpack.c.l.b16 %v1145
      %v1154 = vpack.c.b16 %v1151, %v1150
      %v1155 = vpack.c.b16 %v1153, %v1152
      %v1157 = vsel %vm327, %v1154, 0
      %v1160 = vsel %vm327, %v1155, 0
      %1162 = vmatprep.subr.bf16.mxu0 0
      %1163 = vmatpush1.bf16.msra.mxu0 0
      %1164 = vmatprep.subr.bf16.mxu0 0
      %1165 = vmatpush1.bf16.msra.mxu0 0
      %1166 = vmatprep.subr.bf16.mxu0 0
      %1167 = vmatpush1.bf16.msra.mxu0 0
      %1168 = vmatprep.subr.bf16.mxu0 0
      %1169 = vmatpush1.bf16.msra.mxu0 0
      %1170 = vmatprep.subr.bf16.mxu0 0
      %1171 = vmatpush1.bf16.msra.mxu0 0
      %1172 = vmatprep.subr.bf16.mxu0 0
      %1173 = vmatpush1.bf16.msra.mxu0 0
      %1174 = vmatprep.subr.bf16.mxu0 %v1140
      %1175 = vmatpush1.bf16.msra.mxu0 %v1139
      %1176 = vmatprep.subr.bf16.mxu0 %v1138
      %1177 = vmatpush1.bf16.msra.mxu0 %v1137
      %1178 = vmatprep.subr.bf16.mxu0 0
      %1179 = vmatpush2.bf16.msra.mxu0 0
      %1180 = vmatprep.subr.bf16.mxu0 0
      %1181 = vmatpush2.bf16.msra.mxu0 0
      %1182 = vmatprep.subr.bf16.mxu0 0
      %1183 = vmatpush2.bf16.msra.mxu0 0
      %1184 = vmatprep.subr.bf16.mxu0 0
      %1185 = vmatpush2.bf16.msra.mxu0 0
      %1186 = vmatprep.subr.bf16.mxu0 0
      %1187 = vmatpush2.bf16.msra.mxu0 0
      %1188 = vmatprep.subr.bf16.mxu0 0
      %1189 = vmatpush2.bf16.msra.mxu0 0
      %1190 = vmatprep.subr.bf16.mxu0 0
      %1191 = vmatpush2.bf16.msra.mxu0 0
      %1192 = vmatprep.subr.bf16.mxu0 0
      %1193 = vmatpush2.bf16.msra.mxu0 0
      %1194 = vmatprep.mubr.bf16.mxu0 0
      %1195 = vmatmul.mubr.bf16.gmra.mxu0 %v1157
      %v1196 = vpop.f32.mrf.mxu0
      %v1197 = vadd.f32 0.0, %v1196
      %v1198 = vpop.f32.mrf.mxu0
      %v1199 = vadd.f32 0.0, %v1198
      %v1200 = vpop.f32.mrf.mxu0
      %v1201 = vadd.f32 0.0, %v1200
      %v1202 = vpop.f32.mrf.mxu0
      %v1203 = vadd.f32 0.0, %v1202
      %1204 = vmatprep.mubr.bf16.mxu0 0
      %1205 = vmatmul.mubr.bf16.gmra.mxu0 %v1160
      %v1206 = vpop.f32.mrf.mxu0
      %v1207 = vadd.f32 0.0, %v1206
      %v1208 = vpop.f32.mrf.mxu0
      %v1209 = vadd.f32 0.0, %v1208
      %v1210 = vpop.f32.mrf.mxu0
      %v1211 = vadd.f32 0.0, %v1210
      %v1212 = vpop.f32.mrf.mxu0
      %v1213 = vadd.f32 0.0, %v1212
      %1214 = vdwg.mxu0
      %v1215 = vadd.f32 %v1083, %v1197
      %v1216 = vadd.f32 %v1084, %v1199
      %v1217 = vadd.f32 %v1085, %v1201
      %v1218 = vadd.f32 %v1086, %v1203
      %v1219 = vadd.f32 %v1087, %v1207
      %v1220 = vadd.f32 %v1088, %v1209
      %v1221 = vadd.f32 %v1089, %v1211
      %v1222 = vadd.f32 %v1090, %v1213
      %1223 = vrot.lane.b32.xlu0 %v199, 94
      %v1224 = vpop.permute.xlu0 %1223
      %1225 = vrot.lane.b32.xlu0 %v201, 94
      %v1226 = vpop.permute.xlu0 %1225
      %1227 = vrot.lane.b32.xlu0 %v203, 94
      %v1228 = vpop.permute.xlu0 %1227
      %1229 = vrot.lane.b32.xlu0 %v205, 94
      %v1230 = vpop.permute.xlu0 %1229
      %1231 = vrot.lane.b32.xlu0 %v200, 94
      %v1232 = vpop.permute.xlu0 %1231
      %1233 = vrot.lane.b32.xlu0 %v202, 94
      %v1234 = vpop.permute.xlu0 %1233
      %1235 = vrot.lane.b32.xlu0 %v204, 94
      %v1236 = vpop.permute.xlu0 %1235
      %1237 = vrot.lane.b32.xlu0 %v206, 94
      %v1238 = vpop.permute.xlu0 %1237
      %vm1239 = vcmp.lt.s32.totalorder %v224, 94
      %v1240 = vsel %vm1239, %v1224, %v1232
      %v1241 = vsel %vm1239, %v1226, %v1234
      %v1242 = vsel %vm1239, %v1228, %v1236
      %v1243 = vsel %vm1239, %v1230, %v1238
      %v1244 = vsel %vm1239, %v1232, %v1224
      %v1245 = vsel %vm1239, %v1234, %v1226
      %v1246 = vsel %vm1239, %v1236, %v1228
      %v1247 = vsel %vm1239, %v1238, %v1230
      %s1248 = scalar_lea.vmem %s3, 16
      %v1249 = vld [vmem:[%s1248] sm:$0x3]
      %v1251 = vlaneseq
      %v1252 = vshrl.u32 %v1251, 7
      %v1253 = vsub.s32 0, %v1252
      %v1254 = vrot.slane %v1249, %v1253
      %v1255 = vlaneseq
      %v1256 = vshrl.u32 %v1255, 7
      %v1257 = vsub.s32 1, %v1256
      %v1258 = vrot.slane %v1249, %v1257
      %v1261 = vmul.f32 %v1240, %v1254
      %v1262 = vmul.f32 %v1244, %v1258
      %v1263 = vmul.f32 %v1241, %v1254
      %v1264 = vmul.f32 %v1245, %v1258
      %v1265 = vmul.f32 %v1242, %v1254
      %v1266 = vmul.f32 %v1246, %v1258
      %v1267 = vmul.f32 %v1243, %v1254
      %v1268 = vmul.f32 %v1247, %v1258
      %v1269 = vpack.c.bf16 %v1263, %v1261
      %v1270 = vpack.c.bf16 %v1264, %v1262
      %v1271 = vpack.c.bf16 %v1267, %v1265
      %v1272 = vpack.c.bf16 %v1268, %v1266
      %s1273 = scalar_lea.vmem %s1, 128
      %v1274 = vld [vmem:[%s1273] sm:$0xf]
      %v1275 = vld [vmem:[%s1273 + $0x4] sm:$0xf]
      %v1276 = vld [vmem:[%s1273 + $0x8] sm:$0xf]
      %v1277 = vld [vmem:[%s1273 + $0xc] sm:$0xf]
      %v1282 = vunpack.c.l.b16 %v1274
      %v1283 = vunpack.c.l.b16 %v1275
      %v1284 = vunpack.c.l.b16 %v1276
      %v1285 = vunpack.c.l.b16 %v1277
      %v1286 = vpack.c.b16 %v1283, %v1282
      %v1287 = vpack.c.b16 %v1285, %v1284
      %v1289 = vsel %vm327, %v1286, 0
      %v1292 = vsel %vm327, %v1287, 0
      %1294 = vmatprep.subr.bf16.mxu0 0
      %1295 = vmatpush1.bf16.msra.mxu0 0
      %1296 = vmatprep.subr.bf16.mxu0 0
      %1297 = vmatpush1.bf16.msra.mxu0 0
      %1298 = vmatprep.subr.bf16.mxu0 0
      %1299 = vmatpush1.bf16.msra.mxu0 0
      %1300 = vmatprep.subr.bf16.mxu0 0
      %1301 = vmatpush1.bf16.msra.mxu0 0
      %1302 = vmatprep.subr.bf16.mxu0 0
      %1303 = vmatpush1.bf16.msra.mxu0 0
      %1304 = vmatprep.subr.bf16.mxu0 0
      %1305 = vmatpush1.bf16.msra.mxu0 0
      %1306 = vmatprep.subr.bf16.mxu0 %v1272
      %1307 = vmatpush1.bf16.msra.mxu0 %v1271
      %1308 = vmatprep.subr.bf16.mxu0 %v1270
      %1309 = vmatpush1.bf16.msra.mxu0 %v1269
      %1310 = vmatprep.subr.bf16.mxu0 0
      %1311 = vmatpush2.bf16.msra.mxu0 0
      %1312 = vmatprep.subr.bf16.mxu0 0
      %1313 = vmatpush2.bf16.msra.mxu0 0
      %1314 = vmatprep.subr.bf16.mxu0 0
      %1315 = vmatpush2.bf16.msra.mxu0 0
      %1316 = vmatprep.subr.bf16.mxu0 0
      %1317 = vmatpush2.bf16.msra.mxu0 0
      %1318 = vmatprep.subr.bf16.mxu0 0
      %1319 = vmatpush2.bf16.msra.mxu0 0
      %1320 = vmatprep.subr.bf16.mxu0 0
      %1321 = vmatpush2.bf16.msra.mxu0 0
      %1322 = vmatprep.subr.bf16.mxu0 0
      %1323 = vmatpush2.bf16.msra.mxu0 0
      %1324 = vmatprep.subr.bf16.mxu0 0
      %1325 = vmatpush2.bf16.msra.mxu0 0
      %1326 = vmatprep.mubr.bf16.mxu0 0
      %1327 = vmatmul.mubr.bf16.gmra.mxu0 %v1289
      %v1328 = vpop.f32.mrf.mxu0
      %v1329 = vadd.f32 0.0, %v1328
      %v1330 = vpop.f32.mrf.mxu0
      %v1331 = vadd.f32 0.0, %v1330
      %v1332 = vpop.f32.mrf.mxu0
      %v1333 = vadd.f32 0.0, %v1332
      %v1334 = vpop.f32.mrf.mxu0
      %v1335 = vadd.f32 0.0, %v1334
      %1336 = vmatprep.mubr.bf16.mxu0 0
      %1337 = vmatmul.mubr.bf16.gmra.mxu0 %v1292
      %v1338 = vpop.f32.mrf.mxu0
      %v1339 = vadd.f32 0.0, %v1338
      %v1340 = vpop.f32.mrf.mxu0
      %v1341 = vadd.f32 0.0, %v1340
      %v1342 = vpop.f32.mrf.mxu0
      %v1343 = vadd.f32 0.0, %v1342
      %v1344 = vpop.f32.mrf.mxu0
      %v1345 = vadd.f32 0.0, %v1344
      %1346 = vdwg.mxu0
      %v1347 = vadd.f32 %v1215, %v1329
      %v1348 = vadd.f32 %v1216, %v1331
      %v1349 = vadd.f32 %v1217, %v1333
      %v1350 = vadd.f32 %v1218, %v1335
      %v1351 = vadd.f32 %v1219, %v1339
      %v1352 = vadd.f32 %v1220, %v1341
      %v1353 = vadd.f32 %v1221, %v1343
      %v1354 = vadd.f32 %v1222, %v1345
      %v1355 = vld [vmem:[%s2] sm:$0xff]
      %v1356 = vld [vmem:[%s2 + $0x8] sm:$0xff]
      %v1357 = vld [vmem:[%s2 + $0x10] sm:$0xff]
      %v1358 = vld [vmem:[%s2 + $0x18] sm:$0xff]
      %1360 = vset.pattern.permute.xlu0 0
      %1361 = vperm.xlu0 %1360, %v1355
      %v1362 = vpop.permute.xlu0 %1361
      %1365 = vset.pattern.permute.xlu0 0
      %1366 = vperm.xlu0 %1365, %v1356
      %v1367 = vpop.permute.xlu0 %1366
      %1370 = vset.pattern.permute.xlu0 0
      %1371 = vperm.xlu0 %1370, %v1357
      %v1372 = vpop.permute.xlu0 %1371
      %1375 = vset.pattern.permute.xlu0 0
      %1376 = vperm.xlu0 %1375, %v1358
      %v1377 = vpop.permute.xlu0 %1376
      %v1379 = vadd.f32 %v1347, %v1362
      %v1380 = vadd.f32 %v1348, %v1362
      %v1381 = vadd.f32 %v1349, %v1367
      %v1382 = vadd.f32 %v1350, %v1367
      %v1383 = vadd.f32 %v1351, %v1372
      %v1384 = vadd.f32 %v1352, %v1372
      %v1385 = vadd.f32 %v1353, %v1377
      %v1386 = vadd.f32 %v1354, %v1377
      %vm1387 = vcmp.gt.f32.partialorder %v1379, 0.0
      %vm1388 = vcmp.gt.f32.partialorder %v1380, 0.0
      %vm1389 = vcmp.gt.f32.partialorder %v1381, 0.0
      %vm1390 = vcmp.gt.f32.partialorder %v1382, 0.0
      %vm1391 = vcmp.gt.f32.partialorder %v1383, 0.0
      %vm1392 = vcmp.gt.f32.partialorder %v1384, 0.0
      %vm1393 = vcmp.gt.f32.partialorder %v1385, 0.0
      %vm1394 = vcmp.gt.f32.partialorder %v1386, 0.0
      %v1395 = vmul.f32 %v1379, 0.2
      %v1396 = vmul.f32 %v1380, 0.2
      %v1397 = vmul.f32 %v1381, 0.2
      %v1398 = vmul.f32 %v1382, 0.2
      %v1399 = vmul.f32 %v1383, 0.2
      %v1400 = vmul.f32 %v1384, 0.2
      %v1401 = vmul.f32 %v1385, 0.2
      %v1402 = vmul.f32 %v1386, 0.2
      %v1403 = vsel %vm1387, %v1379, %v1395
      %v1404 = vsel %vm1388, %v1380, %v1396
      %v1405 = vsel %vm1389, %v1381, %v1397
      %v1406 = vsel %vm1390, %v1382, %v1398
      %v1407 = vsel %vm1391, %v1383, %v1399
      %v1408 = vsel %vm1392, %v1384, %v1400
      %v1409 = vsel %vm1393, %v1385, %v1401
      %v1410 = vsel %vm1394, %v1386, %v1402
      %1411 = vst [vmem:[%s197] sm:$0xff] %v1403
      %1412 = vst [vmem:[%s197 + $0x8] sm:$0xff] %v1404
      %1413 = vst [vmem:[%s197 + $0x10] sm:$0xff] %v1405
      %1414 = vst [vmem:[%s197 + $0x18] sm:$0xff] %v1406
      %1415 = vst [vmem:[%s197 + $0x20] sm:$0xff] %v1407
      %1416 = vst [vmem:[%s197 + $0x28] sm:$0xff] %v1408
      %1417 = vst [vmem:[%s197 + $0x30] sm:$0xff] %v1409
      %1418 = vst [vmem:[%s197 + $0x38] sm:$0xff] %v1410
      %p1419 = scmp.lt.s32.totalorder %s15, 3
      %s1420 = scalar_select %p1419, %s15, 3
      %s1421 = smul.addr %s1420, 8
      %s1422 = smul.addr %s1421, 8
      %s1423 = scalar_lea.vmem %s4, %s1422
      // Predicated region
      $region37: #{_lambda_.10} parent=35 // pred_check
        %p1424 = pneg %p122
      $region38: #{_lambda_.10} parent=35 // pred_check_branch
        %1426 = sbr.rel (%p1424) target = $region40
      $region39: #{_lambda_.10} parent=35 // pred_region
        _
      $region40: #{_lambda_.10} parent=35 // pred_fallthru
        _
    $region36: #{_lambda_.10} parent=5 // pred_fallthru
      _
    %p1427 = scmp.le.s32.totalorder 2, %s10
    // Predicated region
    $region41: #{_lambda_.10} parent=5 // pred_check
      %p1428 = pneg %p1427
    $region42: #{_lambda_.10} parent=5 // pred_check_branch
      %1430 = sbr.rel (%p1428) target = $region44
    $region43: #{_lambda_.10} parent=5 // pred_region
      %s1431 = ssub.s32 %s10, 2
      // Predicated region
      $region45: #{_lambda_.10} parent=43 // pred_check
        %p1432 = pneg %p128
      $region46: #{_lambda_.10} parent=43 // pred_check_branch
        %1434 = sbr.rel (%p1432) target = $region48
      $region47: #{_lambda_.10} parent=43 // pred_region
        %p1435 = scmp.lt.s32.totalorder %s16, 3
        %s1436 = scalar_select %p1435, %s16, 3
        %s1437 = smul.addr %s1436, 8
        %s1438 = smul.addr %s1437, 8
        %s1439 = scalar_lea.vmem %s4, %s1438
      $region48: #{_lambda_.10} parent=43 // pred_fallthru
        _
    $region44: #{_lambda_.10} parent=5 // pred_fallthru
      _
  $region6: #{_lambda_.10} parent=0 // loop_footer
    %s14 = sadd.s32 1, %s10
  $region7: #{_lambda_.10} parent=0 // loop_footer_branch
    %9 = sbr.rel target = $region3
  $region8: #{_lambda_.10} parent=0 // loop_exit
    _

</llo_original>
